<compile_context>
chip_gen: v7x
topology: tpu7x:2x2x1
jax: 0.10.0
libtpu: 0.0.40
codegen_flags: <defaults>
</compile_context>

<pallas_src>
import functools
import math

import jax
import jax.numpy as jnp
import numpy as np
from jax import lax
from jax.experimental import pallas as pl
from jax.experimental.pallas import tpu as pltpu


def _round_up(x, m):
    return ((x + m - 1) // m) * m


# --------------------------------------------------------------------------
# Kernel
# --------------------------------------------------------------------------
def _faconv_kernel(*refs, K, p, TH, W8, O, use_halo):
    # refs (use_halo):      xb, xh, w, b, out, x_scr
    # refs (not use_halo):  xb,     w, b, out, x_scr
    #   xb_ref : (1, TH, Wp8, C)   body rows of the padded input
    #            (or (1, TH+2p, Wp8, C) in whole-image / p==0 mode)
    #   xh_ref : (1, 2p, Wp8, C)   bottom halo rows
    #   w_ref  : (K, K, C, O)      folded weight (all four branches summed)
    #   b_ref  : (1, O)            folded bias (f32)
    #   out_ref: (1, TH, W8, O)
    #   x_scr  : VMEM (TH + 2p, Wp8, C) stitched input rows
    if use_halo:
        xb_ref, xh_ref, w_ref, b_ref, out_ref, x_scr = refs
    else:
        xb_ref, w_ref, b_ref, out_ref, x_scr = refs

    C = w_ref.shape[2]

    # ---- stitch body (+ bottom halo) rows into the scratch ref, once ------
    if use_halo:
        x_scr[pl.ds(0, TH), :, :] = xb_ref[0, :, :, :]
        x_scr[pl.ds(TH, 2 * p), :, :] = xh_ref[0, :, :, :]
    else:
        x_scr[...] = xb_ref[0, :, :, :]

    # ---- f32 accumulator initialised with the folded bias -----------------
    acc = jnp.broadcast_to(b_ref[...].astype(jnp.float32), (TH * W8, O))

    # ---- one 2-D MXU matmul per folded tap (K*K total) --------------------
    # Windowed ref loads (no value concat kept live); the (TH, W8, C) ->
    # (TH*W8, C) collapse is relayout-free because W8 is sublane-aligned.
    for kh in range(K):
        for kw in range(K):
            patch = x_scr[pl.ds(kh, TH), pl.ds(kw, W8), :]      # (TH, W8, C)
            acc = acc + jnp.dot(patch.reshape(TH * W8, C), w_ref[kh, kw],
                                preferred_element_type=jnp.float32)

    out_ref[...] = acc.reshape(1, TH, W8, O).astype(out_ref.dtype)
    # TODO(synk): when O is small a lane-folded (1, TH, W8*O) or NCHW output
    # block would make the store lane-dense, but it needs a lane-merging
    # relayout/reshape in-kernel; kept NHWC blocks here for robust lowering.


# --------------------------------------------------------------------------
# VMEM budget / tile selection
# --------------------------------------------------------------------------
def _vmem_budget_and_limit():
    """Per-step tile budget and vmem_limit_bytes, scaled to the chip."""
    try:
        cap = int(pltpu.get_tpu_info().vmem_capacity_bytes)
    except Exception:
        cap = 64 * 1024 * 1024
    if cap >= 120 * 1024 * 1024:          # v5e / v6e: 128 MiB physical VMEM
        limit = 96 * 1024 * 1024
    else:                                  # v7x: 64 MiB VMEM per TensorCore
        limit = 48 * 1024 * 1024
    return (2 * limit) // 3, limit         # leave headroom for compiler scratch


def _choose_row_tile(*, H, N, Wp8, W8, C, O, K, p, sub,
                     x_bytes, w_bytes, out_bytes, budget):
    """Pick the output-row tile TH for tiled mode, or None -> whole-image mode.

    Constraints: TH | H and (2p) | TH (so the halo block offset is a block
    index).  Preference: even total grid (v7x has 2 TensorCores), then the
    largest tile whose per-step VMEM footprint fits the budget.
    """
    if p > 0 and H % (2 * p) != 0:
        return None                                   # whole-image fallback
    step = max(2 * p, 1)
    cands = [th for th in range(step, H, step) if H % th == 0]
    cands.append(H)

    c_pad = _round_up(C, 128)
    o_pad = _round_up(O, 128)
    w_row = _round_up(Wp8, sub)
    halo = max(2 * p, 1)

    def vmem_per_step(th):
        body = 2 * th * w_row * c_pad * x_bytes            # double-buffered body
        hal = 2 * halo * w_row * c_pad * x_bytes           # double-buffered halo
        scr = (th + 2 * p) * w_row * c_pad * x_bytes       # stitched scratch
        wgt = 2 * K * K * _round_up(C, sub) * o_pad * w_bytes
        outb = 2 * th * W8 * o_pad * out_bytes             # double-buffered out
        accb = th * W8 * o_pad * 4                         # f32 accumulator
        patch = th * W8 * c_pad * x_bytes                  # live per-tap window
        return body + hal + scr + wgt + outb + accb + patch

    fitting = [th for th in cands if vmem_per_step(th) <= budget]
    if not fitting:
        fitting = [min(cands)]
    return max(fitting, key=lambda th: (((N * (H // th)) % 2 == 0), th))


# --------------------------------------------------------------------------
# Public wrapper
# --------------------------------------------------------------------------
def faconv_pallas(x_nchw, params, kernel_size, padding):
    """FAConv forward (non-deploy branch). x_nchw: (N, C, H, W) -> (N, O, H, W)."""
    assert kernel_size % 2 == 1, "FAConv kernel_size must be odd"
    assert padding == kernel_size // 2, (
        "FAConv is only shape-consistent for padding == kernel_size // 2")
    w_sq, b_sq, w_pw, b_pw, w_ver, b_ver, w_hor, b_hor = params
    N, C, H, W = x_nchw.shape
    O = w_sq.shape[-1]
    K, p = kernel_size, padding

    # --- fold the four branches into one KxK weight + one bias (host) ------
    w_fold = jnp.asarray(w_sq, jnp.float32)                  # (K, K, C, O)
    w_fold = w_fold.at[p, p].add(w_pw[0, 0].astype(jnp.float32))
    w_fold = w_fold.at[:, p].add(w_ver[:, 0].astype(jnp.float32))
    w_fold = w_fold.at[p, :].add(w_hor[0, :].astype(jnp.float32))
    bias_total = (b_sq + b_pw + b_ver + b_hor).reshape(1, O).astype(jnp.float32)

    x_dtype = x_nchw.dtype
    if x_dtype == jnp.bfloat16:
        # bf16 activations: keep the weight bf16 too (MXU bf16 path; the
        # accumulator and preferred_element_type stay f32).
        w_fold = w_fold.astype(jnp.bfloat16)

    itemsize = int(jnp.dtype(x_dtype).itemsize)
    sub = {4: 8, 2: 16, 1: 32}.get(itemsize, 8)

    # Pad the output width to the sublane granule so the in-kernel collapse
    # (TH, W8, C) -> (TH*W8, C) is relayout-free; extra columns are cropped.
    W8 = _round_up(W, sub)
    Hp, Wp8 = H + 2 * p, W8 + 2 * p

    # --- pad once on the host (NCHW -> NHWC) --------------------------------
    # TODO(synk): the transpose+pad are extra HBM passes over x; they could be
    # removed by masking edge taps in-kernel on boundary row tiles.
    x = jnp.transpose(x_nchw, (0, 2, 3, 1))
    x_pad = jnp.pad(x, ((0, 0), (p, p), (p, p + (W8 - W)), (0, 0)))

    budget, vmem_limit = _vmem_budget_and_limit()
    w_bytes = int(jnp.dtype(w_fold.dtype).itemsize)
    TH = _choose_row_tile(H=H, N=N, Wp8=Wp8, W8=W8, C=C, O=O, K=K, p=p,
                          sub=sub, x_bytes=itemsize, w_bytes=w_bytes,
                          out_bytes=itemsize, budget=budget)

    if TH is not None:                              # row-tiled mode
        use_halo = p > 0
        body_rows, grid_t = TH, H // TH
        body_idx = lambda n, t: (n, t, 0, 0)
        if use_halo:
            halo_stride = TH // (2 * p)             # integer: (2p) | TH
            halo_idx = lambda n, t: (n, (t + 1) * halo_stride, 0, 0)
    else:                                           # whole-(padded)-image mode
        use_halo = False
        TH, body_rows, grid_t = H, Hp, 1
        body_idx = lambda n, t: (n, 0, 0, 0)

    in_arrays = [x_pad]
    in_specs = [pl.BlockSpec((1, body_rows, Wp8, C), body_idx)]
    if use_halo:
        in_arrays.append(x_pad)
        in_specs.append(pl.BlockSpec((1, 2 * p, Wp8, C), halo_idx))
    in_arrays += [w_fold, bias_total]
    in_specs += [pl.BlockSpec((K, K, C, O), lambda n, t: (0, 0, 0, 0)),
                 pl.BlockSpec((1, O), lambda n, t: (0, 0))]

    kernel = functools.partial(_faconv_kernel, K=K, p=p, TH=TH, W8=W8, O=O,
                               use_halo=use_halo)

    out_pad = pl.pallas_call(
        kernel,
        out_shape=jax.ShapeDtypeStruct((N, H, W8, O), x_dtype),
        grid_spec=pltpu.PrefetchScalarGridSpec(
            num_scalar_prefetch=0,
            grid=(N, grid_t),
            in_specs=in_specs,
            out_specs=pl.BlockSpec((1, TH, W8, O), lambda n, t: (n, t, 0, 0)),
            scratch_shapes=[pltpu.VMEM((TH + 2 * p, Wp8, C), x_dtype)],
        ),
        compiler_params=pltpu.CompilerParams(
            dimension_semantics=("parallel", "parallel"),
            vmem_limit_bytes=vmem_limit),
    )(*in_arrays)

    out = out_pad[:, :, :W, :]                      # crop the width padding
    return jnp.transpose(out, (0, 3, 1, 2))         # NHWC -> NCHW


# --------------------------------------------------------------------------
# Plain-JAX reference matching the PyTorch forward (non-deploy branch)
# --------------------------------------------------------------------------
def faconv_ref(x_nchw, params, kernel_size, padding):
    w_sq, b_sq, w_pw, b_pw, w_ver, b_ver, w_hor, b_hor = params
    x = jnp.transpose(x_nchw, (0, 2, 3, 1))
    dn = ('NHWC', 'HWIO', 'NHWC')
    p, k = padding, kernel_size
    q = p - k // 2   # == 0 in the supported configuration (crop == 0)
    sq = lax.conv_general_dilated(x, w_sq, (1, 1), ((p, p), (p, p)),
                                  dimension_numbers=dn) + b_sq
    pw = lax.conv_general_dilated(x, w_pw, (1, 1), ((0, 0), (0, 0)),
                                  dimension_numbers=dn) + b_pw
    ver = lax.conv_general_dilated(x, w_ver, (1, 1), ((p, p), (q, q)),
                                   dimension_numbers=dn) + b_ver
    hor = lax.conv_general_dilated(x, w_hor, (1, 1), ((q, q), (p, p)),
                                   dimension_numbers=dn) + b_hor
    out = sq + pw + ver + hor
    return jnp.transpose(out, (0, 3, 1, 2))


# --------------------------------------------------------------------------
# Test
# --------------------------------------------------------------------------
def _make_params(key, C_in, C_out, K):
    keys = jax.random.split(key, 8)
    s = 0.1
    w_sq = s * jax.random.normal(keys[0], (K, K, C_in, C_out), jnp.float32)
    b_sq = s * jax.random.normal(keys[1], (C_out,), jnp.float32)
    w_pw = s * jax.random.normal(keys[2], (1, 1, C_in, C_out), jnp.float32)
    b_pw = s * jax.random.normal(keys[3], (C_out,), jnp.float32)
    w_ver = s * jax.random.normal(keys[4], (K, 1, C_in, C_out), jnp.float32)
    b_ver = s * jax.random.normal(keys[5], (C_out,), jnp.float32)
    w_hor = s * jax.random.normal(keys[6], (1, K, C_in, C_out), jnp.float32)
    b_hor = s * jax.random.normal(keys[7], (C_out,), jnp.float32)
    return (w_sq, b_sq, w_pw, b_pw, w_ver, b_ver, w_hor, b_hor)


if __name__ == "__main__":
    root = jax.random.PRNGKey(0)

    # Case 1: canonical small config (W already sublane-aligned).
    k0, k1, k2, k3 = jax.random.split(root, 4)
    N, C_in, H, W = 2, 4, 16, 16
    C_out, K, pad = 8, 3, 1
    x = jax.random.normal(k0, (N, C_in, H, W), jnp.float32)
    params = _make_params(k1, C_in, C_out, K)
    out = jax.block_until_ready(faconv_pallas(x, params, K, pad))
    ref = jax.block_until_ready(faconv_ref(x, params, K, pad))
    np.testing.assert_allclose(np.asarray(out), np.asarray(ref),
                               rtol=1e-4, atol=1e-4)

    # Case 2: non-aligned spatial / channel sizes (width pad + crop path,
    # odd C/O, halo-tiled rows).
    N2, C2_in, H2, W2, C2_out = 1, 3, 12, 12, 5
    x2 = jax.random.normal(k2, (N2, C2_in, H2, W2), jnp.float32)
    params2 = _make_params(k3, C2_in, C2_out, K)
    out2 = jax.block_until_ready(faconv_pallas(x2, params2, K, pad))
    ref2 = jax.block_until_ready(faconv_ref(x2, params2, K, pad))
    np.testing.assert_allclose(np.asarray(out2), np.asarray(ref2),
                               rtol=1e-4, atol=1e-4)

    print("KERNEL_OK")
</pallas_src>

<mosaic_0001>
module attributes {stable_mosaic.version = 11 : i64} {
  func.func @_faconv_kernel(%arg0: i32, %arg1: i32, %arg2: memref<1x16x18x4xf32, #tpu.memory_space<vmem>>, %arg3: memref<1x2x18x4xf32, #tpu.memory_space<vmem>>, %arg4: memref<3x3x4x8xf32, #tpu.memory_space<vmem>>, %arg5: memref<1x8xf32, #tpu.memory_space<vmem>>, %arg6: memref<1x16x16x8xf32, #tpu.memory_space<vmem>>, %arg7: memref<18x18x4xf32, #tpu.memory_space<vmem>>) attributes {dimension_semantics = [#tpu.dimension_semantics<parallel>, #tpu.dimension_semantics<parallel>], iteration_bounds = array<i64: 2, 1>, scalar_prefetch = 0 : i64, scratch_operands = 1 : i64, tpu.core_type = #tpu.core_type<tc>, window_params = [{transform_indices = @transform_0, window_bounds = array<i64: 1, 16, 18, 4>}, {transform_indices = @transform_1, window_bounds = array<i64: 1, 2, 18, 4>}, {pipeline_mode = #tpu.pipeline_mode<synchronous>, transform_indices = @transform_2, window_bounds = array<i64: 3, 3, 4, 8>}, {pipeline_mode = #tpu.pipeline_mode<synchronous>, transform_indices = @transform_3, window_bounds = array<i64: 1, 8>}, {transform_indices = @transform_4, window_bounds = array<i64: 1, 16, 16, 8>}]} {
    %c0 = arith.constant 0 : index
    %c0_0 = arith.constant 0 : index
    %c0_1 = arith.constant 0 : index
    %c0_2 = arith.constant 0 : index
    %0 = vector.load %arg2[%c0, %c0_0, %c0_1, %c0_2] : memref<1x16x18x4xf32, #tpu.memory_space<vmem>>, vector<1x16x18x4xf32>
    %1 = vector.shape_cast %0 : vector<1x16x18x4xf32> to vector<16x18x4xf32>
    %c0_3 = arith.constant 0 : index
    %c0_4 = arith.constant 0 : index
    %c0_5 = arith.constant 0 : index
    %2 = vector.load %arg7[%c0_3, %c0_4, %c0_5] : memref<18x18x4xf32, #tpu.memory_space<vmem>>, vector<16x18x4xf32>
    tpu.vector_store %arg7[%c0_3, %c0_4, %c0_5], %1 {strides = array<i32>} : memref<18x18x4xf32, #tpu.memory_space<vmem>>, vector<16x18x4xf32>,
    %c0_6 = arith.constant 0 : index
    %c0_7 = arith.constant 0 : index
    %c0_8 = arith.constant 0 : index
    %c0_9 = arith.constant 0 : index
    %3 = vector.load %arg3[%c0_6, %c0_7, %c0_8, %c0_9] : memref<1x2x18x4xf32, #tpu.memory_space<vmem>>, vector<1x2x18x4xf32>
    %4 = vector.shape_cast %3 : vector<1x2x18x4xf32> to vector<2x18x4xf32>
    %c16 = arith.constant 16 : index
    %c0_10 = arith.constant 0 : index
    %c0_11 = arith.constant 0 : index
    %5 = vector.load %arg7[%c16, %c0_10, %c0_11] : memref<18x18x4xf32, #tpu.memory_space<vmem>>, vector<2x18x4xf32>
    tpu.vector_store %arg7[%c16, %c0_10, %c0_11], %4 {strides = array<i32>} : memref<18x18x4xf32, #tpu.memory_space<vmem>>, vector<2x18x4xf32>,
    %c0_12 = arith.constant 0 : index
    %c0_13 = arith.constant 0 : index
    %6 = vector.load %arg5[%c0_12, %c0_13] : memref<1x8xf32, #tpu.memory_space<vmem>>, vector<1x8xf32>
    %7 = vector.shape_cast %6 : vector<1x8xf32> to vector<1x8xf32>
    %8 = vector.broadcast %7 : vector<1x8xf32> to vector<256x8xf32>
    %c0_14 = arith.constant 0 : index
    %c0_15 = arith.constant 0 : index
    %c0_16 = arith.constant 0 : index
    %9 = vector.load %arg7[%c0_14, %c0_15, %c0_16] : memref<18x18x4xf32, #tpu.memory_space<vmem>>, vector<16x16x4xf32>
    %10 = vector.shape_cast %9 : vector<16x16x4xf32> to vector<256x4xf32>
    %c0_17 = arith.constant 0 : index
    %c0_18 = arith.constant 0 : index
    %c0_19 = arith.constant 0 : index
    %c0_20 = arith.constant 0 : index
    %11 = vector.load %arg4[%c0_17, %c0_18, %c0_19, %c0_20] : memref<3x3x4x8xf32, #tpu.memory_space<vmem>>, vector<1x1x4x8xf32>
    %12 = vector.shape_cast %11 : vector<1x1x4x8xf32> to vector<4x8xf32>
    %cst = arith.constant dense<0.000000e+00> : vector<256x8xf32>
    %13 = tpu.matmul %10, %12, %cst {dimension_numbers = #tpu.dot_dimension_numbers<[1], [0], [0], [1], [0, 0, 1, 1], [], []>} : vector<256x4xf32>, vector<4x8xf32>, vector<256x8xf32> -> vector<256x8xf32>
    %14 = arith.addf %8, %13 : vector<256x8xf32>
    %c0_21 = arith.constant 0 : index
    %c1 = arith.constant 1 : index
    %c0_22 = arith.constant 0 : index
    %15 = vector.load %arg7[%c0_21, %c1, %c0_22] : memref<18x18x4xf32, #tpu.memory_space<vmem>>, vector<16x16x4xf32>
    %16 = vector.shape_cast %15 : vector<16x16x4xf32> to vector<256x4xf32>
    %c0_23 = arith.constant 0 : index
    %c1_24 = arith.constant 1 : index
    %c0_25 = arith.constant 0 : index
    %c0_26 = arith.constant 0 : index
    %17 = vector.load %arg4[%c0_23, %c1_24, %c0_25, %c0_26] : memref<3x3x4x8xf32, #tpu.memory_space<vmem>>, vector<1x1x4x8xf32>
    %18 = vector.shape_cast %17 : vector<1x1x4x8xf32> to vector<4x8xf32>
    %cst_27 = arith.constant dense<0.000000e+00> : vector<256x8xf32>
    %19 = tpu.matmul %16, %18, %cst_27 {dimension_numbers = #tpu.dot_dimension_numbers<[1], [0], [0], [1], [0, 0, 1, 1], [], []>} : vector<256x4xf32>, vector<4x8xf32>, vector<256x8xf32> -> vector<256x8xf32>
    %20 = arith.addf %14, %19 : vector<256x8xf32>
    %c0_28 = arith.constant 0 : index
    %c2 = arith.constant 2 : index
    %c0_29 = arith.constant 0 : index
    %21 = vector.load %arg7[%c0_28, %c2, %c0_29] : memref<18x18x4xf32, #tpu.memory_space<vmem>>, vector<16x16x4xf32>
    %22 = vector.shape_cast %21 : vector<16x16x4xf32> to vector<256x4xf32>
    %c0_30 = arith.constant 0 : index
    %c2_31 = arith.constant 2 : index
    %c0_32 = arith.constant 0 : index
    %c0_33 = arith.constant 0 : index
    %23 = vector.load %arg4[%c0_30, %c2_31, %c0_32, %c0_33] : memref<3x3x4x8xf32, #tpu.memory_space<vmem>>, vector<1x1x4x8xf32>
    %24 = vector.shape_cast %23 : vector<1x1x4x8xf32> to vector<4x8xf32>
    %cst_34 = arith.constant dense<0.000000e+00> : vector<256x8xf32>
    %25 = tpu.matmul %22, %24, %cst_34 {dimension_numbers = #tpu.dot_dimension_numbers<[1], [0], [0], [1], [0, 0, 1, 1], [], []>} : vector<256x4xf32>, vector<4x8xf32>, vector<256x8xf32> -> vector<256x8xf32>
    %26 = arith.addf %20, %25 : vector<256x8xf32>
    %c1_35 = arith.constant 1 : index
    %c0_36 = arith.constant 0 : index
    %c0_37 = arith.constant 0 : index
    %27 = vector.load %arg7[%c1_35, %c0_36, %c0_37] : memref<18x18x4xf32, #tpu.memory_space<vmem>>, vector<16x16x4xf32>
    %28 = vector.shape_cast %27 : vector<16x16x4xf32> to vector<256x4xf32>
    %c1_38 = arith.constant 1 : index
    %c0_39 = arith.constant 0 : index
    %c0_40 = arith.constant 0 : index
    %c0_41 = arith.constant 0 : index
    %29 = vector.load %arg4[%c1_38, %c0_39, %c0_40, %c0_41] : memref<3x3x4x8xf32, #tpu.memory_space<vmem>>, vector<1x1x4x8xf32>
    %30 = vector.shape_cast %29 : vector<1x1x4x8xf32> to vector<4x8xf32>
    %cst_42 = arith.constant dense<0.000000e+00> : vector<256x8xf32>
    %31 = tpu.matmul %28, %30, %cst_42 {dimension_numbers = #tpu.dot_dimension_numbers<[1], [0], [0], [1], [0, 0, 1, 1], [], []>} : vector<256x4xf32>, vector<4x8xf32>, vector<256x8xf32> -> vector<256x8xf32>
    %32 = arith.addf %26, %31 : vector<256x8xf32>
    %c1_43 = arith.constant 1 : index
    %c1_44 = arith.constant 1 : index
    %c0_45 = arith.constant 0 : index
    %33 = vector.load %arg7[%c1_43, %c1_44, %c0_45] : memref<18x18x4xf32, #tpu.memory_space<vmem>>, vector<16x16x4xf32>
    %34 = vector.shape_cast %33 : vector<16x16x4xf32> to vector<256x4xf32>
    %c1_46 = arith.constant 1 : index
    %c1_47 = arith.constant 1 : index
    %c0_48 = arith.constant 0 : index
    %c0_49 = arith.constant 0 : index
    %35 = vector.load %arg4[%c1_46, %c1_47, %c0_48, %c0_49] : memref<3x3x4x8xf32, #tpu.memory_space<vmem>>, vector<1x1x4x8xf32>
    %36 = vector.shape_cast %35 : vector<1x1x4x8xf32> to vector<4x8xf32>
    %cst_50 = arith.constant dense<0.000000e+00> : vector<256x8xf32>
    %37 = tpu.matmul %34, %36, %cst_50 {dimension_numbers = #tpu.dot_dimension_numbers<[1], [0], [0], [1], [0, 0, 1, 1], [], []>} : vector<256x4xf32>, vector<4x8xf32>, vector<256x8xf32> -> vector<256x8xf32>
    %38 = arith.addf %32, %37 : vector<256x8xf32>
    %c1_51 = arith.constant 1 : index
    %c2_52 = arith.constant 2 : index
    %c0_53 = arith.constant 0 : index
    %39 = vector.load %arg7[%c1_51, %c2_52, %c0_53] : memref<18x18x4xf32, #tpu.memory_space<vmem>>, vector<16x16x4xf32>
    %40 = vector.shape_cast %39 : vector<16x16x4xf32> to vector<256x4xf32>
    %c1_54 = arith.constant 1 : index
    %c2_55 = arith.constant 2 : index
    %c0_56 = arith.constant 0 : index
    %c0_57 = arith.constant 0 : index
    %41 = vector.load %arg4[%c1_54, %c2_55, %c0_56, %c0_57] : memref<3x3x4x8xf32, #tpu.memory_space<vmem>>, vector<1x1x4x8xf32>
    %42 = vector.shape_cast %41 : vector<1x1x4x8xf32> to vector<4x8xf32>
    %cst_58 = arith.constant dense<0.000000e+00> : vector<256x8xf32>
    %43 = tpu.matmul %40, %42, %cst_58 {dimension_numbers = #tpu.dot_dimension_numbers<[1], [0], [0], [1], [0, 0, 1, 1], [], []>} : vector<256x4xf32>, vector<4x8xf32>, vector<256x8xf32> -> vector<256x8xf32>
    %44 = arith.addf %38, %43 : vector<256x8xf32>
    %c2_59 = arith.constant 2 : index
    %c0_60 = arith.constant 0 : index
    %c0_61 = arith.constant 0 : index
    %45 = vector.load %arg7[%c2_59, %c0_60, %c0_61] : memref<18x18x4xf32, #tpu.memory_space<vmem>>, vector<16x16x4xf32>
    %46 = vector.shape_cast %45 : vector<16x16x4xf32> to vector<256x4xf32>
    %c2_62 = arith.constant 2 : index
    %c0_63 = arith.constant 0 : index
    %c0_64 = arith.constant 0 : index
    %c0_65 = arith.constant 0 : index
    %47 = vector.load %arg4[%c2_62, %c0_63, %c0_64, %c0_65] : memref<3x3x4x8xf32, #tpu.memory_space<vmem>>, vector<1x1x4x8xf32>
    %48 = vector.shape_cast %47 : vector<1x1x4x8xf32> to vector<4x8xf32>
    %cst_66 = arith.constant dense<0.000000e+00> : vector<256x8xf32>
    %49 = tpu.matmul %46, %48, %cst_66 {dimension_numbers = #tpu.dot_dimension_numbers<[1], [0], [0], [1], [0, 0, 1, 1], [], []>} : vector<256x4xf32>, vector<4x8xf32>, vector<256x8xf32> -> vector<256x8xf32>
    %50 = arith.addf %44, %49 : vector<256x8xf32>
    %c2_67 = arith.constant 2 : index
    %c1_68 = arith.constant 1 : index
    %c0_69 = arith.constant 0 : index
    %51 = vector.load %arg7[%c2_67, %c1_68, %c0_69] : memref<18x18x4xf32, #tpu.memory_space<vmem>>, vector<16x16x4xf32>
    %52 = vector.shape_cast %51 : vector<16x16x4xf32> to vector<256x4xf32>
    %c2_70 = arith.constant 2 : index
    %c1_71 = arith.constant 1 : index
    %c0_72 = arith.constant 0 : index
    %c0_73 = arith.constant 0 : index
    %53 = vector.load %arg4[%c2_70, %c1_71, %c0_72, %c0_73] : memref<3x3x4x8xf32, #tpu.memory_space<vmem>>, vector<1x1x4x8xf32>
    %54 = vector.shape_cast %53 : vector<1x1x4x8xf32> to vector<4x8xf32>
    %cst_74 = arith.constant dense<0.000000e+00> : vector<256x8xf32>
    %55 = tpu.matmul %52, %54, %cst_74 {dimension_numbers = #tpu.dot_dimension_numbers<[1], [0], [0], [1], [0, 0, 1, 1], [], []>} : vector<256x4xf32>, vector<4x8xf32>, vector<256x8xf32> -> vector<256x8xf32>
    %56 = arith.addf %50, %55 : vector<256x8xf32>
    %c2_75 = arith.constant 2 : index
    %c2_76 = arith.constant 2 : index
    %c0_77 = arith.constant 0 : index
    %57 = vector.load %arg7[%c2_75, %c2_76, %c0_77] : memref<18x18x4xf32, #tpu.memory_space<vmem>>, vector<16x16x4xf32>
    %58 = vector.shape_cast %57 : vector<16x16x4xf32> to vector<256x4xf32>
    %c2_78 = arith.constant 2 : index
    %c2_79 = arith.constant 2 : index
    %c0_80 = arith.constant 0 : index
    %c0_81 = arith.constant 0 : index
    %59 = vector.load %arg4[%c2_78, %c2_79, %c0_80, %c0_81] : memref<3x3x4x8xf32, #tpu.memory_space<vmem>>, vector<1x1x4x8xf32>
    %60 = vector.shape_cast %59 : vector<1x1x4x8xf32> to vector<4x8xf32>
    %cst_82 = arith.constant dense<0.000000e+00> : vector<256x8xf32>
    %61 = tpu.matmul %58, %60, %cst_82 {dimension_numbers = #tpu.dot_dimension_numbers<[1], [0], [0], [1], [0, 0, 1, 1], [], []>} : vector<256x4xf32>, vector<4x8xf32>, vector<256x8xf32> -> vector<256x8xf32>
    %62 = arith.addf %56, %61 : vector<256x8xf32>
    %63 = vector.shape_cast %62 : vector<256x8xf32> to vector<1x16x16x8xf32>
    %c0_83 = arith.constant 0 : index
    %c0_84 = arith.constant 0 : index
    %c0_85 = arith.constant 0 : index
    %c0_86 = arith.constant 0 : index
    %64 = vector.load %arg6[%c0_83, %c0_84, %c0_85, %c0_86] : memref<1x16x16x8xf32, #tpu.memory_space<vmem>>, vector<1x16x16x8xf32>
    tpu.vector_store %arg6[%c0_83, %c0_84, %c0_85, %c0_86], %63 {strides = array<i32>} : memref<1x16x16x8xf32, #tpu.memory_space<vmem>>, vector<1x16x16x8xf32>,
    return
  }
  func.func @transform_0(%arg0: i32, %arg1: i32) -> (i32, i32, i32, i32) {
    %c0_i32 = arith.constant 0 : i32
    %c0_i32_0 = arith.constant 0 : i32
    %c0_i32_1 = arith.constant 0 : i32
    return %arg0, %arg1, %c0_i32, %c0_i32_0 : i32, i32, i32, i32
  }
  func.func @transform_1(%arg0: i32, %arg1: i32) -> (i32, i32, i32, i32) {
    %c1_i32 = arith.constant 1 : i32
    %0 = arith.addi %arg1, %c1_i32 : i32
    %c8_i32 = arith.constant 8 : i32
    %1 = arith.muli %0, %c8_i32 : i32
    %c0_i32 = arith.constant 0 : i32
    %c0_i32_0 = arith.constant 0 : i32
    %c0_i32_1 = arith.constant 0 : i32
    return %arg0, %1, %c0_i32, %c0_i32_0 : i32, i32, i32, i32
  }
  func.func @transform_2(%arg0: i32, %arg1: i32) -> (i32, i32, i32, i32) {
    %c0_i32 = arith.constant 0 : i32
    %c0_i32_0 = arith.constant 0 : i32
    %c0_i32_1 = arith.constant 0 : i32
    %c0_i32_2 = arith.constant 0 : i32
    %c0_i32_3 = arith.constant 0 : i32
    return %c0_i32, %c0_i32_0, %c0_i32_1, %c0_i32_2 : i32, i32, i32, i32
  }
  func.func @transform_3(%arg0: i32, %arg1: i32) -> (i32, i32) {
    %c0_i32 = arith.constant 0 : i32
    %c0_i32_0 = arith.constant 0 : i32
    %c0_i32_1 = arith.constant 0 : i32
    return %c0_i32, %c0_i32_0 : i32, i32
  }
  func.func @transform_4(%arg0: i32, %arg1: i32) -> (i32, i32, i32, i32) {
    %c0_i32 = arith.constant 0 : i32
    %c0_i32_0 = arith.constant 0 : i32
    %c0_i32_1 = arith.constant 0 : i32
    return %arg0, %arg1, %c0_i32, %c0_i32_0 : i32, i32, i32, i32
  }
}

</mosaic_0001>

<llo_original>
// kernel: tpu_custom_call.1
$region0: #{tpu_custom_call.1}
  #allocation0 [shape = 'u32[]', space=smem, size = 0x4, offset = 0x4, fixed_abs, tag = 'smem constant byte address 0x4 - core index']
  #allocation1 [shape = 'u32[144,128]{1,0:T(1,128)}', space=vmem, size = 0x12000, scoped, tag = 'internal scratch']
  #allocation2 [shape = 'f32[18,18,4]{2,1,0:T(8,128)}', space=vmem, size = 0x36000, scoped, tag = 'scratch operand']
  %s0 = inlined_call_operand.vmem [shape: f32[2,18,18,4], index: 0, kind: input, shape index: {}]
  %s1 = inlined_call_operand.vmem [shape: f32[2,18,18,4], index: 1, kind: input, shape index: {}]
  %s2 = inlined_call_operand.vmem [shape: f32[3,3,4,8], index: 2, kind: input, shape index: {}]
  %s3 = inlined_call_operand.vmem [shape: f32[1,8], index: 3, kind: input, shape index: {}]
  %s4 = inlined_call_operand.vmem [shape: f32[2,16,16,8], index: 4, kind: output, shape index: {}]
  %s5 = sld [smem:[#allocation0]]
  $region49: #{tpu_custom_call.1} parent=0
    _
  %s7 = ssub.s32 1, %s5
  %s8 = scalar_select 0, %s7, %s5
  loop: start=0, step=1, limit=4
  $region2: #{tpu_custom_call.1} parent=0 // loop_pre_header
    _
  $region3: #{tpu_custom_call.1} parent=0 // loop_header
    %s10 = sphi 0, %s14
    %p11 = scmp.ge.s32.totalorder %s10, 4
    %s17 = sphi 0, %s29
    %s18 = sphi 0, %s25
    %s19 = sphi 0, %s17
    %s20 = sphi 0, %s18
    %s21 = sphi 0, %s19
    %s22 = sphi 0, %s20
    %s34 = sphi 0, %s36
    %s37 = sphi 0, %s34
    %s38 = sphi 0, %s37
    %s54 = sphi 0, %s38
    %s66 = sphi 0, %s68
    %s69 = sphi 0, %s66
    %s70 = sphi 0, %s69
    %s86 = sphi 0, %s70
    %s90 = sphi 0, %s90
    %s92 = sphi 0, %s90
    %s93 = sphi 0, %s92
    %s107 = sphi 0, %s93
    %s111 = sphi 0, %s111
    %s113 = sphi 0, %s111
    %s114 = sphi 0, %s113
    %s128 = sphi 0, %s114
    %s136 = sphi 0, %s138
    %s139 = sphi 0, %s136
    %s140 = sphi 0, %s139
    %s156 = sphi 0, %s140
  $region4: #{tpu_custom_call.1} parent=0 // loop_header_branch
    %13 = sbr.rel (%p11) target = $region8
  $region5: #{tpu_custom_call.1} parent=0 // loop_body
    %s15 = ssub.s32 %s10, 1
    %s16 = ssub.s32 %s10, 2
    %s23 = sadd.s32 1, %s18
    %p24 = scmp.ge.s32.totalorder %s23, 1
    %s25 = scalar_select %p24, 0, %s23
    %s26 = sadd.s32 1, %s17
    %s27 = scalar_select %p24, %s26, %s17
    %p28 = scmp.ge.s32.totalorder %s27, 2
    %s29 = scalar_select %p28, 0, %s27
    %s30 = ssub.s32 %s17, %s29
    %s31 = ssub.s32 %s18, %s25
    %s32 = sor.u32 %s30, %s31
    %p33 = scmp.eq.s32.totalorder %s32, 0
    %s35 = sadd.s32 %s34, 1
    %s36 = scalar_select %p33, %s34, %s35
    %p39 = pneg %p33
    %p40 = scmp.eq.s32.totalorder %s10, 1
    %p41 = por %p39, %p40
    %p42 = scmp.ne.s32.totalorder %s34, %s37
    %p43 = scmp.eq.s32.totalorder %s10, 0
    %p44 = por %p42, %p43
    %p45 = scmp.ne.s32.totalorder %s34, %s37
    %p46 = scmp.eq.s32.totalorder %s15, 1
    %p47 = por %p45, %p46
    %p48 = scmp.ne.s32.totalorder %s37, %s38
    %p49 = scmp.eq.s32.totalorder %s15, 0
    %p50 = por %p48, %p49
    %p51 = scmp.ne.s32.totalorder %s37, %s38
    %p52 = scmp.eq.s32.totalorder %s16, 1
    %p53 = por %p51, %p52
    %p55 = scmp.ne.s32.totalorder %s38, %s54
    %p56 = scmp.eq.s32.totalorder %s16, 0
    %p57 = por %p55, %p56
    %s58 = sadd.s32 %s18, 1
    %s59 = smul.u32 %s58, 8
    %s60 = sadd.s32 %s25, 1
    %s61 = smul.u32 %s60, 8
    %s62 = ssub.s32 %s17, %s29
    %s63 = ssub.s32 %s59, %s61
    %s64 = sor.u32 %s62, %s63
    %p65 = scmp.eq.s32.totalorder %s64, 0
    %s67 = sadd.s32 %s66, 1
    %s68 = scalar_select %p65, %s66, %s67
    %p71 = pneg %p65
    %p72 = scmp.eq.s32.totalorder %s10, 1
    %p73 = por %p71, %p72
    %p74 = scmp.ne.s32.totalorder %s66, %s69
    %p75 = scmp.eq.s32.totalorder %s10, 0
    %p76 = por %p74, %p75
    %p77 = scmp.ne.s32.totalorder %s66, %s69
    %p78 = scmp.eq.s32.totalorder %s15, 1
    %p79 = por %p77, %p78
    %p80 = scmp.ne.s32.totalorder %s69, %s70
    %p81 = scmp.eq.s32.totalorder %s15, 0
    %p82 = por %p80, %p81
    %p83 = scmp.ne.s32.totalorder %s69, %s70
    %p84 = scmp.eq.s32.totalorder %s16, 1
    %p85 = por %p83, %p84
    %p87 = scmp.ne.s32.totalorder %s70, %s86
    %p88 = scmp.eq.s32.totalorder %s16, 0
    %p89 = por %p87, %p88
    %s91 = sadd.s32 %s90, 1
    %p94 = scmp.eq.s32.totalorder %s10, 1
    %p95 = scmp.ne.s32.totalorder %s90, %s92
    %p96 = scmp.eq.s32.totalorder %s10, 0
    %p97 = por %p95, %p96
    %p98 = scmp.ne.s32.totalorder %s90, %s92
    %p99 = scmp.eq.s32.totalorder %s15, 1
    %p100 = por %p98, %p99
    %p101 = scmp.ne.s32.totalorder %s92, %s93
    %p102 = scmp.eq.s32.totalorder %s15, 0
    %p103 = por %p101, %p102
    %p104 = scmp.ne.s32.totalorder %s92, %s93
    %p105 = scmp.eq.s32.totalorder %s16, 1
    %p106 = por %p104, %p105
    %p108 = scmp.ne.s32.totalorder %s93, %s107
    %p109 = scmp.eq.s32.totalorder %s16, 0
    %p110 = por %p108, %p109
    %s112 = sadd.s32 %s111, 1
    %p115 = scmp.eq.s32.totalorder %s10, 1
    %p116 = scmp.ne.s32.totalorder %s111, %s113
    %p117 = scmp.eq.s32.totalorder %s10, 0
    %p118 = por %p116, %p117
    %p119 = scmp.ne.s32.totalorder %s111, %s113
    %p120 = scmp.eq.s32.totalorder %s15, 1
    %p121 = por %p119, %p120
    %p122 = scmp.ne.s32.totalorder %s113, %s114
    %p123 = scmp.eq.s32.totalorder %s15, 0
    %p124 = por %p122, %p123
    %p125 = scmp.ne.s32.totalorder %s113, %s114
    %p126 = scmp.eq.s32.totalorder %s16, 1
    %p127 = por %p125, %p126
    %p129 = scmp.ne.s32.totalorder %s114, %s128
    %p130 = scmp.eq.s32.totalorder %s16, 0
    %p131 = por %p129, %p130
    %s132 = ssub.s32 %s17, %s29
    %s133 = ssub.s32 %s18, %s25
    %s134 = sor.u32 %s132, %s133
    %p135 = scmp.eq.s32.totalorder %s134, 0
    %s137 = sadd.s32 %s136, 1
    %s138 = scalar_select %p135, %s136, %s137
    %p141 = pneg %p135
    %p142 = scmp.eq.s32.totalorder %s10, 1
    %p143 = por %p141, %p142
    %p144 = scmp.ne.s32.totalorder %s136, %s139
    %p145 = scmp.eq.s32.totalorder %s10, 0
    %p146 = por %p144, %p145
    %p147 = scmp.ne.s32.totalorder %s136, %s139
    %p148 = scmp.eq.s32.totalorder %s15, 1
    %p149 = por %p147, %p148
    %p150 = scmp.ne.s32.totalorder %s139, %s140
    %p151 = scmp.eq.s32.totalorder %s15, 0
    %p152 = por %p150, %p151
    %p153 = scmp.ne.s32.totalorder %s139, %s140
    %p154 = scmp.eq.s32.totalorder %s16, 1
    %p155 = por %p153, %p154
    %p157 = scmp.ne.s32.totalorder %s140, %s156
    %p158 = scmp.eq.s32.totalorder %s16, 0
    %p159 = por %p157, %p158
    %p160 = scmp.le.s32.totalorder 1, %s10
    %p161 = scmp.lt.s32.totalorder %s10, 3
    %p162 = pnand %p160, %p161
    %p163 = pneg %p162
    // Predicated region
    $region9: #{tpu_custom_call.1} parent=5 // pred_check
      _
    $region10: #{tpu_custom_call.1} parent=5 // pred_check_branch
      %165 = sbr.rel (%p162) target = $region12
    $region11: #{tpu_custom_call.1} parent=5 // pred_region
      %s166 = ssub.s32 %s10, 1
      // Predicated region
      $region13: #{tpu_custom_call.1} parent=11 // pred_check
        %p167 = pneg %p103
      $region14: #{tpu_custom_call.1} parent=11 // pred_check_branch
        %169 = sbr.rel (%p167) target = $region16
      $region15: #{tpu_custom_call.1} parent=11 // pred_region
        _
      $region16: #{tpu_custom_call.1} parent=11 // pred_fallthru
        _
      // Predicated region
      $region17: #{tpu_custom_call.1} parent=11 // pred_check
        %p170 = pneg %p124
      $region18: #{tpu_custom_call.1} parent=11 // pred_check_branch
        %172 = sbr.rel (%p170) target = $region20
      $region19: #{tpu_custom_call.1} parent=11 // pred_region
        _
      $region20: #{tpu_custom_call.1} parent=11 // pred_fallthru
        _
    $region12: #{tpu_custom_call.1} parent=5 // pred_fallthru
      _
    %p173 = scmp.lt.s32.totalorder %s10, 2
    // Predicated region
    $region21: #{tpu_custom_call.1} parent=5 // pred_check
      %p174 = pneg %p173
    $region22: #{tpu_custom_call.1} parent=5 // pred_check_branch
      %176 = sbr.rel (%p174) target = $region24
    $region23: #{tpu_custom_call.1} parent=5 // pred_region
      // Predicated region
      $region25: #{tpu_custom_call.1} parent=23 // pred_check
        %p177 = pneg %p44
      $region26: #{tpu_custom_call.1} parent=23 // pred_check_branch
        %179 = sbr.rel (%p177) target = $region28
      $region27: #{tpu_custom_call.1} parent=23 // pred_region
        %s180 = smul.u32 16, %s18
        %s181 = ssub.s32 18, %s180
        %p182 = scmp.lt.s32.totalorder %s181, 16
        %s183 = scalar_select %p182, %s181, 16
        %s184 = smul.u32 128, %s183
        %s185 = smul.u32 %s184, 3
        %p186 = scmp.lt.s32.totalorder %s17, 1
        %s187 = scalar_select %p186, %s17, 1
        %p188 = scmp.lt.s32.totalorder %s180, 17
        %s189 = scalar_select %p188, %s180, 17
        %s190 = smul.addr %s189, 3
        %s191 = smul.addr %s187, 54
        %s192 = sadd.s32 %s190, %s191
        %s193 = smul.addr %s192, 8
        %s194 = scalar_lea.vmem %s0, %s193
        %s195 = smul.u32 16, %s18
        %s196 = ssub.s32 18, %s195
        %p197 = scmp.lt.s32.totalorder %s196, 16
        %s198 = scalar_select %p197, %s196, 16
        %s199 = smul.u32 128, %s198
        %s200 = smul.u32 %s199, 3
      $region28: #{tpu_custom_call.1} parent=23 // pred_fallthru
        _
      // Predicated region
      $region29: #{tpu_custom_call.1} parent=23 // pred_check
        %p201 = pneg %p76
      $region30: #{tpu_custom_call.1} parent=23 // pred_check_branch
        %203 = sbr.rel (%p201) target = $region32
      $region31: #{tpu_custom_call.1} parent=23 // pred_region
        %s204 = sadd.s32 %s18, 1
        %s205 = smul.u32 %s204, 8
        %s206 = smul.u32 2, %s205
        %p207 = scmp.lt.s32.totalorder %s17, 1
        %s208 = scalar_select %p207, %s17, 1
        %p209 = scmp.lt.s32.totalorder %s206, 17
        %s210 = scalar_select %p209, %s206, 17
        %s211 = smul.addr %s210, 3
        %s212 = smul.addr %s208, 54
        %s213 = sadd.s32 %s211, %s212
        %s214 = smul.addr %s213, 8
        %s215 = scalar_lea.vmem %s1, %s214
        %s216 = sadd.s32 %s18, 1
        %s217 = smul.u32 %s216, 8
        %s218 = smul.u32 2, %s217
      $region32: #{tpu_custom_call.1} parent=23 // pred_fallthru
        _
    $region24: #{tpu_custom_call.1} parent=5 // pred_fallthru
      _
    %p219 = scmp.le.s32.totalorder 1, %s10
    %p220 = scmp.lt.s32.totalorder %s10, 3
    %p221 = pnand %p219, %p220
    %p222 = pneg %p221
    // Predicated region
    $region33: #{tpu_custom_call.1} parent=5 // pred_check
      _
    $region34: #{tpu_custom_call.1} parent=5 // pred_check_branch
      %224 = sbr.rel (%p221) target = $region36
    $region35: #{tpu_custom_call.1} parent=5 // pred_region
      %s225 = ssub.s32 %s10, 1
      %s226 = smul.u32 16, %s20
      %s227 = ssub.s32 18, %s226
      %p228 = scmp.lt.s32.totalorder %s227, 16
      %s229 = scalar_select %p228, %s227, 16
      %s230 = smul.u32 128, %s229
      %s231 = smul.u32 %s230, 3
      %p232 = scmp.lt.s32.totalorder %s19, 1
      %s233 = scalar_select %p232, %s19, 1
      %p234 = scmp.lt.s32.totalorder %s226, 17
      %s235 = scalar_select %p234, %s226, 17
      %s236 = smul.addr %s235, 3
      %s237 = smul.addr %s233, 54
      %s238 = sadd.s32 %s236, %s237
      %s239 = smul.addr %s238, 8
      %s240 = scalar_lea.vmem %s0, %s239
      %p241 = pneg %p50
      %p242 = pneg %p47
      %s243 = sadd.s32 %s20, 1
      %s244 = smul.u32 %s243, 8
      %s245 = smul.u32 2, %s244
      %p246 = scmp.lt.s32.totalorder %s19, 1
      %s247 = scalar_select %p246, %s19, 1
      %p248 = scmp.lt.s32.totalorder %s245, 17
      %s249 = scalar_select %p248, %s245, 17
      %s250 = smul.addr %s249, 3
      %s251 = smul.addr %s247, 54
      %s252 = sadd.s32 %s250, %s251
      %s253 = smul.addr %s252, 8
      %s254 = scalar_lea.vmem %s1, %s253
      %p255 = pneg %p82
      %p256 = pneg %p79
      %p257 = pneg %p103
      %p258 = pneg %p100
      %p259 = pneg %p124
      %p260 = pneg %p121
      %p261 = pneg %p152
      %p262 = pneg %p149
      %s263 = smul.u32 16, %s20
      %p264 = scmp.lt.s32.totalorder %s19, 1
      %s265 = scalar_select %p264, %s19, 1
      %p266 = scmp.lt.s32.totalorder %s263, 15
      %s267 = scalar_select %p266, %s263, 15
      %s268 = smul.addr %s267, 2
      %s269 = smul.addr %s265, 32
      %s270 = sadd.s32 %s268, %s269
      %s271 = smul.addr %s270, 8
      %s272 = scalar_lea.vmem %s4, %s271
      %s273 = smul.u32 16, %s20
      %s274 = ssub.s32 18, %s273
      %p275 = scmp.lt.s32.totalorder %s274, 16
      %s276 = scalar_select %p275, %s274, 16
      %s277 = smul.u32 128, %s276
      %s278 = smul.u32 %s277, 3
      %p279 = scmp.lt.s32.totalorder %s19, 1
      %s280 = scalar_select %p279, %s19, 1
      %p281 = scmp.lt.s32.totalorder %s273, 17
      %s282 = scalar_select %p281, %s273, 17
      %s283 = smul.addr %s282, 3
      %s284 = smul.addr %s280, 54
      %s285 = sadd.s32 %s283, %s284
      %s286 = smul.addr %s285, 8
      %s287 = scalar_lea.vmem %s0, %s286
      %s288 = smul.u32 16, %s20
      %s289 = ssub.s32 18, %s288
      %p290 = scmp.lt.s32.totalorder %s289, 16
      %s291 = scalar_select %p290, %s289, 16
      %s292 = smul.u32 128, %s291
      %s293 = smul.u32 %s292, 3
      %s294 = sadd.s32 %s20, 1
      %s295 = smul.u32 %s294, 8
      %s296 = smul.u32 2, %s295
      %p297 = scmp.lt.s32.totalorder %s19, 1
      %s298 = scalar_select %p297, %s19, 1
      %p299 = scmp.lt.s32.totalorder %s296, 17
      %s300 = scalar_select %p299, %s296, 17
      %s301 = smul.addr %s300, 3
      %s302 = smul.addr %s298, 54
      %s303 = sadd.s32 %s301, %s302
      %s304 = smul.addr %s303, 8
      %s305 = scalar_lea.vmem %s1, %s304
      %s306 = sadd.s32 %s20, 1
      %s307 = smul.u32 %s306, 8
      %s308 = smul.u32 2, %s307
      %s309 = smul.u32 16, %s20
      %p310 = scmp.lt.s32.totalorder %s19, 1
      %s311 = scalar_select %p310, %s19, 1
      %p312 = scmp.lt.s32.totalorder %s309, 15
      %s313 = scalar_select %p312, %s309, 15
      %s314 = smul.addr %s313, 2
      %s315 = smul.addr %s311, 32
      %s316 = sadd.s32 %s314, %s315
      %s317 = smul.addr %s316, 8
      %s318 = scalar_lea.vmem %s4, %s317
      %s319 = smul.u32 16, %s20
      %v320 = vld [vmem:[%s287] sm:$0xff]
      %v321 = vld [vmem:[%s287 + $0x8] sm:$0xff]
      %v322 = vld [vmem:[%s287 + $0x10] sm:$0x3]
      %v323 = vld [vmem:[%s287 + $0x18] sm:$0xff]
      %v324 = vld [vmem:[%s287 + $0x20] sm:$0xff]
      %v325 = vld [vmem:[%s287 + $0x28] sm:$0x3]
      %v326 = vld [vmem:[%s287 + $0x30] sm:$0xff]
      %v327 = vld [vmem:[%s287 + $0x38] sm:$0xff]
      %v328 = vld [vmem:[%s287 + $0x40] sm:$0x3]
      %v329 = vld [vmem:[%s287 + $0x48] sm:$0xff]
      %v330 = vld [vmem:[%s287 + $0x50] sm:$0xff]
      %v331 = vld [vmem:[%s287 + $0x58] sm:$0x3]
      %v332 = vld [vmem:[%s287 + $0x60] sm:$0xff]
      %v333 = vld [vmem:[%s287 + $0x68] sm:$0xff]
      %v334 = vld [vmem:[%s287 + $0x70] sm:$0x3]
      %v335 = vld [vmem:[%s287 + $0x78] sm:$0xff]
      %v336 = vld [vmem:[%s287 + $0x80] sm:$0xff]
      %v337 = vld [vmem:[%s287 + $0x88] sm:$0x3]
      %v338 = vld [vmem:[%s287 + $0x90] sm:$0xff]
      %v339 = vld [vmem:[%s287 + $0x98] sm:$0xff]
      %v340 = vld [vmem:[%s287 + $0xa0] sm:$0x3]
      %v341 = vld [vmem:[%s287 + $0xa8] sm:$0xff]
      %v342 = vld [vmem:[%s287 + $0xb0] sm:$0xff]
      %v343 = vld [vmem:[%s287 + $0xb8] sm:$0x3]
      %v344 = vld [vmem:[%s287 + $0xc0] sm:$0xff]
      %v345 = vld [vmem:[%s287 + $0xc8] sm:$0xff]
      %v346 = vld [vmem:[%s287 + $0xd0] sm:$0x3]
      %v347 = vld [vmem:[%s287 + $0xd8] sm:$0xff]
      %v348 = vld [vmem:[%s287 + $0xe0] sm:$0xff]
      %v349 = vld [vmem:[%s287 + $0xe8] sm:$0x3]
      %v350 = vld [vmem:[%s287 + $0xf0] sm:$0xff]
      %v351 = vld [vmem:[%s287 + $0xf8] sm:$0xff]
      %v352 = vld [vmem:[%s287 + $0x100] sm:$0x3]
      %v353 = vld [vmem:[%s287 + $0x108] sm:$0xff]
      %v354 = vld [vmem:[%s287 + $0x110] sm:$0xff]
      %v355 = vld [vmem:[%s287 + $0x118] sm:$0x3]
      %v356 = vld [vmem:[%s287 + $0x120] sm:$0xff]
      %v357 = vld [vmem:[%s287 + $0x128] sm:$0xff]
      %v358 = vld [vmem:[%s287 + $0x130] sm:$0x3]
      %v359 = vld [vmem:[%s287 + $0x138] sm:$0xff]
      %v360 = vld [vmem:[%s287 + $0x140] sm:$0xff]
      %v361 = vld [vmem:[%s287 + $0x148] sm:$0x3]
      %v362 = vld [vmem:[%s287 + $0x150] sm:$0xff]
      %v363 = vld [vmem:[%s287 + $0x158] sm:$0xff]
      %v364 = vld [vmem:[%s287 + $0x160] sm:$0x3]
      %v365 = vld [vmem:[%s287 + $0x168] sm:$0xff]
      %v366 = vld [vmem:[%s287 + $0x170] sm:$0xff]
      %v367 = vld [vmem:[%s287 + $0x178] sm:$0x3]
      %vm368 = vcmask 31744
      %369 = vst.msk [vmem:[#allocation2] sm:$0xff] %vm368, %v320
      %370 = vst.msk [vmem:[#allocation2 + $0x8] sm:$0xff] %vm368, %v321
      %vm371 = vcmask 25600
      %372 = vst.msk [vmem:[#allocation2 + $0x10] sm:$0x3] %vm371, %v322
      %373 = vst.msk [vmem:[#allocation2 + $0x18] sm:$0xff] %vm368, %v323
      %374 = vst.msk [vmem:[#allocation2 + $0x20] sm:$0xff] %vm368, %v324
      %375 = vst.msk [vmem:[#allocation2 + $0x28] sm:$0x3] %vm371, %v325
      %376 = vst.msk [vmem:[#allocation2 + $0x30] sm:$0xff] %vm368, %v326
      %377 = vst.msk [vmem:[#allocation2 + $0x38] sm:$0xff] %vm368, %v327
      %378 = vst.msk [vmem:[#allocation2 + $0x40] sm:$0x3] %vm371, %v328
      %379 = vst.msk [vmem:[#allocation2 + $0x48] sm:$0xff] %vm368, %v329
      %380 = vst.msk [vmem:[#allocation2 + $0x50] sm:$0xff] %vm368, %v330
      %381 = vst.msk [vmem:[#allocation2 + $0x58] sm:$0x3] %vm371, %v331
      %382 = vst.msk [vmem:[#allocation2 + $0x60] sm:$0xff] %vm368, %v332
      %383 = vst.msk [vmem:[#allocation2 + $0x68] sm:$0xff] %vm368, %v333
      %384 = vst.msk [vmem:[#allocation2 + $0x70] sm:$0x3] %vm371, %v334
      %385 = vst.msk [vmem:[#allocation2 + $0x78] sm:$0xff] %vm368, %v335
      %386 = vst.msk [vmem:[#allocation2 + $0x80] sm:$0xff] %vm368, %v336
      %387 = vst.msk [vmem:[#allocation2 + $0x88] sm:$0x3] %vm371, %v337
      %388 = vst.msk [vmem:[#allocation2 + $0x90] sm:$0xff] %vm368, %v338
      %389 = vst.msk [vmem:[#allocation2 + $0x98] sm:$0xff] %vm368, %v339
      %390 = vst.msk [vmem:[#allocation2 + $0xa0] sm:$0x3] %vm371, %v340
      %391 = vst.msk [vmem:[#allocation2 + $0xa8] sm:$0xff] %vm368, %v341
      %392 = vst.msk [vmem:[#allocation2 + $0xb0] sm:$0xff] %vm368, %v342
      %393 = vst.msk [vmem:[#allocation2 + $0xb8] sm:$0x3] %vm371, %v343
      %394 = vst.msk [vmem:[#allocation2 + $0xc0] sm:$0xff] %vm368, %v344
      %395 = vst.msk [vmem:[#allocation2 + $0xc8] sm:$0xff] %vm368, %v345
      %396 = vst.msk [vmem:[#allocation2 + $0xd0] sm:$0x3] %vm371, %v346
      %397 = vst.msk [vmem:[#allocation2 + $0xd8] sm:$0xff] %vm368, %v347
      %398 = vst.msk [vmem:[#allocation2 + $0xe0] sm:$0xff] %vm368, %v348
      %399 = vst.msk [vmem:[#allocation2 + $0xe8] sm:$0x3] %vm371, %v349
      %400 = vst.msk [vmem:[#allocation2 + $0xf0] sm:$0xff] %vm368, %v350
      %401 = vst.msk [vmem:[#allocation2 + $0xf8] sm:$0xff] %vm368, %v351
      %402 = vst.msk [vmem:[#allocation2 + $0x100] sm:$0x3] %vm371, %v352
      %403 = vst.msk [vmem:[#allocation2 + $0x108] sm:$0xff] %vm368, %v353
      %404 = vst.msk [vmem:[#allocation2 + $0x110] sm:$0xff] %vm368, %v354
      %405 = vst.msk [vmem:[#allocation2 + $0x118] sm:$0x3] %vm371, %v355
      %406 = vst.msk [vmem:[#allocation2 + $0x120] sm:$0xff] %vm368, %v356
      %407 = vst.msk [vmem:[#allocation2 + $0x128] sm:$0xff] %vm368, %v357
      %408 = vst.msk [vmem:[#allocation2 + $0x130] sm:$0x3] %vm371, %v358
      %409 = vst.msk [vmem:[#allocation2 + $0x138] sm:$0xff] %vm368, %v359
      %410 = vst.msk [vmem:[#allocation2 + $0x140] sm:$0xff] %vm368, %v360
      %411 = vst.msk [vmem:[#allocation2 + $0x148] sm:$0x3] %vm371, %v361
      %412 = vst.msk [vmem:[#allocation2 + $0x150] sm:$0xff] %vm368, %v362
      %413 = vst.msk [vmem:[#allocation2 + $0x158] sm:$0xff] %vm368, %v363
      %414 = vst.msk [vmem:[#allocation2 + $0x160] sm:$0x3] %vm371, %v364
      %415 = vst.msk [vmem:[#allocation2 + $0x168] sm:$0xff] %vm368, %v365
      %416 = vst.msk [vmem:[#allocation2 + $0x170] sm:$0xff] %vm368, %v366
      %417 = vst.msk [vmem:[#allocation2 + $0x178] sm:$0x3] %vm371, %v367
      %v418 = vld [vmem:[%s305] sm:$0xff]
      %v419 = vld [vmem:[%s305 + $0x8] sm:$0xff]
      %v420 = vld [vmem:[%s305 + $0x10] sm:$0x3]
      %v421 = vld [vmem:[%s305 + $0x18] sm:$0xff]
      %v422 = vld [vmem:[%s305 + $0x20] sm:$0xff]
      %v423 = vld [vmem:[%s305 + $0x28] sm:$0x3]
      %s424 = scalar_lea.vmem [#allocation2], 384
      %425 = vst.msk [vmem:[%s424] sm:$0xff] %vm368, %v418
      %426 = vst.msk [vmem:[%s424 + $0x8] sm:$0xff] %vm368, %v419
      %427 = vst.msk [vmem:[%s424 + $0x10] sm:$0x3] %vm371, %v420
      %428 = vst.msk [vmem:[%s424 + $0x18] sm:$0xff] %vm368, %v421
      %429 = vst.msk [vmem:[%s424 + $0x20] sm:$0xff] %vm368, %v422
      %430 = vst.msk [vmem:[%s424 + $0x28] sm:$0x3] %vm371, %v423
      %v431 = vld [vmem:[%s3] sm:$0x1]
      %v433 = vlaneseq
      %v434 = vshrl.u32 %v433, 7
      %v435 = vsub.s32 0, %v434
      %v436 = vrot.slane %v431, %v435
      %v438 = vld [vmem:[#allocation2] sm:$0xff]
      %v439 = vld [vmem:[#allocation2 + $0x8] sm:$0xff]
      %v440 = vld [vmem:[#allocation2 + $0x18] sm:$0xff]
      %v441 = vld [vmem:[#allocation2 + $0x20] sm:$0xff]
      %v442 = vld [vmem:[#allocation2 + $0x30] sm:$0xff]
      %v443 = vld [vmem:[#allocation2 + $0x38] sm:$0xff]
      %v444 = vld [vmem:[#allocation2 + $0x48] sm:$0xff]
      %v445 = vld [vmem:[#allocation2 + $0x50] sm:$0xff]
      %v446 = vld [vmem:[#allocation2 + $0x60] sm:$0xff]
      %v447 = vld [vmem:[#allocation2 + $0x68] sm:$0xff]
      %v448 = vld [vmem:[#allocation2 + $0x78] sm:$0xff]
      %v449 = vld [vmem:[#allocation2 + $0x80] sm:$0xff]
      %v450 = vld [vmem:[#allocation2 + $0x90] sm:$0xff]
      %v451 = vld [vmem:[#allocation2 + $0x98] sm:$0xff]
      %v452 = vld [vmem:[#allocation2 + $0xa8] sm:$0xff]
      %v453 = vld [vmem:[#allocation2 + $0xb0] sm:$0xff]
      %v454 = vld [vmem:[#allocation2 + $0xc0] sm:$0xff]
      %v455 = vld [vmem:[#allocation2 + $0xc8] sm:$0xff]
      %v456 = vld [vmem:[#allocation2 + $0xd8] sm:$0xff]
      %v457 = vld [vmem:[#allocation2 + $0xe0] sm:$0xff]
      %v458 = vld [vmem:[#allocation2 + $0xf0] sm:$0xff]
      %v459 = vld [vmem:[#allocation2 + $0xf8] sm:$0xff]
      %v460 = vld [vmem:[#allocation2 + $0x108] sm:$0xff]
      %v461 = vld [vmem:[#allocation2 + $0x110] sm:$0xff]
      %v462 = vld [vmem:[#allocation2 + $0x120] sm:$0xff]
      %v463 = vld [vmem:[#allocation2 + $0x128] sm:$0xff]
      %v464 = vld [vmem:[#allocation2 + $0x138] sm:$0xff]
      %v465 = vld [vmem:[#allocation2 + $0x140] sm:$0xff]
      %v466 = vld [vmem:[#allocation2 + $0x150] sm:$0xff]
      %v467 = vld [vmem:[#allocation2 + $0x158] sm:$0xff]
      %v468 = vld [vmem:[#allocation2 + $0x168] sm:$0xff]
      %v469 = vld [vmem:[#allocation2 + $0x170] sm:$0xff]
      %v470 = vld [vmem:[%s2] sm:$0xf]
      %v472 = vsel %vm368, %v438, 0
      %v475 = vsel %vm368, %v439, 0
      %v478 = vsel %vm368, %v440, 0
      %v481 = vsel %vm368, %v441, 0
      %v484 = vsel %vm368, %v442, 0
      %v487 = vsel %vm368, %v443, 0
      %v490 = vsel %vm368, %v444, 0
      %v493 = vsel %vm368, %v445, 0
      %v496 = vsel %vm368, %v446, 0
      %v499 = vsel %vm368, %v447, 0
      %v502 = vsel %vm368, %v448, 0
      %v505 = vsel %vm368, %v449, 0
      %v508 = vsel %vm368, %v450, 0
      %v511 = vsel %vm368, %v451, 0
      %v514 = vsel %vm368, %v452, 0
      %v517 = vsel %vm368, %v453, 0
      %v520 = vsel %vm368, %v454, 0
      %v523 = vsel %vm368, %v455, 0
      %v526 = vsel %vm368, %v456, 0
      %v529 = vsel %vm368, %v457, 0
      %v532 = vsel %vm368, %v458, 0
      %v535 = vsel %vm368, %v459, 0
      %v538 = vsel %vm368, %v460, 0
      %v541 = vsel %vm368, %v461, 0
      %v544 = vsel %vm368, %v462, 0
      %v547 = vsel %vm368, %v463, 0
      %v550 = vsel %vm368, %v464, 0
      %v553 = vsel %vm368, %v465, 0
      %v556 = vsel %vm368, %v466, 0
      %v559 = vsel %vm368, %v467, 0
      %v562 = vsel %vm368, %v468, 0
      %v565 = vsel %vm368, %v469, 0
      %vm567 = vcmask 1043456
      %v569 = vsel %vm567, %v470, 0
      %571 = vmatprep.subr.mxu0 0.0
      %572 = vmatpush1.msra.mxu0 %v569
      %573 = vmatprep.subr.mxu0 0.0
      %574 = vmatpush1.msra.mxu0 0.0
      %575 = vmatprep.subr.mxu0 0.0
      %576 = vmatpush1.msra.mxu0 0.0
      %577 = vmatprep.subr.mxu0 0.0
      %578 = vmatpush1.msra.mxu0 0.0
      %579 = vmatprep.subr.mxu0 0.0
      %580 = vmatpush1.msra.mxu0 0.0
      %581 = vmatprep.subr.mxu0 0.0
      %582 = vmatpush1.msra.mxu0 0.0
      %583 = vmatprep.subr.mxu0 0.0
      %584 = vmatpush1.msra.mxu0 0.0
      %585 = vmatprep.subr.mxu0 0.0
      %586 = vmatpush1.msra.mxu0 0.0
      %587 = vmatprep.subr.mxu0 0.0
      %588 = vmatpush1.msra.mxu0 0.0
      %589 = vmatprep.subr.mxu0 0.0
      %590 = vmatpush1.msra.mxu0 0.0
      %591 = vmatprep.subr.mxu0 0.0
      %592 = vmatpush1.msra.mxu0 0.0
      %593 = vmatprep.subr.mxu0 0.0
      %594 = vmatpush1.msra.mxu0 0.0
      %595 = vmatprep.subr.mxu0 0.0
      %596 = vmatpush1.msra.mxu0 0.0
      %597 = vmatprep.subr.mxu0 0.0
      %598 = vmatpush1.msra.mxu0 0.0
      %599 = vmatprep.subr.mxu0 0.0
      %600 = vmatpush1.msra.mxu0 0.0
      %601 = vmatprep.subr.mxu0 0.0
      %602 = vmatpush1.msra.mxu0 0.0
      %603 = vmatprep.subr.mxu0 0.0
      %604 = vmatpush1.msra.mxu0 0.0
      %605 = vmatprep.subr.mxu0 0.0
      %606 = vmatpush1.msra.mxu0 0.0
      %607 = vmatprep.subr.mxu0 0.0
      %608 = vmatpush1.msra.mxu0 0.0
      %609 = vmatprep.subr.mxu0 0.0
      %610 = vmatpush1.msra.mxu0 0.0
      %611 = vmatprep.subr.mxu0 0.0
      %612 = vmatpush1.msra.mxu0 0.0
      %613 = vmatprep.subr.mxu0 0.0
      %614 = vmatpush1.msra.mxu0 0.0
      %615 = vmatprep.subr.mxu0 0.0
      %616 = vmatpush1.msra.mxu0 0.0
      %617 = vmatprep.subr.mxu0 0.0
      %618 = vmatpush1.msra.mxu0 0.0
      %619 = vmatprep.subr.mxu0 0.0
      %620 = vmatpush1.msra.mxu0 0.0
      %621 = vmatprep.subr.mxu0 0.0
      %622 = vmatpush1.msra.mxu0 0.0
      %623 = vmatprep.subr.mxu0 0.0
      %624 = vmatpush1.msra.mxu0 0.0
      %625 = vmatprep.subr.mxu0 0.0
      %626 = vmatpush1.msra.mxu0 0.0
      %627 = vmatprep.subr.mxu0 0.0
      %628 = vmatpush1.msra.mxu0 0.0
      %629 = vmatprep.subr.mxu0 0.0
      %630 = vmatpush1.msra.mxu0 0.0
      %631 = vmatprep.subr.mxu0 0.0
      %632 = vmatpush1.msra.mxu0 0.0
      %633 = vmatprep.subr.mxu0 0.0
      %634 = vmatpush1.msra.mxu0 0.0
      %635 = vmatprep.mubr.f32.mxu0 0.0
      %636 = vmatmul.mubr.f32.gmra.mrb[0].mxu0 %v472
      %v637 = vpop.f32.mrb[0].mxu0
      %v638 = vadd.f32 0.0, %v637
      %v639 = vpop.f32.mrb[0].mxu0
      %640 = vmatprep.mubr.f32.mxu0 0.0
      %641 = vmatmul.mubr.f32.gmra.mrb[0].mxu0 %v475
      %v642 = vpop.f32.mrb[0].mxu0
      %v643 = vadd.f32 0.0, %v642
      %v644 = vpop.f32.mrb[0].mxu0
      %645 = vmatprep.mubr.f32.mxu0 0.0
      %646 = vmatmul.mubr.f32.gmra.mrb[0].mxu0 %v478
      %v647 = vpop.f32.mrb[0].mxu0
      %v648 = vadd.f32 0.0, %v647
      %v649 = vpop.f32.mrb[0].mxu0
      %650 = vmatprep.mubr.f32.mxu0 0.0
      %651 = vmatmul.mubr.f32.gmra.mrb[0].mxu0 %v481
      %v652 = vpop.f32.mrb[0].mxu0
      %v653 = vadd.f32 0.0, %v652
      %v654 = vpop.f32.mrb[0].mxu0
      %655 = vmatprep.mubr.f32.mxu0 0.0
      %656 = vmatmul.mubr.f32.gmra.mrb[0].mxu0 %v484
      %v657 = vpop.f32.mrb[0].mxu0
      %v658 = vadd.f32 0.0, %v657
      %v659 = vpop.f32.mrb[0].mxu0
      %660 = vmatprep.mubr.f32.mxu0 0.0
      %661 = vmatmul.mubr.f32.gmra.mrb[0].mxu0 %v487
      %v662 = vpop.f32.mrb[0].mxu0
      %v663 = vadd.f32 0.0, %v662
      %v664 = vpop.f32.mrb[0].mxu0
      %665 = vmatprep.mubr.f32.mxu0 0.0
      %666 = vmatmul.mubr.f32.gmra.mrb[0].mxu0 %v490
      %v667 = vpop.f32.mrb[0].mxu0
      %v668 = vadd.f32 0.0, %v667
      %v669 = vpop.f32.mrb[0].mxu0
      %670 = vmatprep.mubr.f32.mxu0 0.0
      %671 = vmatmul.mubr.f32.gmra.mrb[0].mxu0 %v493
      %v672 = vpop.f32.mrb[0].mxu0
      %v673 = vadd.f32 0.0, %v672
      %v674 = vpop.f32.mrb[0].mxu0
      %675 = vmatprep.mubr.f32.mxu0 0.0
      %676 = vmatmul.mubr.f32.gmra.mrb[0].mxu0 %v496
      %v677 = vpop.f32.mrb[0].mxu0
      %v678 = vadd.f32 0.0, %v677
      %v679 = vpop.f32.mrb[0].mxu0
      %680 = vmatprep.mubr.f32.mxu0 0.0
      %681 = vmatmul.mubr.f32.gmra.mrb[0].mxu0 %v499
      %v682 = vpop.f32.mrb[0].mxu0
      %v683 = vadd.f32 0.0, %v682
      %v684 = vpop.f32.mrb[0].mxu0
      %685 = vmatprep.mubr.f32.mxu0 0.0
      %686 = vmatmul.mubr.f32.gmra.mrb[0].mxu0 %v502
      %v687 = vpop.f32.mrb[0].mxu0
      %v688 = vadd.f32 0.0, %v687
      %v689 = vpop.f32.mrb[0].mxu0
      %690 = vmatprep.mubr.f32.mxu0 0.0
      %691 = vmatmul.mubr.f32.gmra.mrb[0].mxu0 %v505
      %v692 = vpop.f32.mrb[0].mxu0
      %v693 = vadd.f32 0.0, %v692
      %v694 = vpop.f32.mrb[0].mxu0
      %695 = vmatprep.mubr.f32.mxu0 0.0
      %696 = vmatmul.mubr.f32.gmra.mrb[0].mxu0 %v508
      %v697 = vpop.f32.mrb[0].mxu0
      %v698 = vadd.f32 0.0, %v697
      %v699 = vpop.f32.mrb[0].mxu0
      %700 = vmatprep.mubr.f32.mxu0 0.0
      %701 = vmatmul.mubr.f32.gmra.mrb[0].mxu0 %v511
      %v702 = vpop.f32.mrb[0].mxu0
      %v703 = vadd.f32 0.0, %v702
      %v704 = vpop.f32.mrb[0].mxu0
      %705 = vmatprep.mubr.f32.mxu0 0.0
      %706 = vmatmul.mubr.f32.gmra.mrb[0].mxu0 %v514
      %v707 = vpop.f32.mrb[0].mxu0
      %v708 = vadd.f32 0.0, %v707
      %v709 = vpop.f32.mrb[0].mxu0
      %710 = vmatprep.mubr.f32.mxu0 0.0
      %711 = vmatmul.mubr.f32.gmra.mrb[0].mxu0 %v517
      %v712 = vpop.f32.mrb[0].mxu0
      %v713 = vadd.f32 0.0, %v712
      %v714 = vpop.f32.mrb[0].mxu0
      %715 = vmatprep.mubr.f32.mxu0 0.0
      %716 = vmatmul.mubr.f32.gmra.mrb[0].mxu0 %v520
      %v717 = vpop.f32.mrb[0].mxu0
      %v718 = vadd.f32 0.0, %v717
      %v719 = vpop.f32.mrb[0].mxu0
      %720 = vmatprep.mubr.f32.mxu0 0.0
      %721 = vmatmul.mubr.f32.gmra.mrb[0].mxu0 %v523
      %v722 = vpop.f32.mrb[0].mxu0
      %v723 = vadd.f32 0.0, %v722
      %v724 = vpop.f32.mrb[0].mxu0
      %725 = vmatprep.mubr.f32.mxu0 0.0
      %726 = vmatmul.mubr.f32.gmra.mrb[0].mxu0 %v526
      %v727 = vpop.f32.mrb[0].mxu0
      %v728 = vadd.f32 0.0, %v727
      %v729 = vpop.f32.mrb[0].mxu0
      %730 = vmatprep.mubr.f32.mxu0 0.0
      %731 = vmatmul.mubr.f32.gmra.mrb[0].mxu0 %v529
      %v732 = vpop.f32.mrb[0].mxu0
      %v733 = vadd.f32 0.0, %v732
      %v734 = vpop.f32.mrb[0].mxu0
      %735 = vmatprep.mubr.f32.mxu0 0.0
      %736 = vmatmul.mubr.f32.gmra.mrb[0].mxu0 %v532
      %v737 = vpop.f32.mrb[0].mxu0
      %v738 = vadd.f32 0.0, %v737
      %v739 = vpop.f32.mrb[0].mxu0
      %740 = vmatprep.mubr.f32.mxu0 0.0
      %741 = vmatmul.mubr.f32.gmra.mrb[0].mxu0 %v535
      %v742 = vpop.f32.mrb[0].mxu0
      %v743 = vadd.f32 0.0, %v742
      %v744 = vpop.f32.mrb[0].mxu0
      %745 = vmatprep.mubr.f32.mxu0 0.0
      %746 = vmatmul.mubr.f32.gmra.mrb[0].mxu0 %v538
      %v747 = vpop.f32.mrb[0].mxu0
      %v748 = vadd.f32 0.0, %v747
      %v749 = vpop.f32.mrb[0].mxu0
      %750 = vmatprep.mubr.f32.mxu0 0.0
      %751 = vmatmul.mubr.f32.gmra.mrb[0].mxu0 %v541
      %v752 = vpop.f32.mrb[0].mxu0
      %v753 = vadd.f32 0.0, %v752
      %v754 = vpop.f32.mrb[0].mxu0
      %755 = vmatprep.mubr.f32.mxu0 0.0
      %756 = vmatmul.mubr.f32.gmra.mrb[0].mxu0 %v544
      %v757 = vpop.f32.mrb[0].mxu0
      %v758 = vadd.f32 0.0, %v757
      %v759 = vpop.f32.mrb[0].mxu0
      %760 = vmatprep.mubr.f32.mxu0 0.0
      %761 = vmatmul.mubr.f32.gmra.mrb[0].mxu0 %v547
      %v762 = vpop.f32.mrb[0].mxu0
      %v763 = vadd.f32 0.0, %v762
      %v764 = vpop.f32.mrb[0].mxu0
      %765 = vmatprep.mubr.f32.mxu0 0.0
      %766 = vmatmul.mubr.f32.gmra.mrb[0].mxu0 %v550
      %v767 = vpop.f32.mrb[0].mxu0
      %v768 = vadd.f32 0.0, %v767
      %v769 = vpop.f32.mrb[0].mxu0
      %770 = vmatprep.mubr.f32.mxu0 0.0
      %771 = vmatmul.mubr.f32.gmra.mrb[0].mxu0 %v553
      %v772 = vpop.f32.mrb[0].mxu0
      %v773 = vadd.f32 0.0, %v772
      %v774 = vpop.f32.mrb[0].mxu0
      %775 = vmatprep.mubr.f32.mxu0 0.0
      %776 = vmatmul.mubr.f32.gmra.mrb[0].mxu0 %v556
      %v777 = vpop.f32.mrb[0].mxu0
      %v778 = vadd.f32 0.0, %v777
      %v779 = vpop.f32.mrb[0].mxu0
      %780 = vmatprep.mubr.f32.mxu0 0.0
      %781 = vmatmul.mubr.f32.gmra.mrb[0].mxu0 %v559
      %v782 = vpop.f32.mrb[0].mxu0
      %v783 = vadd.f32 0.0, %v782
      %v784 = vpop.f32.mrb[0].mxu0
      %785 = vmatprep.mubr.f32.mxu0 0.0
      %786 = vmatmul.mubr.f32.gmra.mrb[0].mxu0 %v562
      %v787 = vpop.f32.mrb[0].mxu0
      %v788 = vadd.f32 0.0, %v787
      %v789 = vpop.f32.mrb[0].mxu0
      %790 = vmatprep.mubr.f32.mxu0 0.0
      %791 = vmatmul.mubr.f32.gmra.mrb[0].mxu0 %v565
      %v792 = vpop.f32.mrb[0].mxu0
      %v793 = vadd.f32 0.0, %v792
      %v794 = vpop.f32.mrb[0].mxu0
      %795 = vdwg.mxu0
      %v796 = vadd.f32 %v436, %v638
      %v797 = vadd.f32 %v436, %v643
      %v798 = vadd.f32 %v436, %v648
      %v799 = vadd.f32 %v436, %v653
      %v800 = vadd.f32 %v436, %v658
      %v801 = vadd.f32 %v436, %v663
      %v802 = vadd.f32 %v436, %v668
      %v803 = vadd.f32 %v436, %v673
      %v804 = vadd.f32 %v436, %v678
      %v805 = vadd.f32 %v436, %v683
      %v806 = vadd.f32 %v436, %v688
      %v807 = vadd.f32 %v436, %v693
      %v808 = vadd.f32 %v436, %v698
      %v809 = vadd.f32 %v436, %v703
      %v810 = vadd.f32 %v436, %v708
      %v811 = vadd.f32 %v436, %v713
      %v812 = vadd.f32 %v436, %v718
      %v813 = vadd.f32 %v436, %v723
      %v814 = vadd.f32 %v436, %v728
      %v815 = vadd.f32 %v436, %v733
      %v816 = vadd.f32 %v436, %v738
      %v817 = vadd.f32 %v436, %v743
      %v818 = vadd.f32 %v436, %v748
      %v819 = vadd.f32 %v436, %v753
      %v820 = vadd.f32 %v436, %v758
      %v821 = vadd.f32 %v436, %v763
      %v822 = vadd.f32 %v436, %v768
      %v823 = vadd.f32 %v436, %v773
      %v824 = vadd.f32 %v436, %v778
      %v825 = vadd.f32 %v436, %v783
      %v826 = vadd.f32 %v436, %v788
      %v827 = vadd.f32 %v436, %v793
      %v828 = vld [vmem:[#allocation2 + $0x1] sm:$0xff]
      %v829 = vld [vmem:[#allocation2 + $0x9] sm:$0xff]
      %v830 = vld [vmem:[#allocation2 + $0x19] sm:$0xff]
      %v831 = vld [vmem:[#allocation2 + $0x21] sm:$0xff]
      %v832 = vld [vmem:[#allocation2 + $0x31] sm:$0xff]
      %v833 = vld [vmem:[#allocation2 + $0x39] sm:$0xff]
      %v834 = vld [vmem:[#allocation2 + $0x49] sm:$0xff]
      %v835 = vld [vmem:[#allocation2 + $0x51] sm:$0xff]
      %v836 = vld [vmem:[#allocation2 + $0x61] sm:$0xff]
      %v837 = vld [vmem:[#allocation2 + $0x69] sm:$0xff]
      %v838 = vld [vmem:[#allocation2 + $0x79] sm:$0xff]
      %v839 = vld [vmem:[#allocation2 + $0x81] sm:$0xff]
      %v840 = vld [vmem:[#allocation2 + $0x91] sm:$0xff]
      %v841 = vld [vmem:[#allocation2 + $0x99] sm:$0xff]
      %v842 = vld [vmem:[#allocation2 + $0xa9] sm:$0xff]
      %v843 = vld [vmem:[#allocation2 + $0xb1] sm:$0xff]
      %v844 = vld [vmem:[#allocation2 + $0xc1] sm:$0xff]
      %v845 = vld [vmem:[#allocation2 + $0xc9] sm:$0xff]
      %v846 = vld [vmem:[#allocation2 + $0xd9] sm:$0xff]
      %v847 = vld [vmem:[#allocation2 + $0xe1] sm:$0xff]
      %v848 = vld [vmem:[#allocation2 + $0xf1] sm:$0xff]
      %v849 = vld [vmem:[#allocation2 + $0xf9] sm:$0xff]
      %v850 = vld [vmem:[#allocation2 + $0x109] sm:$0xff]
      %v851 = vld [vmem:[#allocation2 + $0x111] sm:$0xff]
      %v852 = vld [vmem:[#allocation2 + $0x121] sm:$0xff]
      %v853 = vld [vmem:[#allocation2 + $0x129] sm:$0xff]
      %v854 = vld [vmem:[#allocation2 + $0x139] sm:$0xff]
      %v855 = vld [vmem:[#allocation2 + $0x141] sm:$0xff]
      %v856 = vld [vmem:[#allocation2 + $0x151] sm:$0xff]
      %v857 = vld [vmem:[#allocation2 + $0x159] sm:$0xff]
      %v858 = vld [vmem:[#allocation2 + $0x169] sm:$0xff]
      %v859 = vld [vmem:[#allocation2 + $0x171] sm:$0xff]
      %s860 = scalar_lea.vmem %s2, 4
      %v861 = vld [vmem:[%s860] sm:$0xf]
      %v863 = vsel %vm368, %v828, 0
      %v866 = vsel %vm368, %v829, 0
      %v869 = vsel %vm368, %v830, 0
      %v872 = vsel %vm368, %v831, 0
      %v875 = vsel %vm368, %v832, 0
      %v878 = vsel %vm368, %v833, 0
      %v881 = vsel %vm368, %v834, 0
      %v884 = vsel %vm368, %v835, 0
      %v887 = vsel %vm368, %v836, 0
      %v890 = vsel %vm368, %v837, 0
      %v893 = vsel %vm368, %v838, 0
      %v896 = vsel %vm368, %v839, 0
      %v899 = vsel %vm368, %v840, 0
      %v902 = vsel %vm368, %v841, 0
      %v905 = vsel %vm368, %v842, 0
      %v908 = vsel %vm368, %v843, 0
      %v911 = vsel %vm368, %v844, 0
      %v914 = vsel %vm368, %v845, 0
      %v917 = vsel %vm368, %v846, 0
      %v920 = vsel %vm368, %v847, 0
      %v923 = vsel %vm368, %v848, 0
      %v926 = vsel %vm368, %v849, 0
      %v929 = vsel %vm368, %v850, 0
      %v932 = vsel %vm368, %v851, 0
      %v935 = vsel %vm368, %v852, 0
      %v938 = vsel %vm368, %v853, 0
      %v941 = vsel %vm368, %v854, 0
      %v944 = vsel %vm368, %v855, 0
      %v947 = vsel %vm368, %v856, 0
      %v950 = vsel %vm368, %v857, 0
      %v953 = vsel %vm368, %v858, 0
      %v956 = vsel %vm368, %v859, 0
      %v959 = vsel %vm567, %v861, 0
      %961 = vmatprep.subr.mxu0 0.0
      %962 = vmatpush1.msra.mxu0 %v959
      %963 = vmatprep.subr.mxu0 0.0
      %964 = vmatpush1.msra.mxu0 0.0
      %965 = vmatprep.subr.mxu0 0.0
      %966 = vmatpush1.msra.mxu0 0.0
      %967 = vmatprep.subr.mxu0 0.0
      %968 = vmatpush1.msra.mxu0 0.0
      %969 = vmatprep.subr.mxu0 0.0
      %970 = vmatpush1.msra.mxu0 0.0
      %971 = vmatprep.subr.mxu0 0.0
      %972 = vmatpush1.msra.mxu0 0.0
      %973 = vmatprep.subr.mxu0 0.0
      %974 = vmatpush1.msra.mxu0 0.0
      %975 = vmatprep.subr.mxu0 0.0
      %976 = vmatpush1.msra.mxu0 0.0
      %977 = vmatprep.subr.mxu0 0.0
      %978 = vmatpush1.msra.mxu0 0.0
      %979 = vmatprep.subr.mxu0 0.0
      %980 = vmatpush1.msra.mxu0 0.0
      %981 = vmatprep.subr.mxu0 0.0
      %982 = vmatpush1.msra.mxu0 0.0
      %983 = vmatprep.subr.mxu0 0.0
      %984 = vmatpush1.msra.mxu0 0.0
      %985 = vmatprep.subr.mxu0 0.0
      %986 = vmatpush1.msra.mxu0 0.0
      %987 = vmatprep.subr.mxu0 0.0
      %988 = vmatpush1.msra.mxu0 0.0
      %989 = vmatprep.subr.mxu0 0.0
      %990 = vmatpush1.msra.mxu0 0.0
      %991 = vmatprep.subr.mxu0 0.0
      %992 = vmatpush1.msra.mxu0 0.0
      %993 = vmatprep.subr.mxu0 0.0
      %994 = vmatpush1.msra.mxu0 0.0
      %995 = vmatprep.subr.mxu0 0.0
      %996 = vmatpush1.msra.mxu0 0.0
      %997 = vmatprep.subr.mxu0 0.0
      %998 = vmatpush1.msra.mxu0 0.0
      %999 = vmatprep.subr.mxu0 0.0
      %1000 = vmatpush1.msra.mxu0 0.0
      %1001 = vmatprep.subr.mxu0 0.0
      %1002 = vmatpush1.msra.mxu0 0.0
      %1003 = vmatprep.subr.mxu0 0.0
      %1004 = vmatpush1.msra.mxu0 0.0
      %1005 = vmatprep.subr.mxu0 0.0
      %1006 = vmatpush1.msra.mxu0 0.0
      %1007 = vmatprep.subr.mxu0 0.0
      %1008 = vmatpush1.msra.mxu0 0.0
      %1009 = vmatprep.subr.mxu0 0.0
      %1010 = vmatpush1.msra.mxu0 0.0
      %1011 = vmatprep.subr.mxu0 0.0
      %1012 = vmatpush1.msra.mxu0 0.0
      %1013 = vmatprep.subr.mxu0 0.0
      %1014 = vmatpush1.msra.mxu0 0.0
      %1015 = vmatprep.subr.mxu0 0.0
      %1016 = vmatpush1.msra.mxu0 0.0
      %1017 = vmatprep.subr.mxu0 0.0
      %1018 = vmatpush1.msra.mxu0 0.0
      %1019 = vmatprep.subr.mxu0 0.0
      %1020 = vmatpush1.msra.mxu0 0.0
      %1021 = vmatprep.subr.mxu0 0.0
      %1022 = vmatpush1.msra.mxu0 0.0
      %1023 = vmatprep.subr.mxu0 0.0
      %1024 = vmatpush1.msra.mxu0 0.0
      %1025 = vmatprep.mubr.f32.mxu0 0.0
      %1026 = vmatmul.mubr.f32.gmra.mrb[0].mxu0 %v863
      %v1027 = vpop.f32.mrb[0].mxu0
      %v1028 = vadd.f32 0.0, %v1027
      %v1029 = vpop.f32.mrb[0].mxu0
      %1030 = vmatprep.mubr.f32.mxu0 0.0
      %1031 = vmatmul.mubr.f32.gmra.mrb[0].mxu0 %v866
      %v1032 = vpop.f32.mrb[0].mxu0
      %v1033 = vadd.f32 0.0, %v1032
      %v1034 = vpop.f32.mrb[0].mxu0
      %1035 = vmatprep.mubr.f32.mxu0 0.0
      %1036 = vmatmul.mubr.f32.gmra.mrb[0].mxu0 %v869
      %v1037 = vpop.f32.mrb[0].mxu0
      %v1038 = vadd.f32 0.0, %v1037
      %v1039 = vpop.f32.mrb[0].mxu0
      %1040 = vmatprep.mubr.f32.mxu0 0.0
      %1041 = vmatmul.mubr.f32.gmra.mrb[0].mxu0 %v872
      %v1042 = vpop.f32.mrb[0].mxu0
      %v1043 = vadd.f32 0.0, %v1042
      %v1044 = vpop.f32.mrb[0].mxu0
      %1045 = vmatprep.mubr.f32.mxu0 0.0
      %1046 = vmatmul.mubr.f32.gmra.mrb[0].mxu0 %v875
      %v1047 = vpop.f32.mrb[0].mxu0
      %v1048 = vadd.f32 0.0, %v1047
      %v1049 = vpop.f32.mrb[0].mxu0
      %1050 = vmatprep.mubr.f32.mxu0 0.0
      %1051 = vmatmul.mubr.f32.gmra.mrb[0].mxu0 %v878
      %v1052 = vpop.f32.mrb[0].mxu0
      %v1053 = vadd.f32 0.0, %v1052
      %v1054 = vpop.f32.mrb[0].mxu0
      %1055 = vmatprep.mubr.f32.mxu0 0.0
      %1056 = vmatmul.mubr.f32.gmra.mrb[0].mxu0 %v881
      %v1057 = vpop.f32.mrb[0].mxu0
      %v1058 = vadd.f32 0.0, %v1057
      %v1059 = vpop.f32.mrb[0].mxu0
      %1060 = vmatprep.mubr.f32.mxu0 0.0
      %1061 = vmatmul.mubr.f32.gmra.mrb[0].mxu0 %v884
      %v1062 = vpop.f32.mrb[0].mxu0
      %v1063 = vadd.f32 0.0, %v1062
      %v1064 = vpop.f32.mrb[0].mxu0
      %1065 = vmatprep.mubr.f32.mxu0 0.0
      %1066 = vmatmul.mubr.f32.gmra.mrb[0].mxu0 %v887
      %v1067 = vpop.f32.mrb[0].mxu0
      %v1068 = vadd.f32 0.0, %v1067
      %v1069 = vpop.f32.mrb[0].mxu0
      %1070 = vmatprep.mubr.f32.mxu0 0.0
      %1071 = vmatmul.mubr.f32.gmra.mrb[0].mxu0 %v890
      %v1072 = vpop.f32.mrb[0].mxu0
      %v1073 = vadd.f32 0.0, %v1072
      %v1074 = vpop.f32.mrb[0].mxu0
      %1075 = vmatprep.mubr.f32.mxu0 0.0
      %1076 = vmatmul.mubr.f32.gmra.mrb[0].mxu0 %v893
      %v1077 = vpop.f32.mrb[0].mxu0
      %v1078 = vadd.f32 0.0, %v1077
      %v1079 = vpop.f32.mrb[0].mxu0
      %1080 = vmatprep.mubr.f32.mxu0 0.0
      %1081 = vmatmul.mubr.f32.gmra.mrb[0].mxu0 %v896
      %v1082 = vpop.f32.mrb[0].mxu0
      %v1083 = vadd.f32 0.0, %v1082
      %v1084 = vpop.f32.mrb[0].mxu0
      %1085 = vmatprep.mubr.f32.mxu0 0.0
      %1086 = vmatmul.mubr.f32.gmra.mrb[0].mxu0 %v899
      %v1087 = vpop.f32.mrb[0].mxu0
      %v1088 = vadd.f32 0.0, %v1087
      %v1089 = vpop.f32.mrb[0].mxu0
      %1090 = vmatprep.mubr.f32.mxu0 0.0
      %1091 = vmatmul.mubr.f32.gmra.mrb[0].mxu0 %v902
      %v1092 = vpop.f32.mrb[0].mxu0
      %v1093 = vadd.f32 0.0, %v1092
      %v1094 = vpop.f32.mrb[0].mxu0
      %1095 = vmatprep.mubr.f32.mxu0 0.0
      %1096 = vmatmul.mubr.f32.gmra.mrb[0].mxu0 %v905
      %v1097 = vpop.f32.mrb[0].mxu0
      %v1098 = vadd.f32 0.0, %v1097
      %v1099 = vpop.f32.mrb[0].mxu0
      %1100 = vmatprep.mubr.f32.mxu0 0.0
      %1101 = vmatmul.mubr.f32.gmra.mrb[0].mxu0 %v908
      %v1102 = vpop.f32.mrb[0].mxu0
      %v1103 = vadd.f32 0.0, %v1102
      %v1104 = vpop.f32.mrb[0].mxu0
      %1105 = vmatprep.mubr.f32.mxu0 0.0
      %1106 = vmatmul.mubr.f32.gmra.mrb[0].mxu0 %v911
      %v1107 = vpop.f32.mrb[0].mxu0
      %v1108 = vadd.f32 0.0, %v1107
      %v1109 = vpop.f32.mrb[0].mxu0
      %1110 = vmatprep.mubr.f32.mxu0 0.0
      %1111 = vmatmul.mubr.f32.gmra.mrb[0].mxu0 %v914
      %v1112 = vpop.f32.mrb[0].mxu0
      %v1113 = vadd.f32 0.0, %v1112
      %v1114 = vpop.f32.mrb[0].mxu0
      %1115 = vmatprep.mubr.f32.mxu0 0.0
      %1116 = vmatmul.mubr.f32.gmra.mrb[0].mxu0 %v917
      %v1117 = vpop.f32.mrb[0].mxu0
      %v1118 = vadd.f32 0.0, %v1117
      %v1119 = vpop.f32.mrb[0].mxu0
      %1120 = vmatprep.mubr.f32.mxu0 0.0
      %1121 = vmatmul.mubr.f32.gmra.mrb[0].mxu0 %v920
      %v1122 = vpop.f32.mrb[0].mxu0
      %v1123 = vadd.f32 0.0, %v1122
      %v1124 = vpop.f32.mrb[0].mxu0
      %1125 = vmatprep.mubr.f32.mxu0 0.0
      %1126 = vmatmul.mubr.f32.gmra.mrb[0].mxu0 %v923
      %v1127 = vpop.f32.mrb[0].mxu0
      %v1128 = vadd.f32 0.0, %v1127
      %v1129 = vpop.f32.mrb[0].mxu0
      %1130 = vmatprep.mubr.f32.mxu0 0.0
      %1131 = vmatmul.mubr.f32.gmra.mrb[0].mxu0 %v926
      %v1132 = vpop.f32.mrb[0].mxu0
      %v1133 = vadd.f32 0.0, %v1132
      %v1134 = vpop.f32.mrb[0].mxu0
      %1135 = vmatprep.mubr.f32.mxu0 0.0
      %1136 = vmatmul.mubr.f32.gmra.mrb[0].mxu0 %v929
      %v1137 = vpop.f32.mrb[0].mxu0
      %v1138 = vadd.f32 0.0, %v1137
      %v1139 = vpop.f32.mrb[0].mxu0
      %1140 = vmatprep.mubr.f32.mxu0 0.0
      %1141 = vmatmul.mubr.f32.gmra.mrb[0].mxu0 %v932
      %v1142 = vpop.f32.mrb[0].mxu0
      %v1143 = vadd.f32 0.0, %v1142
      %v1144 = vpop.f32.mrb[0].mxu0
      %1145 = vmatprep.mubr.f32.mxu0 0.0
      %1146 = vmatmul.mubr.f32.gmra.mrb[0].mxu0 %v935
      %v1147 = vpop.f32.mrb[0].mxu0
      %v1148 = vadd.f32 0.0, %v1147
      %v1149 = vpop.f32.mrb[0].mxu0
      %1150 = vmatprep.mubr.f32.mxu0 0.0
      %1151 = vmatmul.mubr.f32.gmra.mrb[0].mxu0 %v938
      %v1152 = vpop.f32.mrb[0].mxu0
      %v1153 = vadd.f32 0.0, %v1152
      %v1154 = vpop.f32.mrb[0].mxu0
      %1155 = vmatprep.mubr.f32.mxu0 0.0
      %1156 = vmatmul.mubr.f32.gmra.mrb[0].mxu0 %v941
      %v1157 = vpop.f32.mrb[0].mxu0
      %v1158 = vadd.f32 0.0, %v1157
      %v1159 = vpop.f32.mrb[0].mxu0
      %1160 = vmatprep.mubr.f32.mxu0 0.0
      %1161 = vmatmul.mubr.f32.gmra.mrb[0].mxu0 %v944
      %v1162 = vpop.f32.mrb[0].mxu0
      %v1163 = vadd.f32 0.0, %v1162
      %v1164 = vpop.f32.mrb[0].mxu0
      %1165 = vmatprep.mubr.f32.mxu0 0.0
      %1166 = vmatmul.mubr.f32.gmra.mrb[0].mxu0 %v947
      %v1167 = vpop.f32.mrb[0].mxu0
      %v1168 = vadd.f32 0.0, %v1167
      %v1169 = vpop.f32.mrb[0].mxu0
      %1170 = vmatprep.mubr.f32.mxu0 0.0
      %1171 = vmatmul.mubr.f32.gmra.mrb[0].mxu0 %v950
      %v1172 = vpop.f32.mrb[0].mxu0
      %v1173 = vadd.f32 0.0, %v1172
      %v1174 = vpop.f32.mrb[0].mxu0
      %1175 = vmatprep.mubr.f32.mxu0 0.0
      %1176 = vmatmul.mubr.f32.gmra.mrb[0].mxu0 %v953
      %v1177 = vpop.f32.mrb[0].mxu0
      %v1178 = vadd.f32 0.0, %v1177
      %v1179 = vpop.f32.mrb[0].mxu0
      %1180 = vmatprep.mubr.f32.mxu0 0.0
      %1181 = vmatmul.mubr.f32.gmra.mrb[0].mxu0 %v956
      %v1182 = vpop.f32.mrb[0].mxu0
      %v1183 = vadd.f32 0.0, %v1182
      %v1184 = vpop.f32.mrb[0].mxu0
      %1185 = vdwg.mxu0
      %v1186 = vadd.f32 %v796, %v1028
      %v1187 = vadd.f32 %v797, %v1033
      %v1188 = vadd.f32 %v798, %v1038
      %v1189 = vadd.f32 %v799, %v1043
      %v1190 = vadd.f32 %v800, %v1048
      %v1191 = vadd.f32 %v801, %v1053
      %v1192 = vadd.f32 %v802, %v1058
      %v1193 = vadd.f32 %v803, %v1063
      %v1194 = vadd.f32 %v804, %v1068
      %v1195 = vadd.f32 %v805, %v1073
      %v1196 = vadd.f32 %v806, %v1078
      %v1197 = vadd.f32 %v807, %v1083
      %v1198 = vadd.f32 %v808, %v1088
      %v1199 = vadd.f32 %v809, %v1093
      %v1200 = vadd.f32 %v810, %v1098
      %v1201 = vadd.f32 %v811, %v1103
      %v1202 = vadd.f32 %v812, %v1108
      %v1203 = vadd.f32 %v813, %v1113
      %v1204 = vadd.f32 %v814, %v1118
      %v1205 = vadd.f32 %v815, %v1123
      %v1206 = vadd.f32 %v816, %v1128
      %v1207 = vadd.f32 %v817, %v1133
      %v1208 = vadd.f32 %v818, %v1138
      %v1209 = vadd.f32 %v819, %v1143
      %v1210 = vadd.f32 %v820, %v1148
      %v1211 = vadd.f32 %v821, %v1153
      %v1212 = vadd.f32 %v822, %v1158
      %v1213 = vadd.f32 %v823, %v1163
      %v1214 = vadd.f32 %v824, %v1168
      %v1215 = vadd.f32 %v825, %v1173
      %v1216 = vadd.f32 %v826, %v1178
      %v1217 = vadd.f32 %v827, %v1183
      %v1218 = vld [vmem:[#allocation2 + $0x2] sm:$0xff]
      %v1219 = vld [vmem:[#allocation2 + $0xa] sm:$0xff]
      %v1220 = vld [vmem:[#allocation2 + $0x1a] sm:$0xff]
      %v1221 = vld [vmem:[#allocation2 + $0x22] sm:$0xff]
      %v1222 = vld [vmem:[#allocation2 + $0x32] sm:$0xff]
      %v1223 = vld [vmem:[#allocation2 + $0x3a] sm:$0xff]
      %v1224 = vld [vmem:[#allocation2 + $0x4a] sm:$0xff]
      %v1225 = vld [vmem:[#allocation2 + $0x52] sm:$0xff]
      %v1226 = vld [vmem:[#allocation2 + $0x62] sm:$0xff]
      %v1227 = vld [vmem:[#allocation2 + $0x6a] sm:$0xff]
      %v1228 = vld [vmem:[#allocation2 + $0x7a] sm:$0xff]
      %v1229 = vld [vmem:[#allocation2 + $0x82] sm:$0xff]
      %v1230 = vld [vmem:[#allocation2 + $0x92] sm:$0xff]
      %v1231 = vld [vmem:[#allocation2 + $0x9a] sm:$0xff]
      %v1232 = vld [vmem:[#allocation2 + $0xaa] sm:$0xff]
      %v1233 = vld [vmem:[#allocation2 + $0xb2] sm:$0xff]
      %v1234 = vld [vmem:[#allocation2 + $0xc2] sm:$0xff]
      %v1235 = vld [vmem:[#allocation2 + $0xca] sm:$0xff]
      %v1236 = vld [vmem:[#allocation2 + $0xda] sm:$0xff]
      %v1237 = vld [vmem:[#allocation2 + $0xe2] sm:$0xff]
      %v1238 = vld [vmem:[#allocation2 + $0xf2] sm:$0xff]
      %v1239 = vld [vmem:[#allocation2 + $0xfa] sm:$0xff]
      %v1240 = vld [vmem:[#allocation2 + $0x10a] sm:$0xff]
      %v1241 = vld [vmem:[#allocation2 + $0x112] sm:$0xff]
      %v1242 = vld [vmem:[#allocation2 + $0x122] sm:$0xff]
      %v1243 = vld [vmem:[#allocation2 + $0x12a] sm:$0xff]
      %v1244 = vld [vmem:[#allocation2 + $0x13a] sm:$0xff]
      %v1245 = vld [vmem:[#allocation2 + $0x142] sm:$0xff]
      %v1246 = vld [vmem:[#allocation2 + $0x152] sm:$0xff]
      %v1247 = vld [vmem:[#allocation2 + $0x15a] sm:$0xff]
      %v1248 = vld [vmem:[#allocation2 + $0x16a] sm:$0xff]
      %v1249 = vld [vmem:[#allocation2 + $0x172] sm:$0xff]
      %s1250 = scalar_lea.vmem %s2, 8
      %v1251 = vld [vmem:[%s1250] sm:$0xf]
      %v1253 = vsel %vm368, %v1218, 0
      %v1256 = vsel %vm368, %v1219, 0
      %v1259 = vsel %vm368, %v1220, 0
      %v1262 = vsel %vm368, %v1221, 0
      %v1265 = vsel %vm368, %v1222, 0
      %v1268 = vsel %vm368, %v1223, 0
      %v1271 = vsel %vm368, %v1224, 0
      %v1274 = vsel %vm368, %v1225, 0
      %v1277 = vsel %vm368, %v1226, 0
      %v1280 = vsel %vm368, %v1227, 0
      %v1283 = vsel %vm368, %v1228, 0
      %v1286 = vsel %vm368, %v1229, 0
      %v1289 = vsel %vm368, %v1230, 0
      %v1292 = vsel %vm368, %v1231, 0
      %v1295 = vsel %vm368, %v1232, 0
      %v1298 = vsel %vm368, %v1233, 0
      %v1301 = vsel %vm368, %v1234, 0
      %v1304 = vsel %vm368, %v1235, 0
      %v1307 = vsel %vm368, %v1236, 0
      %v1310 = vsel %vm368, %v1237, 0
      %v1313 = vsel %vm368, %v1238, 0
      %v1316 = vsel %vm368, %v1239, 0
      %v1319 = vsel %vm368, %v1240, 0
      %v1322 = vsel %vm368, %v1241, 0
      %v1325 = vsel %vm368, %v1242, 0
      %v1328 = vsel %vm368, %v1243, 0
      %v1331 = vsel %vm368, %v1244, 0
      %v1334 = vsel %vm368, %v1245, 0
      %v1337 = vsel %vm368, %v1246, 0
      %v1340 = vsel %vm368, %v1247, 0
      %v1343 = vsel %vm368, %v1248, 0
      %v1346 = vsel %vm368, %v1249, 0
      %v1349 = vsel %vm567, %v1251, 0
      %1351 = vmatprep.subr.mxu0 0.0
      %1352 = vmatpush1.msra.mxu0 %v1349
      %1353 = vmatprep.subr.mxu0 0.0
      %1354 = vmatpush1.msra.mxu0 0.0
      %1355 = vmatprep.subr.mxu0 0.0
      %1356 = vmatpush1.msra.mxu0 0.0
      %1357 = vmatprep.subr.mxu0 0.0
      %1358 = vmatpush1.msra.mxu0 0.0
      %1359 = vmatprep.subr.mxu0 0.0
      %1360 = vmatpush1.msra.mxu0 0.0
      %1361 = vmatprep.subr.mxu0 0.0
      %1362 = vmatpush1.msra.mxu0 0.0
      %1363 = vmatprep.subr.mxu0 0.0
      %1364 = vmatpush1.msra.mxu0 0.0
      %1365 = vmatprep.subr.mxu0 0.0
      %1366 = vmatpush1.msra.mxu0 0.0
      %1367 = vmatprep.subr.mxu0 0.0
      %1368 = vmatpush1.msra.mxu0 0.0
      %1369 = vmatprep.subr.mxu0 0.0
      %1370 = vmatpush1.msra.mxu0 0.0
      %1371 = vmatprep.subr.mxu0 0.0
      %1372 = vmatpush1.msra.mxu0 0.0
      %1373 = vmatprep.subr.mxu0 0.0
      %1374 = vmatpush1.msra.mxu0 0.0
      %1375 = vmatprep.subr.mxu0 0.0
      %1376 = vmatpush1.msra.mxu0 0.0
      %1377 = vmatprep.subr.mxu0 0.0
      %1378 = vmatpush1.msra.mxu0 0.0
      %1379 = vmatprep.subr.mxu0 0.0
      %1380 = vmatpush1.msra.mxu0 0.0
      %1381 = vmatprep.subr.mxu0 0.0
      %1382 = vmatpush1.msra.mxu0 0.0
      %1383 = vmatprep.subr.mxu0 0.0
      %1384 = vmatpush1.msra.mxu0 0.0
      %1385 = vmatprep.subr.mxu0 0.0
      %1386 = vmatpush1.msra.mxu0 0.0
      %1387 = vmatprep.subr.mxu0 0.0
      %1388 = vmatpush1.msra.mxu0 0.0
      %1389 = vmatprep.subr.mxu0 0.0
      %1390 = vmatpush1.msra.mxu0 0.0
      %1391 = vmatprep.subr.mxu0 0.0
      %1392 = vmatpush1.msra.mxu0 0.0
      %1393 = vmatprep.subr.mxu0 0.0
      %1394 = vmatpush1.msra.mxu0 0.0
      %1395 = vmatprep.subr.mxu0 0.0
      %1396 = vmatpush1.msra.mxu0 0.0
      %1397 = vmatprep.subr.mxu0 0.0
      %1398 = vmatpush1.msra.mxu0 0.0
      %1399 = vmatprep.subr.mxu0 0.0
      %1400 = vmatpush1.msra.mxu0 0.0
      %1401 = vmatprep.subr.mxu0 0.0
      %1402 = vmatpush1.msra.mxu0 0.0
      %1403 = vmatprep.subr.mxu0 0.0
      %1404 = vmatpush1.msra.mxu0 0.0
      %1405 = vmatprep.subr.mxu0 0.0
      %1406 = vmatpush1.msra.mxu0 0.0
      %1407 = vmatprep.subr.mxu0 0.0
      %1408 = vmatpush1.msra.mxu0 0.0
      %1409 = vmatprep.subr.mxu0 0.0
      %1410 = vmatpush1.msra.mxu0 0.0
      %1411 = vmatprep.subr.mxu0 0.0
      %1412 = vmatpush1.msra.mxu0 0.0
      %1413 = vmatprep.subr.mxu0 0.0
      %1414 = vmatpush1.msra.mxu0 0.0
      %1415 = vmatprep.mubr.f32.mxu0 0.0
      %1416 = vmatmul.mubr.f32.gmra.mrb[0].mxu0 %v1253
      %v1417 = vpop.f32.mrb[0].mxu0
      %v1418 = vadd.f32 0.0, %v1417
      %v1419 = vpop.f32.mrb[0].mxu0
      %1420 = vmatprep.mubr.f32.mxu0 0.0
      %1421 = vmatmul.mubr.f32.gmra.mrb[0].mxu0 %v1256
      %v1422 = vpop.f32.mrb[0].mxu0
      %v1423 = vadd.f32 0.0, %v1422
      %v1424 = vpop.f32.mrb[0].mxu0
      %1425 = vmatprep.mubr.f32.mxu0 0.0
      %1426 = vmatmul.mubr.f32.gmra.mrb[0].mxu0 %v1259
      %v1427 = vpop.f32.mrb[0].mxu0
      %v1428 = vadd.f32 0.0, %v1427
      %v1429 = vpop.f32.mrb[0].mxu0
      %1430 = vmatprep.mubr.f32.mxu0 0.0
      %1431 = vmatmul.mubr.f32.gmra.mrb[0].mxu0 %v1262
      %v1432 = vpop.f32.mrb[0].mxu0
      %v1433 = vadd.f32 0.0, %v1432
      %v1434 = vpop.f32.mrb[0].mxu0
      %1435 = vmatprep.mubr.f32.mxu0 0.0
      %1436 = vmatmul.mubr.f32.gmra.mrb[0].mxu0 %v1265
      %v1437 = vpop.f32.mrb[0].mxu0
      %v1438 = vadd.f32 0.0, %v1437
      %v1439 = vpop.f32.mrb[0].mxu0
      %1440 = vmatprep.mubr.f32.mxu0 0.0
      %1441 = vmatmul.mubr.f32.gmra.mrb[0].mxu0 %v1268
      %v1442 = vpop.f32.mrb[0].mxu0
      %v1443 = vadd.f32 0.0, %v1442
      %v1444 = vpop.f32.mrb[0].mxu0
      %1445 = vmatprep.mubr.f32.mxu0 0.0
      %1446 = vmatmul.mubr.f32.gmra.mrb[0].mxu0 %v1271
      %v1447 = vpop.f32.mrb[0].mxu0
      %v1448 = vadd.f32 0.0, %v1447
      %v1449 = vpop.f32.mrb[0].mxu0
      %1450 = vmatprep.mubr.f32.mxu0 0.0
      %1451 = vmatmul.mubr.f32.gmra.mrb[0].mxu0 %v1274
      %v1452 = vpop.f32.mrb[0].mxu0
      %v1453 = vadd.f32 0.0, %v1452
      %v1454 = vpop.f32.mrb[0].mxu0
      %1455 = vmatprep.mubr.f32.mxu0 0.0
      %1456 = vmatmul.mubr.f32.gmra.mrb[0].mxu0 %v1277
      %v1457 = vpop.f32.mrb[0].mxu0
      %v1458 = vadd.f32 0.0, %v1457
      %v1459 = vpop.f32.mrb[0].mxu0
      %1460 = vmatprep.mubr.f32.mxu0 0.0
      %1461 = vmatmul.mubr.f32.gmra.mrb[0].mxu0 %v1280
      %v1462 = vpop.f32.mrb[0].mxu0
      %v1463 = vadd.f32 0.0, %v1462
      %v1464 = vpop.f32.mrb[0].mxu0
      %1465 = vmatprep.mubr.f32.mxu0 0.0
      %1466 = vmatmul.mubr.f32.gmra.mrb[0].mxu0 %v1283
      %v1467 = vpop.f32.mrb[0].mxu0
      %v1468 = vadd.f32 0.0, %v1467
      %v1469 = vpop.f32.mrb[0].mxu0
      %1470 = vmatprep.mubr.f32.mxu0 0.0
      %1471 = vmatmul.mubr.f32.gmra.mrb[0].mxu0 %v1286
      %v1472 = vpop.f32.mrb[0].mxu0
      %v1473 = vadd.f32 0.0, %v1472
      %v1474 = vpop.f32.mrb[0].mxu0
      %1475 = vmatprep.mubr.f32.mxu0 0.0
      %1476 = vmatmul.mubr.f32.gmra.mrb[0].mxu0 %v1289
      %v1477 = vpop.f32.mrb[0].mxu0
      %v1478 = vadd.f32 0.0, %v1477
      %v1479 = vpop.f32.mrb[0].mxu0
      %1480 = vmatprep.mubr.f32.mxu0 0.0
      %1481 = vmatmul.mubr.f32.gmra.mrb[0].mxu0 %v1292
      %v1482 = vpop.f32.mrb[0].mxu0
      %v1483 = vadd.f32 0.0, %v1482
      %v1484 = vpop.f32.mrb[0].mxu0
      %1485 = vmatprep.mubr.f32.mxu0 0.0
      %1486 = vmatmul.mubr.f32.gmra.mrb[0].mxu0 %v1295
      %v1487 = vpop.f32.mrb[0].mxu0
      %v1488 = vadd.f32 0.0, %v1487
      %v1489 = vpop.f32.mrb[0].mxu0
      %1490 = vmatprep.mubr.f32.mxu0 0.0
      %1491 = vmatmul.mubr.f32.gmra.mrb[0].mxu0 %v1298
      %v1492 = vpop.f32.mrb[0].mxu0
      %v1493 = vadd.f32 0.0, %v1492
      %v1494 = vpop.f32.mrb[0].mxu0
      %1495 = vmatprep.mubr.f32.mxu0 0.0
      %1496 = vmatmul.mubr.f32.gmra.mrb[0].mxu0 %v1301
      %v1497 = vpop.f32.mrb[0].mxu0
      %v1498 = vadd.f32 0.0, %v1497
      %v1499 = vpop.f32.mrb[0].mxu0
      %1500 = vmatprep.mubr.f32.mxu0 0.0
      %1501 = vmatmul.mubr.f32.gmra.mrb[0].mxu0 %v1304
      %v1502 = vpop.f32.mrb[0].mxu0
      %v1503 = vadd.f32 0.0, %v1502
      %v1504 = vpop.f32.mrb[0].mxu0
      %1505 = vmatprep.mubr.f32.mxu0 0.0
      %1506 = vmatmul.mubr.f32.gmra.mrb[0].mxu0 %v1307
      %v1507 = vpop.f32.mrb[0].mxu0
      %v1508 = vadd.f32 0.0, %v1507
      %v1509 = vpop.f32.mrb[0].mxu0
      %1510 = vmatprep.mubr.f32.mxu0 0.0
      %1511 = vmatmul.mubr.f32.gmra.mrb[0].mxu0 %v1310
      %v1512 = vpop.f32.mrb[0].mxu0
      %v1513 = vadd.f32 0.0, %v1512
      %v1514 = vpop.f32.mrb[0].mxu0
      %1515 = vmatprep.mubr.f32.mxu0 0.0
      %1516 = vmatmul.mubr.f32.gmra.mrb[0].mxu0 %v1313
      %v1517 = vpop.f32.mrb[0].mxu0
      %v1518 = vadd.f32 0.0, %v1517
      %v1519 = vpop.f32.mrb[0].mxu0
      %1520 = vmatprep.mubr.f32.mxu0 0.0
      %1521 = vmatmul.mubr.f32.gmra.mrb[0].mxu0 %v1316
      %v1522 = vpop.f32.mrb[0].mxu0
      %v1523 = vadd.f32 0.0, %v1522
      %v1524 = vpop.f32.mrb[0].mxu0
      %1525 = vmatprep.mubr.f32.mxu0 0.0
      %1526 = vmatmul.mubr.f32.gmra.mrb[0].mxu0 %v1319
      %v1527 = vpop.f32.mrb[0].mxu0
      %v1528 = vadd.f32 0.0, %v1527
      %v1529 = vpop.f32.mrb[0].mxu0
      %1530 = vmatprep.mubr.f32.mxu0 0.0
      %1531 = vmatmul.mubr.f32.gmra.mrb[0].mxu0 %v1322
      %v1532 = vpop.f32.mrb[0].mxu0
      %v1533 = vadd.f32 0.0, %v1532
      %v1534 = vpop.f32.mrb[0].mxu0
      %1535 = vmatprep.mubr.f32.mxu0 0.0
      %1536 = vmatmul.mubr.f32.gmra.mrb[0].mxu0 %v1325
      %v1537 = vpop.f32.mrb[0].mxu0
      %v1538 = vadd.f32 0.0, %v1537
      %v1539 = vpop.f32.mrb[0].mxu0
      %1540 = vmatprep.mubr.f32.mxu0 0.0
      %1541 = vmatmul.mubr.f32.gmra.mrb[0].mxu0 %v1328
      %v1542 = vpop.f32.mrb[0].mxu0
      %v1543 = vadd.f32 0.0, %v1542
      %v1544 = vpop.f32.mrb[0].mxu0
      %1545 = vmatprep.mubr.f32.mxu0 0.0
      %1546 = vmatmul.mubr.f32.gmra.mrb[0].mxu0 %v1331
      %v1547 = vpop.f32.mrb[0].mxu0
      %v1548 = vadd.f32 0.0, %v1547
      %v1549 = vpop.f32.mrb[0].mxu0
      %1550 = vmatprep.mubr.f32.mxu0 0.0
      %1551 = vmatmul.mubr.f32.gmra.mrb[0].mxu0 %v1334
      %v1552 = vpop.f32.mrb[0].mxu0
      %v1553 = vadd.f32 0.0, %v1552
      %v1554 = vpop.f32.mrb[0].mxu0
      %1555 = vmatprep.mubr.f32.mxu0 0.0
      %1556 = vmatmul.mubr.f32.gmra.mrb[0].mxu0 %v1337
      %v1557 = vpop.f32.mrb[0].mxu0
      %v1558 = vadd.f32 0.0, %v1557
      %v1559 = vpop.f32.mrb[0].mxu0
      %1560 = vmatprep.mubr.f32.mxu0 0.0
      %1561 = vmatmul.mubr.f32.gmra.mrb[0].mxu0 %v1340
      %v1562 = vpop.f32.mrb[0].mxu0
      %v1563 = vadd.f32 0.0, %v1562
      %v1564 = vpop.f32.mrb[0].mxu0
      %1565 = vmatprep.mubr.f32.mxu0 0.0
      %1566 = vmatmul.mubr.f32.gmra.mrb[0].mxu0 %v1343
      %v1567 = vpop.f32.mrb[0].mxu0
      %v1568 = vadd.f32 0.0, %v1567
      %v1569 = vpop.f32.mrb[0].mxu0
      %1570 = vmatprep.mubr.f32.mxu0 0.0
      %1571 = vmatmul.mubr.f32.gmra.mrb[0].mxu0 %v1346
      %v1572 = vpop.f32.mrb[0].mxu0
      %v1573 = vadd.f32 0.0, %v1572
      %v1574 = vpop.f32.mrb[0].mxu0
      %1575 = vdwg.mxu0
      %v1576 = vadd.f32 %v1186, %v1418
      %v1577 = vadd.f32 %v1187, %v1423
      %v1578 = vadd.f32 %v1188, %v1428
      %v1579 = vadd.f32 %v1189, %v1433
      %v1580 = vadd.f32 %v1190, %v1438
      %v1581 = vadd.f32 %v1191, %v1443
      %v1582 = vadd.f32 %v1192, %v1448
      %v1583 = vadd.f32 %v1193, %v1453
      %v1584 = vadd.f32 %v1194, %v1458
      %v1585 = vadd.f32 %v1195, %v1463
      %v1586 = vadd.f32 %v1196, %v1468
      %v1587 = vadd.f32 %v1197, %v1473
      %v1588 = vadd.f32 %v1198, %v1478
      %v1589 = vadd.f32 %v1199, %v1483
      %v1590 = vadd.f32 %v1200, %v1488
      %v1591 = vadd.f32 %v1201, %v1493
      %v1592 = vadd.f32 %v1202, %v1498
      %v1593 = vadd.f32 %v1203, %v1503
      %v1594 = vadd.f32 %v1204, %v1508
      %v1595 = vadd.f32 %v1205, %v1513
      %v1596 = vadd.f32 %v1206, %v1518
      %v1597 = vadd.f32 %v1207, %v1523
      %v1598 = vadd.f32 %v1208, %v1528
      %v1599 = vadd.f32 %v1209, %v1533
      %v1600 = vadd.f32 %v1210, %v1538
      %v1601 = vadd.f32 %v1211, %v1543
      %v1602 = vadd.f32 %v1212, %v1548
      %v1603 = vadd.f32 %v1213, %v1553
      %v1604 = vadd.f32 %v1214, %v1558
      %v1605 = vadd.f32 %v1215, %v1563
      %v1606 = vadd.f32 %v1216, %v1568
      %v1607 = vadd.f32 %v1217, %v1573
      %s1608 = scalar_lea.vmem [#allocation2], 24
      %v1609 = vld [vmem:[%s1608] sm:$0xff]
      %v1610 = vld [vmem:[%s1608 + $0x8] sm:$0xff]
      %v1611 = vld [vmem:[%s1608 + $0x18] sm:$0xff]
      %v1612 = vld [vmem:[%s1608 + $0x20] sm:$0xff]
      %v1613 = vld [vmem:[%s1608 + $0x30] sm:$0xff]
      %v1614 = vld [vmem:[%s1608 + $0x38] sm:$0xff]
      %v1615 = vld [vmem:[%s1608 + $0x48] sm:$0xff]
      %v1616 = vld [vmem:[%s1608 + $0x50] sm:$0xff]
      %v1617 = vld [vmem:[%s1608 + $0x60] sm:$0xff]
      %v1618 = vld [vmem:[%s1608 + $0x68] sm:$0xff]
      %v1619 = vld [vmem:[%s1608 + $0x78] sm:$0xff]
      %v1620 = vld [vmem:[%s1608 + $0x80] sm:$0xff]
      %v1621 = vld [vmem:[%s1608 + $0x90] sm:$0xff]
      %v1622 = vld [vmem:[%s1608 + $0x98] sm:$0xff]
      %v1623 = vld [vmem:[%s1608 + $0xa8] sm:$0xff]
      %v1624 = vld [vmem:[%s1608 + $0xb0] sm:$0xff]
      %v1625 = vld [vmem:[%s1608 + $0xc0] sm:$0xff]
      %v1626 = vld [vmem:[%s1608 + $0xc8] sm:$0xff]
      %v1627 = vld [vmem:[%s1608 + $0xd8] sm:$0xff]
      %v1628 = vld [vmem:[%s1608 + $0xe0] sm:$0xff]
      %v1629 = vld [vmem:[%s1608 + $0xf0] sm:$0xff]
      %v1630 = vld [vmem:[%s1608 + $0xf8] sm:$0xff]
      %v1631 = vld [vmem:[%s1608 + $0x108] sm:$0xff]
      %v1632 = vld [vmem:[%s1608 + $0x110] sm:$0xff]
      %v1633 = vld [vmem:[%s1608 + $0x120] sm:$0xff]
      %v1634 = vld [vmem:[%s1608 + $0x128] sm:$0xff]
      %v1635 = vld [vmem:[%s1608 + $0x138] sm:$0xff]
      %v1636 = vld [vmem:[%s1608 + $0x140] sm:$0xff]
      %v1637 = vld [vmem:[%s1608 + $0x150] sm:$0xff]
      %v1638 = vld [vmem:[%s1608 + $0x158] sm:$0xff]
      %v1639 = vld [vmem:[%s1608 + $0x168] sm:$0xff]
      %v1640 = vld [vmem:[%s1608 + $0x170] sm:$0xff]
      %s1641 = scalar_lea.vmem %s2, 12
      %v1642 = vld [vmem:[%s1641] sm:$0xf]
      %v1644 = vsel %vm368, %v1609, 0
      %v1647 = vsel %vm368, %v1610, 0
      %v1650 = vsel %vm368, %v1611, 0
      %v1653 = vsel %vm368, %v1612, 0
      %v1656 = vsel %vm368, %v1613, 0
      %v1659 = vsel %vm368, %v1614, 0
      %v1662 = vsel %vm368, %v1615, 0
      %v1665 = vsel %vm368, %v1616, 0
      %v1668 = vsel %vm368, %v1617, 0
      %v1671 = vsel %vm368, %v1618, 0
      %v1674 = vsel %vm368, %v1619, 0
      %v1677 = vsel %vm368, %v1620, 0
      %v1680 = vsel %vm368, %v1621, 0
      %v1683 = vsel %vm368, %v1622, 0
      %v1686 = vsel %vm368, %v1623, 0
      %v1689 = vsel %vm368, %v1624, 0
      %v1692 = vsel %vm368, %v1625, 0
      %v1695 = vsel %vm368, %v1626, 0
      %v1698 = vsel %vm368, %v1627, 0
      %v1701 = vsel %vm368, %v1628, 0
      %v1704 = vsel %vm368, %v1629, 0
      %v1707 = vsel %vm368, %v1630, 0
      %v1710 = vsel %vm368, %v1631, 0
      %v1713 = vsel %vm368, %v1632, 0
      %v1716 = vsel %vm368, %v1633, 0
      %v1719 = vsel %vm368, %v1634, 0
      %v1722 = vsel %vm368, %v1635, 0
      %v1725 = vsel %vm368, %v1636, 0
      %v1728 = vsel %vm368, %v1637, 0
      %v1731 = vsel %vm368, %v1638, 0
      %v1734 = vsel %vm368, %v1639, 0
      %v1737 = vsel %vm368, %v1640, 0
      %v1740 = vsel %vm567, %v1642, 0
      %1742 = vmatprep.subr.mxu0 0.0
      %1743 = vmatpush1.msra.mxu0 %v1740
      %1744 = vmatprep.subr.mxu0 0.0
      %1745 = vmatpush1.msra.mxu0 0.0
      %1746 = vmatprep.subr.mxu0 0.0
      %1747 = vmatpush1.msra.mxu0 0.0
      %1748 = vmatprep.subr.mxu0 0.0
      %1749 = vmatpush1.msra.mxu0 0.0
      %1750 = vmatprep.subr.mxu0 0.0
      %1751 = vmatpush1.msra.mxu0 0.0
      %1752 = vmatprep.subr.mxu0 0.0
      %1753 = vmatpush1.msra.mxu0 0.0
      %1754 = vmatprep.subr.mxu0 0.0
      %1755 = vmatpush1.msra.mxu0 0.0
      %1756 = vmatprep.subr.mxu0 0.0
      %1757 = vmatpush1.msra.mxu0 0.0
      %1758 = vmatprep.subr.mxu0 0.0
      %1759 = vmatpush1.msra.mxu0 0.0
      %1760 = vmatprep.subr.mxu0 0.0
      %1761 = vmatpush1.msra.mxu0 0.0
      %1762 = vmatprep.subr.mxu0 0.0
      %1763 = vmatpush1.msra.mxu0 0.0
      %1764 = vmatprep.subr.mxu0 0.0
      %1765 = vmatpush1.msra.mxu0 0.0
      %1766 = vmatprep.subr.mxu0 0.0
      %1767 = vmatpush1.msra.mxu0 0.0
      %1768 = vmatprep.subr.mxu0 0.0
      %1769 = vmatpush1.msra.mxu0 0.0
      %1770 = vmatprep.subr.mxu0 0.0
      %1771 = vmatpush1.msra.mxu0 0.0
      %1772 = vmatprep.subr.mxu0 0.0
      %1773 = vmatpush1.msra.mxu0 0.0
      %1774 = vmatprep.subr.mxu0 0.0
      %1775 = vmatpush1.msra.mxu0 0.0
      %1776 = vmatprep.subr.mxu0 0.0
      %1777 = vmatpush1.msra.mxu0 0.0
      %1778 = vmatprep.subr.mxu0 0.0
      %1779 = vmatpush1.msra.mxu0 0.0
      %1780 = vmatprep.subr.mxu0 0.0
      %1781 = vmatpush1.msra.mxu0 0.0
      %1782 = vmatprep.subr.mxu0 0.0
      %1783 = vmatpush1.msra.mxu0 0.0
      %1784 = vmatprep.subr.mxu0 0.0
      %1785 = vmatpush1.msra.mxu0 0.0
      %1786 = vmatprep.subr.mxu0 0.0
      %1787 = vmatpush1.msra.mxu0 0.0
      %1788 = vmatprep.subr.mxu0 0.0
      %1789 = vmatpush1.msra.mxu0 0.0
      %1790 = vmatprep.subr.mxu0 0.0
      %1791 = vmatpush1.msra.mxu0 0.0
      %1792 = vmatprep.subr.mxu0 0.0
      %1793 = vmatpush1.msra.mxu0 0.0
      %1794 = vmatprep.subr.mxu0 0.0
      %1795 = vmatpush1.msra.mxu0 0.0
      %1796 = vmatprep.subr.mxu0 0.0
      %1797 = vmatpush1.msra.mxu0 0.0
      %1798 = vmatprep.subr.mxu0 0.0
      %1799 = vmatpush1.msra.mxu0 0.0
      %1800 = vmatprep.subr.mxu0 0.0
      %1801 = vmatpush1.msra.mxu0 0.0
      %1802 = vmatprep.subr.mxu0 0.0
      %1803 = vmatpush1.msra.mxu0 0.0
      %1804 = vmatprep.subr.mxu0 0.0
      %1805 = vmatpush1.msra.mxu0 0.0
      %1806 = vmatprep.mubr.f32.mxu0 0.0
      %1807 = vmatmul.mubr.f32.gmra.mrb[0].mxu0 %v1644
      %v1808 = vpop.f32.mrb[0].mxu0
      %v1809 = vadd.f32 0.0, %v1808
      %v1810 = vpop.f32.mrb[0].mxu0
      %1811 = vmatprep.mubr.f32.mxu0 0.0
      %1812 = vmatmul.mubr.f32.gmra.mrb[0].mxu0 %v1647
      %v1813 = vpop.f32.mrb[0].mxu0
      %v1814 = vadd.f32 0.0, %v1813
      %v1815 = vpop.f32.mrb[0].mxu0
      %1816 = vmatprep.mubr.f32.mxu0 0.0
      %1817 = vmatmul.mubr.f32.gmra.mrb[0].mxu0 %v1650
      %v1818 = vpop.f32.mrb[0].mxu0
      %v1819 = vadd.f32 0.0, %v1818
      %v1820 = vpop.f32.mrb[0].mxu0
      %1821 = vmatprep.mubr.f32.mxu0 0.0
      %1822 = vmatmul.mubr.f32.gmra.mrb[0].mxu0 %v1653
      %v1823 = vpop.f32.mrb[0].mxu0
      %v1824 = vadd.f32 0.0, %v1823
      %v1825 = vpop.f32.mrb[0].mxu0
      %1826 = vmatprep.mubr.f32.mxu0 0.0
      %1827 = vmatmul.mubr.f32.gmra.mrb[0].mxu0 %v1656
      %v1828 = vpop.f32.mrb[0].mxu0
      %v1829 = vadd.f32 0.0, %v1828
      %v1830 = vpop.f32.mrb[0].mxu0
      %1831 = vmatprep.mubr.f32.mxu0 0.0
      %1832 = vmatmul.mubr.f32.gmra.mrb[0].mxu0 %v1659
      %v1833 = vpop.f32.mrb[0].mxu0
      %v1834 = vadd.f32 0.0, %v1833
      %v1835 = vpop.f32.mrb[0].mxu0
      %1836 = vmatprep.mubr.f32.mxu0 0.0
      %1837 = vmatmul.mubr.f32.gmra.mrb[0].mxu0 %v1662
      %v1838 = vpop.f32.mrb[0].mxu0
      %v1839 = vadd.f32 0.0, %v1838
      %v1840 = vpop.f32.mrb[0].mxu0
      %1841 = vmatprep.mubr.f32.mxu0 0.0
      %1842 = vmatmul.mubr.f32.gmra.mrb[0].mxu0 %v1665
      %v1843 = vpop.f32.mrb[0].mxu0
      %v1844 = vadd.f32 0.0, %v1843
      %v1845 = vpop.f32.mrb[0].mxu0
      %1846 = vmatprep.mubr.f32.mxu0 0.0
      %1847 = vmatmul.mubr.f32.gmra.mrb[0].mxu0 %v1668
      %v1848 = vpop.f32.mrb[0].mxu0
      %v1849 = vadd.f32 0.0, %v1848
      %v1850 = vpop.f32.mrb[0].mxu0
      %1851 = vmatprep.mubr.f32.mxu0 0.0
      %1852 = vmatmul.mubr.f32.gmra.mrb[0].mxu0 %v1671
      %v1853 = vpop.f32.mrb[0].mxu0
      %v1854 = vadd.f32 0.0, %v1853
      %v1855 = vpop.f32.mrb[0].mxu0
      %1856 = vmatprep.mubr.f32.mxu0 0.0
      %1857 = vmatmul.mubr.f32.gmra.mrb[0].mxu0 %v1674
      %v1858 = vpop.f32.mrb[0].mxu0
      %v1859 = vadd.f32 0.0, %v1858
      %v1860 = vpop.f32.mrb[0].mxu0
      %1861 = vmatprep.mubr.f32.mxu0 0.0
      %1862 = vmatmul.mubr.f32.gmra.mrb[0].mxu0 %v1677
      %v1863 = vpop.f32.mrb[0].mxu0
      %v1864 = vadd.f32 0.0, %v1863
      %v1865 = vpop.f32.mrb[0].mxu0
      %1866 = vmatprep.mubr.f32.mxu0 0.0
      %1867 = vmatmul.mubr.f32.gmra.mrb[0].mxu0 %v1680
      %v1868 = vpop.f32.mrb[0].mxu0
      %v1869 = vadd.f32 0.0, %v1868
      %v1870 = vpop.f32.mrb[0].mxu0
      %1871 = vmatprep.mubr.f32.mxu0 0.0
      %1872 = vmatmul.mubr.f32.gmra.mrb[0].mxu0 %v1683
      %v1873 = vpop.f32.mrb[0].mxu0
      %v1874 = vadd.f32 0.0, %v1873
      %v1875 = vpop.f32.mrb[0].mxu0
      %1876 = vmatprep.mubr.f32.mxu0 0.0
      %1877 = vmatmul.mubr.f32.gmra.mrb[0].mxu0 %v1686
      %v1878 = vpop.f32.mrb[0].mxu0
      %v1879 = vadd.f32 0.0, %v1878
      %v1880 = vpop.f32.mrb[0].mxu0
      %1881 = vmatprep.mubr.f32.mxu0 0.0
      %1882 = vmatmul.mubr.f32.gmra.mrb[0].mxu0 %v1689
      %v1883 = vpop.f32.mrb[0].mxu0
      %v1884 = vadd.f32 0.0, %v1883
      %v1885 = vpop.f32.mrb[0].mxu0
      %1886 = vmatprep.mubr.f32.mxu0 0.0
      %1887 = vmatmul.mubr.f32.gmra.mrb[0].mxu0 %v1692
      %v1888 = vpop.f32.mrb[0].mxu0
      %v1889 = vadd.f32 0.0, %v1888
      %v1890 = vpop.f32.mrb[0].mxu0
      %1891 = vmatprep.mubr.f32.mxu0 0.0
      %1892 = vmatmul.mubr.f32.gmra.mrb[0].mxu0 %v1695
      %v1893 = vpop.f32.mrb[0].mxu0
      %v1894 = vadd.f32 0.0, %v1893
      %v1895 = vpop.f32.mrb[0].mxu0
      %1896 = vmatprep.mubr.f32.mxu0 0.0
      %1897 = vmatmul.mubr.f32.gmra.mrb[0].mxu0 %v1698
      %v1898 = vpop.f32.mrb[0].mxu0
      %v1899 = vadd.f32 0.0, %v1898
      %v1900 = vpop.f32.mrb[0].mxu0
      %1901 = vmatprep.mubr.f32.mxu0 0.0
      %1902 = vmatmul.mubr.f32.gmra.mrb[0].mxu0 %v1701
      %v1903 = vpop.f32.mrb[0].mxu0
      %v1904 = vadd.f32 0.0, %v1903
      %v1905 = vpop.f32.mrb[0].mxu0
      %1906 = vmatprep.mubr.f32.mxu0 0.0
      %1907 = vmatmul.mubr.f32.gmra.mrb[0].mxu0 %v1704
      %v1908 = vpop.f32.mrb[0].mxu0
      %v1909 = vadd.f32 0.0, %v1908
      %v1910 = vpop.f32.mrb[0].mxu0
      %1911 = vmatprep.mubr.f32.mxu0 0.0
      %1912 = vmatmul.mubr.f32.gmra.mrb[0].mxu0 %v1707
      %v1913 = vpop.f32.mrb[0].mxu0
      %v1914 = vadd.f32 0.0, %v1913
      %v1915 = vpop.f32.mrb[0].mxu0
      %1916 = vmatprep.mubr.f32.mxu0 0.0
      %1917 = vmatmul.mubr.f32.gmra.mrb[0].mxu0 %v1710
      %v1918 = vpop.f32.mrb[0].mxu0
      %v1919 = vadd.f32 0.0, %v1918
      %v1920 = vpop.f32.mrb[0].mxu0
      %1921 = vmatprep.mubr.f32.mxu0 0.0
      %1922 = vmatmul.mubr.f32.gmra.mrb[0].mxu0 %v1713
      %v1923 = vpop.f32.mrb[0].mxu0
      %v1924 = vadd.f32 0.0, %v1923
      %v1925 = vpop.f32.mrb[0].mxu0
      %1926 = vmatprep.mubr.f32.mxu0 0.0
      %1927 = vmatmul.mubr.f32.gmra.mrb[0].mxu0 %v1716
      %v1928 = vpop.f32.mrb[0].mxu0
      %v1929 = vadd.f32 0.0, %v1928
      %v1930 = vpop.f32.mrb[0].mxu0
      %1931 = vmatprep.mubr.f32.mxu0 0.0
      %1932 = vmatmul.mubr.f32.gmra.mrb[0].mxu0 %v1719
      %v1933 = vpop.f32.mrb[0].mxu0
      %v1934 = vadd.f32 0.0, %v1933
      %v1935 = vpop.f32.mrb[0].mxu0
      %1936 = vmatprep.mubr.f32.mxu0 0.0
      %1937 = vmatmul.mubr.f32.gmra.mrb[0].mxu0 %v1722
      %v1938 = vpop.f32.mrb[0].mxu0
      %v1939 = vadd.f32 0.0, %v1938
      %v1940 = vpop.f32.mrb[0].mxu0
      %1941 = vmatprep.mubr.f32.mxu0 0.0
      %1942 = vmatmul.mubr.f32.gmra.mrb[0].mxu0 %v1725
      %v1943 = vpop.f32.mrb[0].mxu0
      %v1944 = vadd.f32 0.0, %v1943
      %v1945 = vpop.f32.mrb[0].mxu0
      %1946 = vmatprep.mubr.f32.mxu0 0.0
      %1947 = vmatmul.mubr.f32.gmra.mrb[0].mxu0 %v1728
      %v1948 = vpop.f32.mrb[0].mxu0
      %v1949 = vadd.f32 0.0, %v1948
      %v1950 = vpop.f32.mrb[0].mxu0
      %1951 = vmatprep.mubr.f32.mxu0 0.0
      %1952 = vmatmul.mubr.f32.gmra.mrb[0].mxu0 %v1731
      %v1953 = vpop.f32.mrb[0].mxu0
      %v1954 = vadd.f32 0.0, %v1953
      %v1955 = vpop.f32.mrb[0].mxu0
      %1956 = vmatprep.mubr.f32.mxu0 0.0
      %1957 = vmatmul.mubr.f32.gmra.mrb[0].mxu0 %v1734
      %v1958 = vpop.f32.mrb[0].mxu0
      %v1959 = vadd.f32 0.0, %v1958
      %v1960 = vpop.f32.mrb[0].mxu0
      %1961 = vmatprep.mubr.f32.mxu0 0.0
      %1962 = vmatmul.mubr.f32.gmra.mrb[0].mxu0 %v1737
      %v1963 = vpop.f32.mrb[0].mxu0
      %v1964 = vadd.f32 0.0, %v1963
      %v1965 = vpop.f32.mrb[0].mxu0
      %1966 = vdwg.mxu0
      %v1967 = vadd.f32 %v1576, %v1809
      %v1968 = vadd.f32 %v1577, %v1814
      %v1969 = vadd.f32 %v1578, %v1819
      %v1970 = vadd.f32 %v1579, %v1824
      %v1971 = vadd.f32 %v1580, %v1829
      %v1972 = vadd.f32 %v1581, %v1834
      %v1973 = vadd.f32 %v1582, %v1839
      %v1974 = vadd.f32 %v1583, %v1844
      %v1975 = vadd.f32 %v1584, %v1849
      %v1976 = vadd.f32 %v1585, %v1854
      %v1977 = vadd.f32 %v1586, %v1859
      %v1978 = vadd.f32 %v1587, %v1864
      %v1979 = vadd.f32 %v1588, %v1869
      %v1980 = vadd.f32 %v1589, %v1874
      %v1981 = vadd.f32 %v1590, %v1879
      %v1982 = vadd.f32 %v1591, %v1884
      %v1983 = vadd.f32 %v1592, %v1889
      %v1984 = vadd.f32 %v1593, %v1894
      %v1985 = vadd.f32 %v1594, %v1899
      %v1986 = vadd.f32 %v1595, %v1904
      %v1987 = vadd.f32 %v1596, %v1909
      %v1988 = vadd.f32 %v1597, %v1914
      %v1989 = vadd.f32 %v1598, %v1919
      %v1990 = vadd.f32 %v1599, %v1924
      %v1991 = vadd.f32 %v1600, %v1929
      %v1992 = vadd.f32 %v1601, %v1934
      %v1993 = vadd.f32 %v1602, %v1939
      %v1994 = vadd.f32 %v1603, %v1944
      %v1995 = vadd.f32 %v1604, %v1949
      %v1996 = vadd.f32 %v1605, %v1954
      %v1997 = vadd.f32 %v1606, %v1959
      %v1998 = vadd.f32 %v1607, %v1964
      %v1999 = vld [vmem:[%s1608 + $0x1] sm:$0xff]
      %v2000 = vld [vmem:[%s1608 + $0x9] sm:$0xff]
      %v2001 = vld [vmem:[%s1608 + $0x19] sm:$0xff]
      %v2002 = vld [vmem:[%s1608 + $0x21] sm:$0xff]
      %v2003 = vld [vmem:[%s1608 + $0x31] sm:$0xff]
      %v2004 = vld [vmem:[%s1608 + $0x39] sm:$0xff]
      %v2005 = vld [vmem:[%s1608 + $0x49] sm:$0xff]
      %v2006 = vld [vmem:[%s1608 + $0x51] sm:$0xff]
      %v2007 = vld [vmem:[%s1608 + $0x61] sm:$0xff]
      %v2008 = vld [vmem:[%s1608 + $0x69] sm:$0xff]
      %v2009 = vld [vmem:[%s1608 + $0x79] sm:$0xff]
      %v2010 = vld [vmem:[%s1608 + $0x81] sm:$0xff]
      %v2011 = vld [vmem:[%s1608 + $0x91] sm:$0xff]
      %v2012 = vld [vmem:[%s1608 + $0x99] sm:$0xff]
      %v2013 = vld [vmem:[%s1608 + $0xa9] sm:$0xff]
      %v2014 = vld [vmem:[%s1608 + $0xb1] sm:$0xff]
      %v2015 = vld [vmem:[%s1608 + $0xc1] sm:$0xff]
      %v2016 = vld [vmem:[%s1608 + $0xc9] sm:$0xff]
      %v2017 = vld [vmem:[%s1608 + $0xd9] sm:$0xff]
      %v2018 = vld [vmem:[%s1608 + $0xe1] sm:$0xff]
      %v2019 = vld [vmem:[%s1608 + $0xf1] sm:$0xff]
      %v2020 = vld [vmem:[%s1608 + $0xf9] sm:$0xff]
      %v2021 = vld [vmem:[%s1608 + $0x109] sm:$0xff]
      %v2022 = vld [vmem:[%s1608 + $0x111] sm:$0xff]
      %v2023 = vld [vmem:[%s1608 + $0x121] sm:$0xff]
      %v2024 = vld [vmem:[%s1608 + $0x129] sm:$0xff]
      %v2025 = vld [vmem:[%s1608 + $0x139] sm:$0xff]
      %v2026 = vld [vmem:[%s1608 + $0x141] sm:$0xff]
      %v2027 = vld [vmem:[%s1608 + $0x151] sm:$0xff]
      %v2028 = vld [vmem:[%s1608 + $0x159] sm:$0xff]
      %v2029 = vld [vmem:[%s1608 + $0x169] sm:$0xff]
      %v2030 = vld [vmem:[%s1608 + $0x171] sm:$0xff]
      %s2031 = scalar_lea.vmem %s2, 16
      %v2032 = vld [vmem:[%s2031] sm:$0xf]
      %v2034 = vsel %vm368, %v1999, 0
      %v2037 = vsel %vm368, %v2000, 0
      %v2040 = vsel %vm368, %v2001, 0
      %v2043 = vsel %vm368, %v2002, 0
      %v2046 = vsel %vm368, %v2003, 0
      %v2049 = vsel %vm368, %v2004, 0
      %v2052 = vsel %vm368, %v2005, 0
      %v2055 = vsel %vm368, %v2006, 0
      %v2058 = vsel %vm368, %v2007, 0
      %v2061 = vsel %vm368, %v2008, 0
      %v2064 = vsel %vm368, %v2009, 0
      %v2067 = vsel %vm368, %v2010, 0
      %v2070 = vsel %vm368, %v2011, 0
      %v2073 = vsel %vm368, %v2012, 0
      %v2076 = vsel %vm368, %v2013, 0
      %v2079 = vsel %vm368, %v2014, 0
      %v2082 = vsel %vm368, %v2015, 0
      %v2085 = vsel %vm368, %v2016, 0
      %v2088 = vsel %vm368, %v2017, 0
      %v2091 = vsel %vm368, %v2018, 0
      %v2094 = vsel %vm368, %v2019, 0
      %v2097 = vsel %vm368, %v2020, 0
      %v2100 = vsel %vm368, %v2021, 0
      %v2103 = vsel %vm368, %v2022, 0
      %v2106 = vsel %vm368, %v2023, 0
      %v2109 = vsel %vm368, %v2024, 0
      %v2112 = vsel %vm368, %v2025, 0
      %v2115 = vsel %vm368, %v2026, 0
      %v2118 = vsel %vm368, %v2027, 0
      %v2121 = vsel %vm368, %v2028, 0
      %v2124 = vsel %vm368, %v2029, 0
      %v2127 = vsel %vm368, %v2030, 0
      %v2130 = vsel %vm567, %v2032, 0
      %2132 = vmatprep.subr.mxu0 0.0
      %2133 = vmatpush1.msra.mxu0 %v2130
      %2134 = vmatprep.subr.mxu0 0.0
      %2135 = vmatpush1.msra.mxu0 0.0
      %2136 = vmatprep.subr.mxu0 0.0
      %2137 = vmatpush1.msra.mxu0 0.0
      %2138 = vmatprep.subr.mxu0 0.0
      %2139 = vmatpush1.msra.mxu0 0.0
      %2140 = vmatprep.subr.mxu0 0.0
      %2141 = vmatpush1.msra.mxu0 0.0
      %2142 = vmatprep.subr.mxu0 0.0
      %2143 = vmatpush1.msra.mxu0 0.0
      %2144 = vmatprep.subr.mxu0 0.0
      %2145 = vmatpush1.msra.mxu0 0.0
      %2146 = vmatprep.subr.mxu0 0.0
      %2147 = vmatpush1.msra.mxu0 0.0
      %2148 = vmatprep.subr.mxu0 0.0
      %2149 = vmatpush1.msra.mxu0 0.0
      %2150 = vmatprep.subr.mxu0 0.0
      %2151 = vmatpush1.msra.mxu0 0.0
      %2152 = vmatprep.subr.mxu0 0.0
      %2153 = vmatpush1.msra.mxu0 0.0
      %2154 = vmatprep.subr.mxu0 0.0
      %2155 = vmatpush1.msra.mxu0 0.0
      %2156 = vmatprep.subr.mxu0 0.0
      %2157 = vmatpush1.msra.mxu0 0.0
      %2158 = vmatprep.subr.mxu0 0.0
      %2159 = vmatpush1.msra.mxu0 0.0
      %2160 = vmatprep.subr.mxu0 0.0
      %2161 = vmatpush1.msra.mxu0 0.0
      %2162 = vmatprep.subr.mxu0 0.0
      %2163 = vmatpush1.msra.mxu0 0.0
      %2164 = vmatprep.subr.mxu0 0.0
      %2165 = vmatpush1.msra.mxu0 0.0
      %2166 = vmatprep.subr.mxu0 0.0
      %2167 = vmatpush1.msra.mxu0 0.0
      %2168 = vmatprep.subr.mxu0 0.0
      %2169 = vmatpush1.msra.mxu0 0.0
      %2170 = vmatprep.subr.mxu0 0.0
      %2171 = vmatpush1.msra.mxu0 0.0
      %2172 = vmatprep.subr.mxu0 0.0
      %2173 = vmatpush1.msra.mxu0 0.0
      %2174 = vmatprep.subr.mxu0 0.0
      %2175 = vmatpush1.msra.mxu0 0.0
      %2176 = vmatprep.subr.mxu0 0.0
      %2177 = vmatpush1.msra.mxu0 0.0
      %2178 = vmatprep.subr.mxu0 0.0
      %2179 = vmatpush1.msra.mxu0 0.0
      %2180 = vmatprep.subr.mxu0 0.0
      %2181 = vmatpush1.msra.mxu0 0.0
      %2182 = vmatprep.subr.mxu0 0.0
      %2183 = vmatpush1.msra.mxu0 0.0
      %2184 = vmatprep.subr.mxu0 0.0
      %2185 = vmatpush1.msra.mxu0 0.0
      %2186 = vmatprep.subr.mxu0 0.0
      %2187 = vmatpush1.msra.mxu0 0.0
      %2188 = vmatprep.subr.mxu0 0.0
      %2189 = vmatpush1.msra.mxu0 0.0
      %2190 = vmatprep.subr.mxu0 0.0
      %2191 = vmatpush1.msra.mxu0 0.0
      %2192 = vmatprep.subr.mxu0 0.0
      %2193 = vmatpush1.msra.mxu0 0.0
      %2194 = vmatprep.subr.mxu0 0.0
      %2195 = vmatpush1.msra.mxu0 0.0
      %2196 = vmatprep.mubr.f32.mxu0 0.0
      %2197 = vmatmul.mubr.f32.gmra.mrb[0].mxu0 %v2034
      %v2198 = vpop.f32.mrb[0].mxu0
      %v2199 = vadd.f32 0.0, %v2198
      %v2200 = vpop.f32.mrb[0].mxu0
      %2201 = vmatprep.mubr.f32.mxu0 0.0
      %2202 = vmatmul.mubr.f32.gmra.mrb[0].mxu0 %v2037
      %v2203 = vpop.f32.mrb[0].mxu0
      %v2204 = vadd.f32 0.0, %v2203
      %v2205 = vpop.f32.mrb[0].mxu0
      %2206 = vmatprep.mubr.f32.mxu0 0.0
      %2207 = vmatmul.mubr.f32.gmra.mrb[0].mxu0 %v2040
      %v2208 = vpop.f32.mrb[0].mxu0
      %v2209 = vadd.f32 0.0, %v2208
      %v2210 = vpop.f32.mrb[0].mxu0
      %2211 = vmatprep.mubr.f32.mxu0 0.0
      %2212 = vmatmul.mubr.f32.gmra.mrb[0].mxu0 %v2043
      %v2213 = vpop.f32.mrb[0].mxu0
      %v2214 = vadd.f32 0.0, %v2213
      %v2215 = vpop.f32.mrb[0].mxu0
      %2216 = vmatprep.mubr.f32.mxu0 0.0
      %2217 = vmatmul.mubr.f32.gmra.mrb[0].mxu0 %v2046
      %v2218 = vpop.f32.mrb[0].mxu0
      %v2219 = vadd.f32 0.0, %v2218
      %v2220 = vpop.f32.mrb[0].mxu0
      %2221 = vmatprep.mubr.f32.mxu0 0.0
      %2222 = vmatmul.mubr.f32.gmra.mrb[0].mxu0 %v2049
      %v2223 = vpop.f32.mrb[0].mxu0
      %v2224 = vadd.f32 0.0, %v2223
      %v2225 = vpop.f32.mrb[0].mxu0
      %2226 = vmatprep.mubr.f32.mxu0 0.0
      %2227 = vmatmul.mubr.f32.gmra.mrb[0].mxu0 %v2052
      %v2228 = vpop.f32.mrb[0].mxu0
      %v2229 = vadd.f32 0.0, %v2228
      %v2230 = vpop.f32.mrb[0].mxu0
      %2231 = vmatprep.mubr.f32.mxu0 0.0
      %2232 = vmatmul.mubr.f32.gmra.mrb[0].mxu0 %v2055
      %v2233 = vpop.f32.mrb[0].mxu0
      %v2234 = vadd.f32 0.0, %v2233
      %v2235 = vpop.f32.mrb[0].mxu0
      %2236 = vmatprep.mubr.f32.mxu0 0.0
      %2237 = vmatmul.mubr.f32.gmra.mrb[0].mxu0 %v2058
      %v2238 = vpop.f32.mrb[0].mxu0
      %v2239 = vadd.f32 0.0, %v2238
      %v2240 = vpop.f32.mrb[0].mxu0
      %2241 = vmatprep.mubr.f32.mxu0 0.0
      %2242 = vmatmul.mubr.f32.gmra.mrb[0].mxu0 %v2061
      %v2243 = vpop.f32.mrb[0].mxu0
      %v2244 = vadd.f32 0.0, %v2243
      %v2245 = vpop.f32.mrb[0].mxu0
      %2246 = vmatprep.mubr.f32.mxu0 0.0
      %2247 = vmatmul.mubr.f32.gmra.mrb[0].mxu0 %v2064
      %v2248 = vpop.f32.mrb[0].mxu0
      %v2249 = vadd.f32 0.0, %v2248
      %v2250 = vpop.f32.mrb[0].mxu0
      %2251 = vmatprep.mubr.f32.mxu0 0.0
      %2252 = vmatmul.mubr.f32.gmra.mrb[0].mxu0 %v2067
      %v2253 = vpop.f32.mrb[0].mxu0
      %v2254 = vadd.f32 0.0, %v2253
      %v2255 = vpop.f32.mrb[0].mxu0
      %2256 = vmatprep.mubr.f32.mxu0 0.0
      %2257 = vmatmul.mubr.f32.gmra.mrb[0].mxu0 %v2070
      %v2258 = vpop.f32.mrb[0].mxu0
      %v2259 = vadd.f32 0.0, %v2258
      %v2260 = vpop.f32.mrb[0].mxu0
      %2261 = vmatprep.mubr.f32.mxu0 0.0
      %2262 = vmatmul.mubr.f32.gmra.mrb[0].mxu0 %v2073
      %v2263 = vpop.f32.mrb[0].mxu0
      %v2264 = vadd.f32 0.0, %v2263
      %v2265 = vpop.f32.mrb[0].mxu0
      %2266 = vmatprep.mubr.f32.mxu0 0.0
      %2267 = vmatmul.mubr.f32.gmra.mrb[0].mxu0 %v2076
      %v2268 = vpop.f32.mrb[0].mxu0
      %v2269 = vadd.f32 0.0, %v2268
      %v2270 = vpop.f32.mrb[0].mxu0
      %2271 = vmatprep.mubr.f32.mxu0 0.0
      %2272 = vmatmul.mubr.f32.gmra.mrb[0].mxu0 %v2079
      %v2273 = vpop.f32.mrb[0].mxu0
      %v2274 = vadd.f32 0.0, %v2273
      %v2275 = vpop.f32.mrb[0].mxu0
      %2276 = vmatprep.mubr.f32.mxu0 0.0
      %2277 = vmatmul.mubr.f32.gmra.mrb[0].mxu0 %v2082
      %v2278 = vpop.f32.mrb[0].mxu0
      %v2279 = vadd.f32 0.0, %v2278
      %v2280 = vpop.f32.mrb[0].mxu0
      %2281 = vmatprep.mubr.f32.mxu0 0.0
      %2282 = vmatmul.mubr.f32.gmra.mrb[0].mxu0 %v2085
      %v2283 = vpop.f32.mrb[0].mxu0
      %v2284 = vadd.f32 0.0, %v2283
      %v2285 = vpop.f32.mrb[0].mxu0
      %2286 = vmatprep.mubr.f32.mxu0 0.0
      %2287 = vmatmul.mubr.f32.gmra.mrb[0].mxu0 %v2088
      %v2288 = vpop.f32.mrb[0].mxu0
      %v2289 = vadd.f32 0.0, %v2288
      %v2290 = vpop.f32.mrb[0].mxu0
      %2291 = vmatprep.mubr.f32.mxu0 0.0
      %2292 = vmatmul.mubr.f32.gmra.mrb[0].mxu0 %v2091
      %v2293 = vpop.f32.mrb[0].mxu0
      %v2294 = vadd.f32 0.0, %v2293
      %v2295 = vpop.f32.mrb[0].mxu0
      %2296 = vmatprep.mubr.f32.mxu0 0.0
      %2297 = vmatmul.mubr.f32.gmra.mrb[0].mxu0 %v2094
      %v2298 = vpop.f32.mrb[0].mxu0
      %v2299 = vadd.f32 0.0, %v2298
      %v2300 = vpop.f32.mrb[0].mxu0
      %2301 = vmatprep.mubr.f32.mxu0 0.0
      %2302 = vmatmul.mubr.f32.gmra.mrb[0].mxu0 %v2097
      %v2303 = vpop.f32.mrb[0].mxu0
      %v2304 = vadd.f32 0.0, %v2303
      %v2305 = vpop.f32.mrb[0].mxu0
      %2306 = vmatprep.mubr.f32.mxu0 0.0
      %2307 = vmatmul.mubr.f32.gmra.mrb[0].mxu0 %v2100
      %v2308 = vpop.f32.mrb[0].mxu0
      %v2309 = vadd.f32 0.0, %v2308
      %v2310 = vpop.f32.mrb[0].mxu0
      %2311 = vmatprep.mubr.f32.mxu0 0.0
      %2312 = vmatmul.mubr.f32.gmra.mrb[0].mxu0 %v2103
      %v2313 = vpop.f32.mrb[0].mxu0
      %v2314 = vadd.f32 0.0, %v2313
      %v2315 = vpop.f32.mrb[0].mxu0
      %2316 = vmatprep.mubr.f32.mxu0 0.0
      %2317 = vmatmul.mubr.f32.gmra.mrb[0].mxu0 %v2106
      %v2318 = vpop.f32.mrb[0].mxu0
      %v2319 = vadd.f32 0.0, %v2318
      %v2320 = vpop.f32.mrb[0].mxu0
      %2321 = vmatprep.mubr.f32.mxu0 0.0
      %2322 = vmatmul.mubr.f32.gmra.mrb[0].mxu0 %v2109
      %v2323 = vpop.f32.mrb[0].mxu0
      %v2324 = vadd.f32 0.0, %v2323
      %v2325 = vpop.f32.mrb[0].mxu0
      %2326 = vmatprep.mubr.f32.mxu0 0.0
      %2327 = vmatmul.mubr.f32.gmra.mrb[0].mxu0 %v2112
      %v2328 = vpop.f32.mrb[0].mxu0
      %v2329 = vadd.f32 0.0, %v2328
      %v2330 = vpop.f32.mrb[0].mxu0
      %2331 = vmatprep.mubr.f32.mxu0 0.0
      %2332 = vmatmul.mubr.f32.gmra.mrb[0].mxu0 %v2115
      %v2333 = vpop.f32.mrb[0].mxu0
      %v2334 = vadd.f32 0.0, %v2333
      %v2335 = vpop.f32.mrb[0].mxu0
      %2336 = vmatprep.mubr.f32.mxu0 0.0
      %2337 = vmatmul.mubr.f32.gmra.mrb[0].mxu0 %v2118
      %v2338 = vpop.f32.mrb[0].mxu0
      %v2339 = vadd.f32 0.0, %v2338
      %v2340 = vpop.f32.mrb[0].mxu0
      %2341 = vmatprep.mubr.f32.mxu0 0.0
      %2342 = vmatmul.mubr.f32.gmra.mrb[0].mxu0 %v2121
      %v2343 = vpop.f32.mrb[0].mxu0
      %v2344 = vadd.f32 0.0, %v2343
      %v2345 = vpop.f32.mrb[0].mxu0
      %2346 = vmatprep.mubr.f32.mxu0 0.0
      %2347 = vmatmul.mubr.f32.gmra.mrb[0].mxu0 %v2124
      %v2348 = vpop.f32.mrb[0].mxu0
      %v2349 = vadd.f32 0.0, %v2348
      %v2350 = vpop.f32.mrb[0].mxu0
      %2351 = vmatprep.mubr.f32.mxu0 0.0
      %2352 = vmatmul.mubr.f32.gmra.mrb[0].mxu0 %v2127
      %v2353 = vpop.f32.mrb[0].mxu0
      %v2354 = vadd.f32 0.0, %v2353
      %v2355 = vpop.f32.mrb[0].mxu0
      %2356 = vdwg.mxu0
      %v2357 = vadd.f32 %v1967, %v2199
      %v2358 = vadd.f32 %v1968, %v2204
      %v2359 = vadd.f32 %v1969, %v2209
      %v2360 = vadd.f32 %v1970, %v2214
      %v2361 = vadd.f32 %v1971, %v2219
      %v2362 = vadd.f32 %v1972, %v2224
      %v2363 = vadd.f32 %v1973, %v2229
      %v2364 = vadd.f32 %v1974, %v2234
      %v2365 = vadd.f32 %v1975, %v2239
      %v2366 = vadd.f32 %v1976, %v2244
      %v2367 = vadd.f32 %v1977, %v2249
      %v2368 = vadd.f32 %v1978, %v2254
      %v2369 = vadd.f32 %v1979, %v2259
      %v2370 = vadd.f32 %v1980, %v2264
      %v2371 = vadd.f32 %v1981, %v2269
      %v2372 = vadd.f32 %v1982, %v2274
      %v2373 = vadd.f32 %v1983, %v2279
      %v2374 = vadd.f32 %v1984, %v2284
      %v2375 = vadd.f32 %v1985, %v2289
      %v2376 = vadd.f32 %v1986, %v2294
      %v2377 = vadd.f32 %v1987, %v2299
      %v2378 = vadd.f32 %v1988, %v2304
      %v2379 = vadd.f32 %v1989, %v2309
      %v2380 = vadd.f32 %v1990, %v2314
      %v2381 = vadd.f32 %v1991, %v2319
      %v2382 = vadd.f32 %v1992, %v2324
      %v2383 = vadd.f32 %v1993, %v2329
      %v2384 = vadd.f32 %v1994, %v2334
      %v2385 = vadd.f32 %v1995, %v2339
      %v2386 = vadd.f32 %v1996, %v2344
      %v2387 = vadd.f32 %v1997, %v2349
      %v2388 = vadd.f32 %v1998, %v2354
      %v2389 = vld [vmem:[%s1608 + $0x2] sm:$0xff]
      %v2390 = vld [vmem:[%s1608 + $0xa] sm:$0xff]
      %v2391 = vld [vmem:[%s1608 + $0x1a] sm:$0xff]
      %v2392 = vld [vmem:[%s1608 + $0x22] sm:$0xff]
      %v2393 = vld [vmem:[%s1608 + $0x32] sm:$0xff]
      %v2394 = vld [vmem:[%s1608 + $0x3a] sm:$0xff]
      %v2395 = vld [vmem:[%s1608 + $0x4a] sm:$0xff]
      %v2396 = vld [vmem:[%s1608 + $0x52] sm:$0xff]
      %v2397 = vld [vmem:[%s1608 + $0x62] sm:$0xff]
      %v2398 = vld [vmem:[%s1608 + $0x6a] sm:$0xff]
      %v2399 = vld [vmem:[%s1608 + $0x7a] sm:$0xff]
      %v2400 = vld [vmem:[%s1608 + $0x82] sm:$0xff]
      %v2401 = vld [vmem:[%s1608 + $0x92] sm:$0xff]
      %v2402 = vld [vmem:[%s1608 + $0x9a] sm:$0xff]
      %v2403 = vld [vmem:[%s1608 + $0xaa] sm:$0xff]
      %v2404 = vld [vmem:[%s1608 + $0xb2] sm:$0xff]
      %v2405 = vld [vmem:[%s1608 + $0xc2] sm:$0xff]
      %v2406 = vld [vmem:[%s1608 + $0xca] sm:$0xff]
      %v2407 = vld [vmem:[%s1608 + $0xda] sm:$0xff]
      %v2408 = vld [vmem:[%s1608 + $0xe2] sm:$0xff]
      %v2409 = vld [vmem:[%s1608 + $0xf2] sm:$0xff]
      %v2410 = vld [vmem:[%s1608 + $0xfa] sm:$0xff]
      %v2411 = vld [vmem:[%s1608 + $0x10a] sm:$0xff]
      %v2412 = vld [vmem:[%s1608 + $0x112] sm:$0xff]
      %v2413 = vld [vmem:[%s1608 + $0x122] sm:$0xff]
      %v2414 = vld [vmem:[%s1608 + $0x12a] sm:$0xff]
      %v2415 = vld [vmem:[%s1608 + $0x13a] sm:$0xff]
      %v2416 = vld [vmem:[%s1608 + $0x142] sm:$0xff]
      %v2417 = vld [vmem:[%s1608 + $0x152] sm:$0xff]
      %v2418 = vld [vmem:[%s1608 + $0x15a] sm:$0xff]
      %v2419 = vld [vmem:[%s1608 + $0x16a] sm:$0xff]
      %v2420 = vld [vmem:[%s1608 + $0x172] sm:$0xff]
      %s2421 = scalar_lea.vmem %s2, 20
      %v2422 = vld [vmem:[%s2421] sm:$0xf]
      %v2424 = vsel %vm368, %v2389, 0
      %v2427 = vsel %vm368, %v2390, 0
      %v2430 = vsel %vm368, %v2391, 0
      %v2433 = vsel %vm368, %v2392, 0
      %v2436 = vsel %vm368, %v2393, 0
      %v2439 = vsel %vm368, %v2394, 0
      %v2442 = vsel %vm368, %v2395, 0
      %v2445 = vsel %vm368, %v2396, 0
      %v2448 = vsel %vm368, %v2397, 0
      %v2451 = vsel %vm368, %v2398, 0
      %v2454 = vsel %vm368, %v2399, 0
      %v2457 = vsel %vm368, %v2400, 0
      %v2460 = vsel %vm368, %v2401, 0
      %v2463 = vsel %vm368, %v2402, 0
      %v2466 = vsel %vm368, %v2403, 0
      %v2469 = vsel %vm368, %v2404, 0
      %v2472 = vsel %vm368, %v2405, 0
      %v2475 = vsel %vm368, %v2406, 0
      %v2478 = vsel %vm368, %v2407, 0
      %v2481 = vsel %vm368, %v2408, 0
      %v2484 = vsel %vm368, %v2409, 0
      %v2487 = vsel %vm368, %v2410, 0
      %v2490 = vsel %vm368, %v2411, 0
      %v2493 = vsel %vm368, %v2412, 0
      %v2496 = vsel %vm368, %v2413, 0
      %v2499 = vsel %vm368, %v2414, 0
      %v2502 = vsel %vm368, %v2415, 0
      %v2505 = vsel %vm368, %v2416, 0
      %v2508 = vsel %vm368, %v2417, 0
      %v2511 = vsel %vm368, %v2418, 0
      %v2514 = vsel %vm368, %v2419, 0
      %v2517 = vsel %vm368, %v2420, 0
      %v2520 = vsel %vm567, %v2422, 0
      %2522 = vmatprep.subr.mxu0 0.0
      %2523 = vmatpush1.msra.mxu0 %v2520
      %2524 = vmatprep.subr.mxu0 0.0
      %2525 = vmatpush1.msra.mxu0 0.0
      %2526 = vmatprep.subr.mxu0 0.0
      %2527 = vmatpush1.msra.mxu0 0.0
      %2528 = vmatprep.subr.mxu0 0.0
      %2529 = vmatpush1.msra.mxu0 0.0
      %2530 = vmatprep.subr.mxu0 0.0
      %2531 = vmatpush1.msra.mxu0 0.0
      %2532 = vmatprep.subr.mxu0 0.0
      %2533 = vmatpush1.msra.mxu0 0.0
      %2534 = vmatprep.subr.mxu0 0.0
      %2535 = vmatpush1.msra.mxu0 0.0
      %2536 = vmatprep.subr.mxu0 0.0
      %2537 = vmatpush1.msra.mxu0 0.0
      %2538 = vmatprep.subr.mxu0 0.0
      %2539 = vmatpush1.msra.mxu0 0.0
      %2540 = vmatprep.subr.mxu0 0.0
      %2541 = vmatpush1.msra.mxu0 0.0
      %2542 = vmatprep.subr.mxu0 0.0
      %2543 = vmatpush1.msra.mxu0 0.0
      %2544 = vmatprep.subr.mxu0 0.0
      %2545 = vmatpush1.msra.mxu0 0.0
      %2546 = vmatprep.subr.mxu0 0.0
      %2547 = vmatpush1.msra.mxu0 0.0
      %2548 = vmatprep.subr.mxu0 0.0
      %2549 = vmatpush1.msra.mxu0 0.0
      %2550 = vmatprep.subr.mxu0 0.0
      %2551 = vmatpush1.msra.mxu0 0.0
      %2552 = vmatprep.subr.mxu0 0.0
      %2553 = vmatpush1.msra.mxu0 0.0
      %2554 = vmatprep.subr.mxu0 0.0
      %2555 = vmatpush1.msra.mxu0 0.0
      %2556 = vmatprep.subr.mxu0 0.0
      %2557 = vmatpush1.msra.mxu0 0.0
      %2558 = vmatprep.subr.mxu0 0.0
      %2559 = vmatpush1.msra.mxu0 0.0
      %2560 = vmatprep.subr.mxu0 0.0
      %2561 = vmatpush1.msra.mxu0 0.0
      %2562 = vmatprep.subr.mxu0 0.0
      %2563 = vmatpush1.msra.mxu0 0.0
      %2564 = vmatprep.subr.mxu0 0.0
      %2565 = vmatpush1.msra.mxu0 0.0
      %2566 = vmatprep.subr.mxu0 0.0
      %2567 = vmatpush1.msra.mxu0 0.0
      %2568 = vmatprep.subr.mxu0 0.0
      %2569 = vmatpush1.msra.mxu0 0.0
      %2570 = vmatprep.subr.mxu0 0.0
      %2571 = vmatpush1.msra.mxu0 0.0
      %2572 = vmatprep.subr.mxu0 0.0
      %2573 = vmatpush1.msra.mxu0 0.0
      %2574 = vmatprep.subr.mxu0 0.0
      %2575 = vmatpush1.msra.mxu0 0.0
      %2576 = vmatprep.subr.mxu0 0.0
      %2577 = vmatpush1.msra.mxu0 0.0
      %2578 = vmatprep.subr.mxu0 0.0
      %2579 = vmatpush1.msra.mxu0 0.0
      %2580 = vmatprep.subr.mxu0 0.0
      %2581 = vmatpush1.msra.mxu0 0.0
      %2582 = vmatprep.subr.mxu0 0.0
      %2583 = vmatpush1.msra.mxu0 0.0
      %2584 = vmatprep.subr.mxu0 0.0
      %2585 = vmatpush1.msra.mxu0 0.0
      %2586 = vmatprep.mubr.f32.mxu0 0.0
      %2587 = vmatmul.mubr.f32.gmra.mrb[0].mxu0 %v2424
      %v2588 = vpop.f32.mrb[0].mxu0
      %v2589 = vadd.f32 0.0, %v2588
      %v2590 = vpop.f32.mrb[0].mxu0
      %2591 = vmatprep.mubr.f32.mxu0 0.0
      %2592 = vmatmul.mubr.f32.gmra.mrb[0].mxu0 %v2427
      %v2593 = vpop.f32.mrb[0].mxu0
      %v2594 = vadd.f32 0.0, %v2593
      %v2595 = vpop.f32.mrb[0].mxu0
      %2596 = vmatprep.mubr.f32.mxu0 0.0
      %2597 = vmatmul.mubr.f32.gmra.mrb[0].mxu0 %v2430
      %v2598 = vpop.f32.mrb[0].mxu0
      %v2599 = vadd.f32 0.0, %v2598
      %v2600 = vpop.f32.mrb[0].mxu0
      %2601 = vmatprep.mubr.f32.mxu0 0.0
      %2602 = vmatmul.mubr.f32.gmra.mrb[0].mxu0 %v2433
      %v2603 = vpop.f32.mrb[0].mxu0
      %v2604 = vadd.f32 0.0, %v2603
      %v2605 = vpop.f32.mrb[0].mxu0
      %2606 = vmatprep.mubr.f32.mxu0 0.0
      %2607 = vmatmul.mubr.f32.gmra.mrb[0].mxu0 %v2436
      %v2608 = vpop.f32.mrb[0].mxu0
      %v2609 = vadd.f32 0.0, %v2608
      %v2610 = vpop.f32.mrb[0].mxu0
      %2611 = vmatprep.mubr.f32.mxu0 0.0
      %2612 = vmatmul.mubr.f32.gmra.mrb[0].mxu0 %v2439
      %v2613 = vpop.f32.mrb[0].mxu0
      %v2614 = vadd.f32 0.0, %v2613
      %v2615 = vpop.f32.mrb[0].mxu0
      %2616 = vmatprep.mubr.f32.mxu0 0.0
      %2617 = vmatmul.mubr.f32.gmra.mrb[0].mxu0 %v2442
      %v2618 = vpop.f32.mrb[0].mxu0
      %v2619 = vadd.f32 0.0, %v2618
      %v2620 = vpop.f32.mrb[0].mxu0
      %2621 = vmatprep.mubr.f32.mxu0 0.0
      %2622 = vmatmul.mubr.f32.gmra.mrb[0].mxu0 %v2445
      %v2623 = vpop.f32.mrb[0].mxu0
      %v2624 = vadd.f32 0.0, %v2623
      %v2625 = vpop.f32.mrb[0].mxu0
      %2626 = vmatprep.mubr.f32.mxu0 0.0
      %2627 = vmatmul.mubr.f32.gmra.mrb[0].mxu0 %v2448
      %v2628 = vpop.f32.mrb[0].mxu0
      %v2629 = vadd.f32 0.0, %v2628
      %v2630 = vpop.f32.mrb[0].mxu0
      %2631 = vmatprep.mubr.f32.mxu0 0.0
      %2632 = vmatmul.mubr.f32.gmra.mrb[0].mxu0 %v2451
      %v2633 = vpop.f32.mrb[0].mxu0
      %v2634 = vadd.f32 0.0, %v2633
      %v2635 = vpop.f32.mrb[0].mxu0
      %2636 = vmatprep.mubr.f32.mxu0 0.0
      %2637 = vmatmul.mubr.f32.gmra.mrb[0].mxu0 %v2454
      %v2638 = vpop.f32.mrb[0].mxu0
      %v2639 = vadd.f32 0.0, %v2638
      %v2640 = vpop.f32.mrb[0].mxu0
      %2641 = vmatprep.mubr.f32.mxu0 0.0
      %2642 = vmatmul.mubr.f32.gmra.mrb[0].mxu0 %v2457
      %v2643 = vpop.f32.mrb[0].mxu0
      %v2644 = vadd.f32 0.0, %v2643
      %v2645 = vpop.f32.mrb[0].mxu0
      %2646 = vmatprep.mubr.f32.mxu0 0.0
      %2647 = vmatmul.mubr.f32.gmra.mrb[0].mxu0 %v2460
      %v2648 = vpop.f32.mrb[0].mxu0
      %v2649 = vadd.f32 0.0, %v2648
      %v2650 = vpop.f32.mrb[0].mxu0
      %2651 = vmatprep.mubr.f32.mxu0 0.0
      %2652 = vmatmul.mubr.f32.gmra.mrb[0].mxu0 %v2463
      %v2653 = vpop.f32.mrb[0].mxu0
      %v2654 = vadd.f32 0.0, %v2653
      %v2655 = vpop.f32.mrb[0].mxu0
      %2656 = vmatprep.mubr.f32.mxu0 0.0
      %2657 = vmatmul.mubr.f32.gmra.mrb[0].mxu0 %v2466
      %v2658 = vpop.f32.mrb[0].mxu0
      %v2659 = vadd.f32 0.0, %v2658
      %v2660 = vpop.f32.mrb[0].mxu0
      %2661 = vmatprep.mubr.f32.mxu0 0.0
      %2662 = vmatmul.mubr.f32.gmra.mrb[0].mxu0 %v2469
      %v2663 = vpop.f32.mrb[0].mxu0
      %v2664 = vadd.f32 0.0, %v2663
      %v2665 = vpop.f32.mrb[0].mxu0
      %2666 = vmatprep.mubr.f32.mxu0 0.0
      %2667 = vmatmul.mubr.f32.gmra.mrb[0].mxu0 %v2472
      %v2668 = vpop.f32.mrb[0].mxu0
      %v2669 = vadd.f32 0.0, %v2668
      %v2670 = vpop.f32.mrb[0].mxu0
      %2671 = vmatprep.mubr.f32.mxu0 0.0
      %2672 = vmatmul.mubr.f32.gmra.mrb[0].mxu0 %v2475
      %v2673 = vpop.f32.mrb[0].mxu0
      %v2674 = vadd.f32 0.0, %v2673
      %v2675 = vpop.f32.mrb[0].mxu0
      %2676 = vmatprep.mubr.f32.mxu0 0.0
      %2677 = vmatmul.mubr.f32.gmra.mrb[0].mxu0 %v2478
      %v2678 = vpop.f32.mrb[0].mxu0
      %v2679 = vadd.f32 0.0, %v2678
      %v2680 = vpop.f32.mrb[0].mxu0
      %2681 = vmatprep.mubr.f32.mxu0 0.0
      %2682 = vmatmul.mubr.f32.gmra.mrb[0].mxu0 %v2481
      %v2683 = vpop.f32.mrb[0].mxu0
      %v2684 = vadd.f32 0.0, %v2683
      %v2685 = vpop.f32.mrb[0].mxu0
      %2686 = vmatprep.mubr.f32.mxu0 0.0
      %2687 = vmatmul.mubr.f32.gmra.mrb[0].mxu0 %v2484
      %v2688 = vpop.f32.mrb[0].mxu0
      %v2689 = vadd.f32 0.0, %v2688
      %v2690 = vpop.f32.mrb[0].mxu0
      %2691 = vmatprep.mubr.f32.mxu0 0.0
      %2692 = vmatmul.mubr.f32.gmra.mrb[0].mxu0 %v2487
      %v2693 = vpop.f32.mrb[0].mxu0
      %v2694 = vadd.f32 0.0, %v2693
      %v2695 = vpop.f32.mrb[0].mxu0
      %2696 = vmatprep.mubr.f32.mxu0 0.0
      %2697 = vmatmul.mubr.f32.gmra.mrb[0].mxu0 %v2490
      %v2698 = vpop.f32.mrb[0].mxu0
      %v2699 = vadd.f32 0.0, %v2698
      %v2700 = vpop.f32.mrb[0].mxu0
      %2701 = vmatprep.mubr.f32.mxu0 0.0
      %2702 = vmatmul.mubr.f32.gmra.mrb[0].mxu0 %v2493
      %v2703 = vpop.f32.mrb[0].mxu0
      %v2704 = vadd.f32 0.0, %v2703
      %v2705 = vpop.f32.mrb[0].mxu0
      %2706 = vmatprep.mubr.f32.mxu0 0.0
      %2707 = vmatmul.mubr.f32.gmra.mrb[0].mxu0 %v2496
      %v2708 = vpop.f32.mrb[0].mxu0
      %v2709 = vadd.f32 0.0, %v2708
      %v2710 = vpop.f32.mrb[0].mxu0
      %2711 = vmatprep.mubr.f32.mxu0 0.0
      %2712 = vmatmul.mubr.f32.gmra.mrb[0].mxu0 %v2499
      %v2713 = vpop.f32.mrb[0].mxu0
      %v2714 = vadd.f32 0.0, %v2713
      %v2715 = vpop.f32.mrb[0].mxu0
      %2716 = vmatprep.mubr.f32.mxu0 0.0
      %2717 = vmatmul.mubr.f32.gmra.mrb[0].mxu0 %v2502
      %v2718 = vpop.f32.mrb[0].mxu0
      %v2719 = vadd.f32 0.0, %v2718
      %v2720 = vpop.f32.mrb[0].mxu0
      %2721 = vmatprep.mubr.f32.mxu0 0.0
      %2722 = vmatmul.mubr.f32.gmra.mrb[0].mxu0 %v2505
      %v2723 = vpop.f32.mrb[0].mxu0
      %v2724 = vadd.f32 0.0, %v2723
      %v2725 = vpop.f32.mrb[0].mxu0
      %2726 = vmatprep.mubr.f32.mxu0 0.0
      %2727 = vmatmul.mubr.f32.gmra.mrb[0].mxu0 %v2508
      %v2728 = vpop.f32.mrb[0].mxu0
      %v2729 = vadd.f32 0.0, %v2728
      %v2730 = vpop.f32.mrb[0].mxu0
      %2731 = vmatprep.mubr.f32.mxu0 0.0
      %2732 = vmatmul.mubr.f32.gmra.mrb[0].mxu0 %v2511
      %v2733 = vpop.f32.mrb[0].mxu0
      %v2734 = vadd.f32 0.0, %v2733
      %v2735 = vpop.f32.mrb[0].mxu0
      %2736 = vmatprep.mubr.f32.mxu0 0.0
      %2737 = vmatmul.mubr.f32.gmra.mrb[0].mxu0 %v2514
      %v2738 = vpop.f32.mrb[0].mxu0
      %v2739 = vadd.f32 0.0, %v2738
      %v2740 = vpop.f32.mrb[0].mxu0
      %2741 = vmatprep.mubr.f32.mxu0 0.0
      %2742 = vmatmul.mubr.f32.gmra.mrb[0].mxu0 %v2517
      %v2743 = vpop.f32.mrb[0].mxu0
      %v2744 = vadd.f32 0.0, %v2743
      %v2745 = vpop.f32.mrb[0].mxu0
      %2746 = vdwg.mxu0
      %v2747 = vadd.f32 %v2357, %v2589
      %v2748 = vadd.f32 %v2358, %v2594
      %v2749 = vadd.f32 %v2359, %v2599
      %v2750 = vadd.f32 %v2360, %v2604
      %v2751 = vadd.f32 %v2361, %v2609
      %v2752 = vadd.f32 %v2362, %v2614
      %v2753 = vadd.f32 %v2363, %v2619
      %v2754 = vadd.f32 %v2364, %v2624
      %v2755 = vadd.f32 %v2365, %v2629
      %v2756 = vadd.f32 %v2366, %v2634
      %v2757 = vadd.f32 %v2367, %v2639
      %v2758 = vadd.f32 %v2368, %v2644
      %v2759 = vadd.f32 %v2369, %v2649
      %v2760 = vadd.f32 %v2370, %v2654
      %v2761 = vadd.f32 %v2371, %v2659
      %v2762 = vadd.f32 %v2372, %v2664
      %v2763 = vadd.f32 %v2373, %v2669
      %v2764 = vadd.f32 %v2374, %v2674
      %v2765 = vadd.f32 %v2375, %v2679
      %v2766 = vadd.f32 %v2376, %v2684
      %v2767 = vadd.f32 %v2377, %v2689
      %v2768 = vadd.f32 %v2378, %v2694
      %v2769 = vadd.f32 %v2379, %v2699
      %v2770 = vadd.f32 %v2380, %v2704
      %v2771 = vadd.f32 %v2381, %v2709
      %v2772 = vadd.f32 %v2382, %v2714
      %v2773 = vadd.f32 %v2383, %v2719
      %v2774 = vadd.f32 %v2384, %v2724
      %v2775 = vadd.f32 %v2385, %v2729
      %v2776 = vadd.f32 %v2386, %v2734
      %v2777 = vadd.f32 %v2387, %v2739
      %v2778 = vadd.f32 %v2388, %v2744
      %s2779 = scalar_lea.vmem [#allocation2], 48
      %v2780 = vld [vmem:[%s2779] sm:$0xff]
      %v2781 = vld [vmem:[%s2779 + $0x8] sm:$0xff]
      %v2782 = vld [vmem:[%s2779 + $0x18] sm:$0xff]
      %v2783 = vld [vmem:[%s2779 + $0x20] sm:$0xff]
      %v2784 = vld [vmem:[%s2779 + $0x30] sm:$0xff]
      %v2785 = vld [vmem:[%s2779 + $0x38] sm:$0xff]
      %v2786 = vld [vmem:[%s2779 + $0x48] sm:$0xff]
      %v2787 = vld [vmem:[%s2779 + $0x50] sm:$0xff]
      %v2788 = vld [vmem:[%s2779 + $0x60] sm:$0xff]
      %v2789 = vld [vmem:[%s2779 + $0x68] sm:$0xff]
      %v2790 = vld [vmem:[%s2779 + $0x78] sm:$0xff]
      %v2791 = vld [vmem:[%s2779 + $0x80] sm:$0xff]
      %v2792 = vld [vmem:[%s2779 + $0x90] sm:$0xff]
      %v2793 = vld [vmem:[%s2779 + $0x98] sm:$0xff]
      %v2794 = vld [vmem:[%s2779 + $0xa8] sm:$0xff]
      %v2795 = vld [vmem:[%s2779 + $0xb0] sm:$0xff]
      %v2796 = vld [vmem:[%s2779 + $0xc0] sm:$0xff]
      %v2797 = vld [vmem:[%s2779 + $0xc8] sm:$0xff]
      %v2798 = vld [vmem:[%s2779 + $0xd8] sm:$0xff]
      %v2799 = vld [vmem:[%s2779 + $0xe0] sm:$0xff]
      %v2800 = vld [vmem:[%s2779 + $0xf0] sm:$0xff]
      %v2801 = vld [vmem:[%s2779 + $0xf8] sm:$0xff]
      %v2802 = vld [vmem:[%s2779 + $0x108] sm:$0xff]
      %v2803 = vld [vmem:[%s2779 + $0x110] sm:$0xff]
      %v2804 = vld [vmem:[%s2779 + $0x120] sm:$0xff]
      %v2805 = vld [vmem:[%s2779 + $0x128] sm:$0xff]
      %v2806 = vld [vmem:[%s2779 + $0x138] sm:$0xff]
      %v2807 = vld [vmem:[%s2779 + $0x140] sm:$0xff]
      %v2808 = vld [vmem:[%s2779 + $0x150] sm:$0xff]
      %v2809 = vld [vmem:[%s2779 + $0x158] sm:$0xff]
      %v2810 = vld [vmem:[%s2779 + $0x168] sm:$0xff]
      %v2811 = vld [vmem:[%s2779 + $0x170] sm:$0xff]
      %s2812 = scalar_lea.vmem %s2, 24
      %v2813 = vld [vmem:[%s2812] sm:$0xf]
      %v2815 = vsel %vm368, %v2780, 0
      %v2818 = vsel %vm368, %v2781, 0
      %v2821 = vsel %vm368, %v2782, 0
      %v2824 = vsel %vm368, %v2783, 0
      %v2827 = vsel %vm368, %v2784, 0
      %v2830 = vsel %vm368, %v2785, 0
      %v2833 = vsel %vm368, %v2786, 0
      %v2836 = vsel %vm368, %v2787, 0
      %v2839 = vsel %vm368, %v2788, 0
      %v2842 = vsel %vm368, %v2789, 0
      %v2845 = vsel %vm368, %v2790, 0
      %v2848 = vsel %vm368, %v2791, 0
      %v2851 = vsel %vm368, %v2792, 0
      %v2854 = vsel %vm368, %v2793, 0
      %v2857 = vsel %vm368, %v2794, 0
      %v2860 = vsel %vm368, %v2795, 0
      %v2863 = vsel %vm368, %v2796, 0
      %v2866 = vsel %vm368, %v2797, 0
      %v2869 = vsel %vm368, %v2798, 0
      %v2872 = vsel %vm368, %v2799, 0
      %v2875 = vsel %vm368, %v2800, 0
      %v2878 = vsel %vm368, %v2801, 0
      %v2881 = vsel %vm368, %v2802, 0
      %v2884 = vsel %vm368, %v2803, 0
      %v2887 = vsel %vm368, %v2804, 0
      %v2890 = vsel %vm368, %v2805, 0
      %v2893 = vsel %vm368, %v2806, 0
      %v2896 = vsel %vm368, %v2807, 0
      %v2899 = vsel %vm368, %v2808, 0
      %v2902 = vsel %vm368, %v2809, 0
      %v2905 = vsel %vm368, %v2810, 0
      %v2908 = vsel %vm368, %v2811, 0
      %v2911 = vsel %vm567, %v2813, 0
      %2913 = vmatprep.subr.mxu0 0.0
      %2914 = vmatpush1.msra.mxu0 %v2911
      %2915 = vmatprep.subr.mxu0 0.0
      %2916 = vmatpush1.msra.mxu0 0.0
      %2917 = vmatprep.subr.mxu0 0.0
      %2918 = vmatpush1.msra.mxu0 0.0
      %2919 = vmatprep.subr.mxu0 0.0
      %2920 = vmatpush1.msra.mxu0 0.0
      %2921 = vmatprep.subr.mxu0 0.0
      %2922 = vmatpush1.msra.mxu0 0.0
      %2923 = vmatprep.subr.mxu0 0.0
      %2924 = vmatpush1.msra.mxu0 0.0
      %2925 = vmatprep.subr.mxu0 0.0
      %2926 = vmatpush1.msra.mxu0 0.0
      %2927 = vmatprep.subr.mxu0 0.0
      %2928 = vmatpush1.msra.mxu0 0.0
      %2929 = vmatprep.subr.mxu0 0.0
      %2930 = vmatpush1.msra.mxu0 0.0
      %2931 = vmatprep.subr.mxu0 0.0
      %2932 = vmatpush1.msra.mxu0 0.0
      %2933 = vmatprep.subr.mxu0 0.0
      %2934 = vmatpush1.msra.mxu0 0.0
      %2935 = vmatprep.subr.mxu0 0.0
      %2936 = vmatpush1.msra.mxu0 0.0
      %2937 = vmatprep.subr.mxu0 0.0
      %2938 = vmatpush1.msra.mxu0 0.0
      %2939 = vmatprep.subr.mxu0 0.0
      %2940 = vmatpush1.msra.mxu0 0.0
      %2941 = vmatprep.subr.mxu0 0.0
      %2942 = vmatpush1.msra.mxu0 0.0
      %2943 = vmatprep.subr.mxu0 0.0
      %2944 = vmatpush1.msra.mxu0 0.0
      %2945 = vmatprep.subr.mxu0 0.0
      %2946 = vmatpush1.msra.mxu0 0.0
      %2947 = vmatprep.subr.mxu0 0.0
      %2948 = vmatpush1.msra.mxu0 0.0
      %2949 = vmatprep.subr.mxu0 0.0
      %2950 = vmatpush1.msra.mxu0 0.0
      %2951 = vmatprep.subr.mxu0 0.0
      %2952 = vmatpush1.msra.mxu0 0.0
      %2953 = vmatprep.subr.mxu0 0.0
      %2954 = vmatpush1.msra.mxu0 0.0
      %2955 = vmatprep.subr.mxu0 0.0
      %2956 = vmatpush1.msra.mxu0 0.0
      %2957 = vmatprep.subr.mxu0 0.0
      %2958 = vmatpush1.msra.mxu0 0.0
      %2959 = vmatprep.subr.mxu0 0.0
      %2960 = vmatpush1.msra.mxu0 0.0
      %2961 = vmatprep.subr.mxu0 0.0
      %2962 = vmatpush1.msra.mxu0 0.0
      %2963 = vmatprep.subr.mxu0 0.0
      %2964 = vmatpush1.msra.mxu0 0.0
      %2965 = vmatprep.subr.mxu0 0.0
      %2966 = vmatpush1.msra.mxu0 0.0
      %2967 = vmatprep.subr.mxu0 0.0
      %2968 = vmatpush1.msra.mxu0 0.0
      %2969 = vmatprep.subr.mxu0 0.0
      %2970 = vmatpush1.msra.mxu0 0.0
      %2971 = vmatprep.subr.mxu0 0.0
      %2972 = vmatpush1.msra.mxu0 0.0
      %2973 = vmatprep.subr.mxu0 0.0
      %2974 = vmatpush1.msra.mxu0 0.0
      %2975 = vmatprep.subr.mxu0 0.0
      %2976 = vmatpush1.msra.mxu0 0.0
      %2977 = vmatprep.mubr.f32.mxu0 0.0
      %2978 = vmatmul.mubr.f32.gmra.mrb[0].mxu0 %v2815
      %v2979 = vpop.f32.mrb[0].mxu0
      %v2980 = vadd.f32 0.0, %v2979
      %v2981 = vpop.f32.mrb[0].mxu0
      %2982 = vmatprep.mubr.f32.mxu0 0.0
      %2983 = vmatmul.mubr.f32.gmra.mrb[0].mxu0 %v2818
      %v2984 = vpop.f32.mrb[0].mxu0
      %v2985 = vadd.f32 0.0, %v2984
      %v2986 = vpop.f32.mrb[0].mxu0
      %2987 = vmatprep.mubr.f32.mxu0 0.0
      %2988 = vmatmul.mubr.f32.gmra.mrb[0].mxu0 %v2821
      %v2989 = vpop.f32.mrb[0].mxu0
      %v2990 = vadd.f32 0.0, %v2989
      %v2991 = vpop.f32.mrb[0].mxu0
      %2992 = vmatprep.mubr.f32.mxu0 0.0
      %2993 = vmatmul.mubr.f32.gmra.mrb[0].mxu0 %v2824
      %v2994 = vpop.f32.mrb[0].mxu0
      %v2995 = vadd.f32 0.0, %v2994
      %v2996 = vpop.f32.mrb[0].mxu0
      %2997 = vmatprep.mubr.f32.mxu0 0.0
      %2998 = vmatmul.mubr.f32.gmra.mrb[0].mxu0 %v2827
      %v2999 = vpop.f32.mrb[0].mxu0
      %v3000 = vadd.f32 0.0, %v2999
      %v3001 = vpop.f32.mrb[0].mxu0
      %3002 = vmatprep.mubr.f32.mxu0 0.0
      %3003 = vmatmul.mubr.f32.gmra.mrb[0].mxu0 %v2830
      %v3004 = vpop.f32.mrb[0].mxu0
      %v3005 = vadd.f32 0.0, %v3004
      %v3006 = vpop.f32.mrb[0].mxu0
      %3007 = vmatprep.mubr.f32.mxu0 0.0
      %3008 = vmatmul.mubr.f32.gmra.mrb[0].mxu0 %v2833
      %v3009 = vpop.f32.mrb[0].mxu0
      %v3010 = vadd.f32 0.0, %v3009
      %v3011 = vpop.f32.mrb[0].mxu0
      %3012 = vmatprep.mubr.f32.mxu0 0.0
      %3013 = vmatmul.mubr.f32.gmra.mrb[0].mxu0 %v2836
      %v3014 = vpop.f32.mrb[0].mxu0
      %v3015 = vadd.f32 0.0, %v3014
      %v3016 = vpop.f32.mrb[0].mxu0
      %3017 = vmatprep.mubr.f32.mxu0 0.0
      %3018 = vmatmul.mubr.f32.gmra.mrb[0].mxu0 %v2839
      %v3019 = vpop.f32.mrb[0].mxu0
      %v3020 = vadd.f32 0.0, %v3019
      %v3021 = vpop.f32.mrb[0].mxu0
      %3022 = vmatprep.mubr.f32.mxu0 0.0
      %3023 = vmatmul.mubr.f32.gmra.mrb[0].mxu0 %v2842
      %v3024 = vpop.f32.mrb[0].mxu0
      %v3025 = vadd.f32 0.0, %v3024
      %v3026 = vpop.f32.mrb[0].mxu0
      %3027 = vmatprep.mubr.f32.mxu0 0.0
      %3028 = vmatmul.mubr.f32.gmra.mrb[0].mxu0 %v2845
      %v3029 = vpop.f32.mrb[0].mxu0
      %v3030 = vadd.f32 0.0, %v3029
      %v3031 = vpop.f32.mrb[0].mxu0
      %3032 = vmatprep.mubr.f32.mxu0 0.0
      %3033 = vmatmul.mubr.f32.gmra.mrb[0].mxu0 %v2848
      %v3034 = vpop.f32.mrb[0].mxu0
      %v3035 = vadd.f32 0.0, %v3034
      %v3036 = vpop.f32.mrb[0].mxu0
      %3037 = vmatprep.mubr.f32.mxu0 0.0
      %3038 = vmatmul.mubr.f32.gmra.mrb[0].mxu0 %v2851
      %v3039 = vpop.f32.mrb[0].mxu0
      %v3040 = vadd.f32 0.0, %v3039
      %v3041 = vpop.f32.mrb[0].mxu0
      %3042 = vmatprep.mubr.f32.mxu0 0.0
      %3043 = vmatmul.mubr.f32.gmra.mrb[0].mxu0 %v2854
      %v3044 = vpop.f32.mrb[0].mxu0
      %v3045 = vadd.f32 0.0, %v3044
      %v3046 = vpop.f32.mrb[0].mxu0
      %3047 = vmatprep.mubr.f32.mxu0 0.0
      %3048 = vmatmul.mubr.f32.gmra.mrb[0].mxu0 %v2857
      %v3049 = vpop.f32.mrb[0].mxu0
      %v3050 = vadd.f32 0.0, %v3049
      %v3051 = vpop.f32.mrb[0].mxu0
      %3052 = vmatprep.mubr.f32.mxu0 0.0
      %3053 = vmatmul.mubr.f32.gmra.mrb[0].mxu0 %v2860
      %v3054 = vpop.f32.mrb[0].mxu0
      %v3055 = vadd.f32 0.0, %v3054
      %v3056 = vpop.f32.mrb[0].mxu0
      %3057 = vmatprep.mubr.f32.mxu0 0.0
      %3058 = vmatmul.mubr.f32.gmra.mrb[0].mxu0 %v2863
      %v3059 = vpop.f32.mrb[0].mxu0
      %v3060 = vadd.f32 0.0, %v3059
      %v3061 = vpop.f32.mrb[0].mxu0
      %3062 = vmatprep.mubr.f32.mxu0 0.0
      %3063 = vmatmul.mubr.f32.gmra.mrb[0].mxu0 %v2866
      %v3064 = vpop.f32.mrb[0].mxu0
      %v3065 = vadd.f32 0.0, %v3064
      %v3066 = vpop.f32.mrb[0].mxu0
      %3067 = vmatprep.mubr.f32.mxu0 0.0
      %3068 = vmatmul.mubr.f32.gmra.mrb[0].mxu0 %v2869
      %v3069 = vpop.f32.mrb[0].mxu0
      %v3070 = vadd.f32 0.0, %v3069
      %v3071 = vpop.f32.mrb[0].mxu0
      %3072 = vmatprep.mubr.f32.mxu0 0.0
      %3073 = vmatmul.mubr.f32.gmra.mrb[0].mxu0 %v2872
      %v3074 = vpop.f32.mrb[0].mxu0
      %v3075 = vadd.f32 0.0, %v3074
      %v3076 = vpop.f32.mrb[0].mxu0
      %3077 = vmatprep.mubr.f32.mxu0 0.0
      %3078 = vmatmul.mubr.f32.gmra.mrb[0].mxu0 %v2875
      %v3079 = vpop.f32.mrb[0].mxu0
      %v3080 = vadd.f32 0.0, %v3079
      %v3081 = vpop.f32.mrb[0].mxu0
      %3082 = vmatprep.mubr.f32.mxu0 0.0
      %3083 = vmatmul.mubr.f32.gmra.mrb[0].mxu0 %v2878
      %v3084 = vpop.f32.mrb[0].mxu0
      %v3085 = vadd.f32 0.0, %v3084
      %v3086 = vpop.f32.mrb[0].mxu0
      %3087 = vmatprep.mubr.f32.mxu0 0.0
      %3088 = vmatmul.mubr.f32.gmra.mrb[0].mxu0 %v2881
      %v3089 = vpop.f32.mrb[0].mxu0
      %v3090 = vadd.f32 0.0, %v3089
      %v3091 = vpop.f32.mrb[0].mxu0
      %3092 = vmatprep.mubr.f32.mxu0 0.0
      %3093 = vmatmul.mubr.f32.gmra.mrb[0].mxu0 %v2884
      %v3094 = vpop.f32.mrb[0].mxu0
      %v3095 = vadd.f32 0.0, %v3094
      %v3096 = vpop.f32.mrb[0].mxu0
      %3097 = vmatprep.mubr.f32.mxu0 0.0
      %3098 = vmatmul.mubr.f32.gmra.mrb[0].mxu0 %v2887
      %v3099 = vpop.f32.mrb[0].mxu0
      %v3100 = vadd.f32 0.0, %v3099
      %v3101 = vpop.f32.mrb[0].mxu0
      %3102 = vmatprep.mubr.f32.mxu0 0.0
      %3103 = vmatmul.mubr.f32.gmra.mrb[0].mxu0 %v2890
      %v3104 = vpop.f32.mrb[0].mxu0
      %v3105 = vadd.f32 0.0, %v3104
      %v3106 = vpop.f32.mrb[0].mxu0
      %3107 = vmatprep.mubr.f32.mxu0 0.0
      %3108 = vmatmul.mubr.f32.gmra.mrb[0].mxu0 %v2893
      %v3109 = vpop.f32.mrb[0].mxu0
      %v3110 = vadd.f32 0.0, %v3109
      %v3111 = vpop.f32.mrb[0].mxu0
      %3112 = vmatprep.mubr.f32.mxu0 0.0
      %3113 = vmatmul.mubr.f32.gmra.mrb[0].mxu0 %v2896
      %v3114 = vpop.f32.mrb[0].mxu0
      %v3115 = vadd.f32 0.0, %v3114
      %v3116 = vpop.f32.mrb[0].mxu0
      %3117 = vmatprep.mubr.f32.mxu0 0.0
      %3118 = vmatmul.mubr.f32.gmra.mrb[0].mxu0 %v2899
      %v3119 = vpop.f32.mrb[0].mxu0
      %v3120 = vadd.f32 0.0, %v3119
      %v3121 = vpop.f32.mrb[0].mxu0
      %3122 = vmatprep.mubr.f32.mxu0 0.0
      %3123 = vmatmul.mubr.f32.gmra.mrb[0].mxu0 %v2902
      %v3124 = vpop.f32.mrb[0].mxu0
      %v3125 = vadd.f32 0.0, %v3124
      %v3126 = vpop.f32.mrb[0].mxu0
      %3127 = vmatprep.mubr.f32.mxu0 0.0
      %3128 = vmatmul.mubr.f32.gmra.mrb[0].mxu0 %v2905
      %v3129 = vpop.f32.mrb[0].mxu0
      %v3130 = vadd.f32 0.0, %v3129
      %v3131 = vpop.f32.mrb[0].mxu0
      %3132 = vmatprep.mubr.f32.mxu0 0.0
      %3133 = vmatmul.mubr.f32.gmra.mrb[0].mxu0 %v2908
      %v3134 = vpop.f32.mrb[0].mxu0
      %v3135 = vadd.f32 0.0, %v3134
      %v3136 = vpop.f32.mrb[0].mxu0
      %3137 = vdwg.mxu0
      %v3138 = vadd.f32 %v2747, %v2980
      %v3139 = vadd.f32 %v2748, %v2985
      %v3140 = vadd.f32 %v2749, %v2990
      %v3141 = vadd.f32 %v2750, %v2995
      %v3142 = vadd.f32 %v2751, %v3000
      %v3143 = vadd.f32 %v2752, %v3005
      %v3144 = vadd.f32 %v2753, %v3010
      %v3145 = vadd.f32 %v2754, %v3015
      %v3146 = vadd.f32 %v2755, %v3020
      %v3147 = vadd.f32 %v2756, %v3025
      %v3148 = vadd.f32 %v2757, %v3030
      %v3149 = vadd.f32 %v2758, %v3035
      %v3150 = vadd.f32 %v2759, %v3040
      %v3151 = vadd.f32 %v2760, %v3045
      %v3152 = vadd.f32 %v2761, %v3050
      %v3153 = vadd.f32 %v2762, %v3055
      %v3154 = vadd.f32 %v2763, %v3060
      %v3155 = vadd.f32 %v2764, %v3065
      %v3156 = vadd.f32 %v2765, %v3070
      %v3157 = vadd.f32 %v2766, %v3075
      %v3158 = vadd.f32 %v2767, %v3080
      %v3159 = vadd.f32 %v2768, %v3085
      %v3160 = vadd.f32 %v2769, %v3090
      %v3161 = vadd.f32 %v2770, %v3095
      %v3162 = vadd.f32 %v2771, %v3100
      %v3163 = vadd.f32 %v2772, %v3105
      %v3164 = vadd.f32 %v2773, %v3110
      %v3165 = vadd.f32 %v2774, %v3115
      %v3166 = vadd.f32 %v2775, %v3120
      %v3167 = vadd.f32 %v2776, %v3125
      %v3168 = vadd.f32 %v2777, %v3130
      %v3169 = vadd.f32 %v2778, %v3135
      %v3170 = vld [vmem:[%s2779 + $0x1] sm:$0xff]
      %v3171 = vld [vmem:[%s2779 + $0x9] sm:$0xff]
      %v3172 = vld [vmem:[%s2779 + $0x19] sm:$0xff]
      %v3173 = vld [vmem:[%s2779 + $0x21] sm:$0xff]
      %v3174 = vld [vmem:[%s2779 + $0x31] sm:$0xff]
      %v3175 = vld [vmem:[%s2779 + $0x39] sm:$0xff]
      %v3176 = vld [vmem:[%s2779 + $0x49] sm:$0xff]
      %v3177 = vld [vmem:[%s2779 + $0x51] sm:$0xff]
      %v3178 = vld [vmem:[%s2779 + $0x61] sm:$0xff]
      %v3179 = vld [vmem:[%s2779 + $0x69] sm:$0xff]
      %v3180 = vld [vmem:[%s2779 + $0x79] sm:$0xff]
      %v3181 = vld [vmem:[%s2779 + $0x81] sm:$0xff]
      %v3182 = vld [vmem:[%s2779 + $0x91] sm:$0xff]
      %v3183 = vld [vmem:[%s2779 + $0x99] sm:$0xff]
      %v3184 = vld [vmem:[%s2779 + $0xa9] sm:$0xff]
      %v3185 = vld [vmem:[%s2779 + $0xb1] sm:$0xff]
      %v3186 = vld [vmem:[%s2779 + $0xc1] sm:$0xff]
      %v3187 = vld [vmem:[%s2779 + $0xc9] sm:$0xff]
      %v3188 = vld [vmem:[%s2779 + $0xd9] sm:$0xff]
      %v3189 = vld [vmem:[%s2779 + $0xe1] sm:$0xff]
      %v3190 = vld [vmem:[%s2779 + $0xf1] sm:$0xff]
      %v3191 = vld [vmem:[%s2779 + $0xf9] sm:$0xff]
      %v3192 = vld [vmem:[%s2779 + $0x109] sm:$0xff]
      %v3193 = vld [vmem:[%s2779 + $0x111] sm:$0xff]
      %v3194 = vld [vmem:[%s2779 + $0x121] sm:$0xff]
      %v3195 = vld [vmem:[%s2779 + $0x129] sm:$0xff]
      %v3196 = vld [vmem:[%s2779 + $0x139] sm:$0xff]
      %v3197 = vld [vmem:[%s2779 + $0x141] sm:$0xff]
      %v3198 = vld [vmem:[%s2779 + $0x151] sm:$0xff]
      %v3199 = vld [vmem:[%s2779 + $0x159] sm:$0xff]
      %v3200 = vld [vmem:[%s2779 + $0x169] sm:$0xff]
      %v3201 = vld [vmem:[%s2779 + $0x171] sm:$0xff]
      %s3202 = scalar_lea.vmem %s2, 28
      %v3203 = vld [vmem:[%s3202] sm:$0xf]
      %v3205 = vsel %vm368, %v3170, 0
      %v3208 = vsel %vm368, %v3171, 0
      %v3211 = vsel %vm368, %v3172, 0
      %v3214 = vsel %vm368, %v3173, 0
      %v3217 = vsel %vm368, %v3174, 0
      %v3220 = vsel %vm368, %v3175, 0
      %v3223 = vsel %vm368, %v3176, 0
      %v3226 = vsel %vm368, %v3177, 0
      %v3229 = vsel %vm368, %v3178, 0
      %v3232 = vsel %vm368, %v3179, 0
      %v3235 = vsel %vm368, %v3180, 0
      %v3238 = vsel %vm368, %v3181, 0
      %v3241 = vsel %vm368, %v3182, 0
      %v3244 = vsel %vm368, %v3183, 0
      %v3247 = vsel %vm368, %v3184, 0
      %v3250 = vsel %vm368, %v3185, 0
      %v3253 = vsel %vm368, %v3186, 0
      %v3256 = vsel %vm368, %v3187, 0
      %v3259 = vsel %vm368, %v3188, 0
      %v3262 = vsel %vm368, %v3189, 0
      %v3265 = vsel %vm368, %v3190, 0
      %v3268 = vsel %vm368, %v3191, 0
      %v3271 = vsel %vm368, %v3192, 0
      %v3274 = vsel %vm368, %v3193, 0
      %v3277 = vsel %vm368, %v3194, 0
      %v3280 = vsel %vm368, %v3195, 0
      %v3283 = vsel %vm368, %v3196, 0
      %v3286 = vsel %vm368, %v3197, 0
      %v3289 = vsel %vm368, %v3198, 0
      %v3292 = vsel %vm368, %v3199, 0
      %v3295 = vsel %vm368, %v3200, 0
      %v3298 = vsel %vm368, %v3201, 0
      %v3301 = vsel %vm567, %v3203, 0
      %3303 = vmatprep.subr.mxu0 0.0
      %3304 = vmatpush1.msra.mxu0 %v3301
      %3305 = vmatprep.subr.mxu0 0.0
      %3306 = vmatpush1.msra.mxu0 0.0
      %3307 = vmatprep.subr.mxu0 0.0
      %3308 = vmatpush1.msra.mxu0 0.0
      %3309 = vmatprep.subr.mxu0 0.0
      %3310 = vmatpush1.msra.mxu0 0.0
      %3311 = vmatprep.subr.mxu0 0.0
      %3312 = vmatpush1.msra.mxu0 0.0
      %3313 = vmatprep.subr.mxu0 0.0
      %3314 = vmatpush1.msra.mxu0 0.0
      %3315 = vmatprep.subr.mxu0 0.0
      %3316 = vmatpush1.msra.mxu0 0.0
      %3317 = vmatprep.subr.mxu0 0.0
      %3318 = vmatpush1.msra.mxu0 0.0
      %3319 = vmatprep.subr.mxu0 0.0
      %3320 = vmatpush1.msra.mxu0 0.0
      %3321 = vmatprep.subr.mxu0 0.0
      %3322 = vmatpush1.msra.mxu0 0.0
      %3323 = vmatprep.subr.mxu0 0.0
      %3324 = vmatpush1.msra.mxu0 0.0
      %3325 = vmatprep.subr.mxu0 0.0
      %3326 = vmatpush1.msra.mxu0 0.0
      %3327 = vmatprep.subr.mxu0 0.0
      %3328 = vmatpush1.msra.mxu0 0.0
      %3329 = vmatprep.subr.mxu0 0.0
      %3330 = vmatpush1.msra.mxu0 0.0
      %3331 = vmatprep.subr.mxu0 0.0
      %3332 = vmatpush1.msra.mxu0 0.0
      %3333 = vmatprep.subr.mxu0 0.0
      %3334 = vmatpush1.msra.mxu0 0.0
      %3335 = vmatprep.subr.mxu0 0.0
      %3336 = vmatpush1.msra.mxu0 0.0
      %3337 = vmatprep.subr.mxu0 0.0
      %3338 = vmatpush1.msra.mxu0 0.0
      %3339 = vmatprep.subr.mxu0 0.0
      %3340 = vmatpush1.msra.mxu0 0.0
      %3341 = vmatprep.subr.mxu0 0.0
      %3342 = vmatpush1.msra.mxu0 0.0
      %3343 = vmatprep.subr.mxu0 0.0
      %3344 = vmatpush1.msra.mxu0 0.0
      %3345 = vmatprep.subr.mxu0 0.0
      %3346 = vmatpush1.msra.mxu0 0.0
      %3347 = vmatprep.subr.mxu0 0.0
      %3348 = vmatpush1.msra.mxu0 0.0
      %3349 = vmatprep.subr.mxu0 0.0
      %3350 = vmatpush1.msra.mxu0 0.0
      %3351 = vmatprep.subr.mxu0 0.0
      %3352 = vmatpush1.msra.mxu0 0.0
      %3353 = vmatprep.subr.mxu0 0.0
      %3354 = vmatpush1.msra.mxu0 0.0
      %3355 = vmatprep.subr.mxu0 0.0
      %3356 = vmatpush1.msra.mxu0 0.0
      %3357 = vmatprep.subr.mxu0 0.0
      %3358 = vmatpush1.msra.mxu0 0.0
      %3359 = vmatprep.subr.mxu0 0.0
      %3360 = vmatpush1.msra.mxu0 0.0
      %3361 = vmatprep.subr.mxu0 0.0
      %3362 = vmatpush1.msra.mxu0 0.0
      %3363 = vmatprep.subr.mxu0 0.0
      %3364 = vmatpush1.msra.mxu0 0.0
      %3365 = vmatprep.subr.mxu0 0.0
      %3366 = vmatpush1.msra.mxu0 0.0
      %3367 = vmatprep.mubr.f32.mxu0 0.0
      %3368 = vmatmul.mubr.f32.gmra.mrb[0].mxu0 %v3205
      %v3369 = vpop.f32.mrb[0].mxu0
      %v3370 = vadd.f32 0.0, %v3369
      %v3371 = vpop.f32.mrb[0].mxu0
      %3372 = vmatprep.mubr.f32.mxu0 0.0
      %3373 = vmatmul.mubr.f32.gmra.mrb[0].mxu0 %v3208
      %v3374 = vpop.f32.mrb[0].mxu0
      %v3375 = vadd.f32 0.0, %v3374
      %v3376 = vpop.f32.mrb[0].mxu0
      %3377 = vmatprep.mubr.f32.mxu0 0.0
      %3378 = vmatmul.mubr.f32.gmra.mrb[0].mxu0 %v3211
      %v3379 = vpop.f32.mrb[0].mxu0
      %v3380 = vadd.f32 0.0, %v3379
      %v3381 = vpop.f32.mrb[0].mxu0
      %3382 = vmatprep.mubr.f32.mxu0 0.0
      %3383 = vmatmul.mubr.f32.gmra.mrb[0].mxu0 %v3214
      %v3384 = vpop.f32.mrb[0].mxu0
      %v3385 = vadd.f32 0.0, %v3384
      %v3386 = vpop.f32.mrb[0].mxu0
      %3387 = vmatprep.mubr.f32.mxu0 0.0
      %3388 = vmatmul.mubr.f32.gmra.mrb[0].mxu0 %v3217
      %v3389 = vpop.f32.mrb[0].mxu0
      %v3390 = vadd.f32 0.0, %v3389
      %v3391 = vpop.f32.mrb[0].mxu0
      %3392 = vmatprep.mubr.f32.mxu0 0.0
      %3393 = vmatmul.mubr.f32.gmra.mrb[0].mxu0 %v3220
      %v3394 = vpop.f32.mrb[0].mxu0
      %v3395 = vadd.f32 0.0, %v3394
      %v3396 = vpop.f32.mrb[0].mxu0
      %3397 = vmatprep.mubr.f32.mxu0 0.0
      %3398 = vmatmul.mubr.f32.gmra.mrb[0].mxu0 %v3223
      %v3399 = vpop.f32.mrb[0].mxu0
      %v3400 = vadd.f32 0.0, %v3399
      %v3401 = vpop.f32.mrb[0].mxu0
      %3402 = vmatprep.mubr.f32.mxu0 0.0
      %3403 = vmatmul.mubr.f32.gmra.mrb[0].mxu0 %v3226
      %v3404 = vpop.f32.mrb[0].mxu0
      %v3405 = vadd.f32 0.0, %v3404
      %v3406 = vpop.f32.mrb[0].mxu0
      %3407 = vmatprep.mubr.f32.mxu0 0.0
      %3408 = vmatmul.mubr.f32.gmra.mrb[0].mxu0 %v3229
      %v3409 = vpop.f32.mrb[0].mxu0
      %v3410 = vadd.f32 0.0, %v3409
      %v3411 = vpop.f32.mrb[0].mxu0
      %3412 = vmatprep.mubr.f32.mxu0 0.0
      %3413 = vmatmul.mubr.f32.gmra.mrb[0].mxu0 %v3232
      %v3414 = vpop.f32.mrb[0].mxu0
      %v3415 = vadd.f32 0.0, %v3414
      %v3416 = vpop.f32.mrb[0].mxu0
      %3417 = vmatprep.mubr.f32.mxu0 0.0
      %3418 = vmatmul.mubr.f32.gmra.mrb[0].mxu0 %v3235
      %v3419 = vpop.f32.mrb[0].mxu0
      %v3420 = vadd.f32 0.0, %v3419
      %v3421 = vpop.f32.mrb[0].mxu0
      %3422 = vmatprep.mubr.f32.mxu0 0.0
      %3423 = vmatmul.mubr.f32.gmra.mrb[0].mxu0 %v3238
      %v3424 = vpop.f32.mrb[0].mxu0
      %v3425 = vadd.f32 0.0, %v3424
      %v3426 = vpop.f32.mrb[0].mxu0
      %3427 = vmatprep.mubr.f32.mxu0 0.0
      %3428 = vmatmul.mubr.f32.gmra.mrb[0].mxu0 %v3241
      %v3429 = vpop.f32.mrb[0].mxu0
      %v3430 = vadd.f32 0.0, %v3429
      %v3431 = vpop.f32.mrb[0].mxu0
      %3432 = vmatprep.mubr.f32.mxu0 0.0
      %3433 = vmatmul.mubr.f32.gmra.mrb[0].mxu0 %v3244
      %v3434 = vpop.f32.mrb[0].mxu0
      %v3435 = vadd.f32 0.0, %v3434
      %v3436 = vpop.f32.mrb[0].mxu0
      %3437 = vmatprep.mubr.f32.mxu0 0.0
      %3438 = vmatmul.mubr.f32.gmra.mrb[0].mxu0 %v3247
      %v3439 = vpop.f32.mrb[0].mxu0
      %v3440 = vadd.f32 0.0, %v3439
      %v3441 = vpop.f32.mrb[0].mxu0
      %3442 = vmatprep.mubr.f32.mxu0 0.0
      %3443 = vmatmul.mubr.f32.gmra.mrb[0].mxu0 %v3250
      %v3444 = vpop.f32.mrb[0].mxu0
      %v3445 = vadd.f32 0.0, %v3444
      %v3446 = vpop.f32.mrb[0].mxu0
      %3447 = vmatprep.mubr.f32.mxu0 0.0
      %3448 = vmatmul.mubr.f32.gmra.mrb[0].mxu0 %v3253
      %v3449 = vpop.f32.mrb[0].mxu0
      %v3450 = vadd.f32 0.0, %v3449
      %v3451 = vpop.f32.mrb[0].mxu0
      %3452 = vmatprep.mubr.f32.mxu0 0.0
      %3453 = vmatmul.mubr.f32.gmra.mrb[0].mxu0 %v3256
      %v3454 = vpop.f32.mrb[0].mxu0
      %v3455 = vadd.f32 0.0, %v3454
      %v3456 = vpop.f32.mrb[0].mxu0
      %3457 = vmatprep.mubr.f32.mxu0 0.0
      %3458 = vmatmul.mubr.f32.gmra.mrb[0].mxu0 %v3259
      %v3459 = vpop.f32.mrb[0].mxu0
      %v3460 = vadd.f32 0.0, %v3459
      %v3461 = vpop.f32.mrb[0].mxu0
      %3462 = vmatprep.mubr.f32.mxu0 0.0
      %3463 = vmatmul.mubr.f32.gmra.mrb[0].mxu0 %v3262
      %v3464 = vpop.f32.mrb[0].mxu0
      %v3465 = vadd.f32 0.0, %v3464
      %v3466 = vpop.f32.mrb[0].mxu0
      %3467 = vmatprep.mubr.f32.mxu0 0.0
      %3468 = vmatmul.mubr.f32.gmra.mrb[0].mxu0 %v3265
      %v3469 = vpop.f32.mrb[0].mxu0
      %v3470 = vadd.f32 0.0, %v3469
      %v3471 = vpop.f32.mrb[0].mxu0
      %3472 = vmatprep.mubr.f32.mxu0 0.0
      %3473 = vmatmul.mubr.f32.gmra.mrb[0].mxu0 %v3268
      %v3474 = vpop.f32.mrb[0].mxu0
      %v3475 = vadd.f32 0.0, %v3474
      %v3476 = vpop.f32.mrb[0].mxu0
      %3477 = vmatprep.mubr.f32.mxu0 0.0
      %3478 = vmatmul.mubr.f32.gmra.mrb[0].mxu0 %v3271
      %v3479 = vpop.f32.mrb[0].mxu0
      %v3480 = vadd.f32 0.0, %v3479
      %v3481 = vpop.f32.mrb[0].mxu0
      %3482 = vmatprep.mubr.f32.mxu0 0.0
      %3483 = vmatmul.mubr.f32.gmra.mrb[0].mxu0 %v3274
      %v3484 = vpop.f32.mrb[0].mxu0
      %v3485 = vadd.f32 0.0, %v3484
      %v3486 = vpop.f32.mrb[0].mxu0
      %3487 = vmatprep.mubr.f32.mxu0 0.0
      %3488 = vmatmul.mubr.f32.gmra.mrb[0].mxu0 %v3277
      %v3489 = vpop.f32.mrb[0].mxu0
      %v3490 = vadd.f32 0.0, %v3489
      %v3491 = vpop.f32.mrb[0].mxu0
      %3492 = vmatprep.mubr.f32.mxu0 0.0
      %3493 = vmatmul.mubr.f32.gmra.mrb[0].mxu0 %v3280
      %v3494 = vpop.f32.mrb[0].mxu0
      %v3495 = vadd.f32 0.0, %v3494
      %v3496 = vpop.f32.mrb[0].mxu0
      %3497 = vmatprep.mubr.f32.mxu0 0.0
      %3498 = vmatmul.mubr.f32.gmra.mrb[0].mxu0 %v3283
      %v3499 = vpop.f32.mrb[0].mxu0
      %v3500 = vadd.f32 0.0, %v3499
      %v3501 = vpop.f32.mrb[0].mxu0
      %3502 = vmatprep.mubr.f32.mxu0 0.0
      %3503 = vmatmul.mubr.f32.gmra.mrb[0].mxu0 %v3286
      %v3504 = vpop.f32.mrb[0].mxu0
      %v3505 = vadd.f32 0.0, %v3504
      %v3506 = vpop.f32.mrb[0].mxu0
      %3507 = vmatprep.mubr.f32.mxu0 0.0
      %3508 = vmatmul.mubr.f32.gmra.mrb[0].mxu0 %v3289
      %v3509 = vpop.f32.mrb[0].mxu0
      %v3510 = vadd.f32 0.0, %v3509
      %v3511 = vpop.f32.mrb[0].mxu0
      %3512 = vmatprep.mubr.f32.mxu0 0.0
      %3513 = vmatmul.mubr.f32.gmra.mrb[0].mxu0 %v3292
      %v3514 = vpop.f32.mrb[0].mxu0
      %v3515 = vadd.f32 0.0, %v3514
      %v3516 = vpop.f32.mrb[0].mxu0
      %3517 = vmatprep.mubr.f32.mxu0 0.0
      %3518 = vmatmul.mubr.f32.gmra.mrb[0].mxu0 %v3295
      %v3519 = vpop.f32.mrb[0].mxu0
      %v3520 = vadd.f32 0.0, %v3519
      %v3521 = vpop.f32.mrb[0].mxu0
      %3522 = vmatprep.mubr.f32.mxu0 0.0
      %3523 = vmatmul.mubr.f32.gmra.mrb[0].mxu0 %v3298
      %v3524 = vpop.f32.mrb[0].mxu0
      %v3525 = vadd.f32 0.0, %v3524
      %v3526 = vpop.f32.mrb[0].mxu0
      %3527 = vdwg.mxu0
      %v3528 = vadd.f32 %v3138, %v3370
      %v3529 = vadd.f32 %v3139, %v3375
      %v3530 = vadd.f32 %v3140, %v3380
      %v3531 = vadd.f32 %v3141, %v3385
      %v3532 = vadd.f32 %v3142, %v3390
      %v3533 = vadd.f32 %v3143, %v3395
      %v3534 = vadd.f32 %v3144, %v3400
      %v3535 = vadd.f32 %v3145, %v3405
      %v3536 = vadd.f32 %v3146, %v3410
      %v3537 = vadd.f32 %v3147, %v3415
      %v3538 = vadd.f32 %v3148, %v3420
      %v3539 = vadd.f32 %v3149, %v3425
      %v3540 = vadd.f32 %v3150, %v3430
      %v3541 = vadd.f32 %v3151, %v3435
      %v3542 = vadd.f32 %v3152, %v3440
      %v3543 = vadd.f32 %v3153, %v3445
      %v3544 = vadd.f32 %v3154, %v3450
      %v3545 = vadd.f32 %v3155, %v3455
      %v3546 = vadd.f32 %v3156, %v3460
      %v3547 = vadd.f32 %v3157, %v3465
      %v3548 = vadd.f32 %v3158, %v3470
      %v3549 = vadd.f32 %v3159, %v3475
      %v3550 = vadd.f32 %v3160, %v3480
      %v3551 = vadd.f32 %v3161, %v3485
      %v3552 = vadd.f32 %v3162, %v3490
      %v3553 = vadd.f32 %v3163, %v3495
      %v3554 = vadd.f32 %v3164, %v3500
      %v3555 = vadd.f32 %v3165, %v3505
      %v3556 = vadd.f32 %v3166, %v3510
      %v3557 = vadd.f32 %v3167, %v3515
      %v3558 = vadd.f32 %v3168, %v3520
      %v3559 = vadd.f32 %v3169, %v3525
      %v3560 = vld [vmem:[%s2779 + $0x2] sm:$0xff]
      %v3561 = vld [vmem:[%s2779 + $0xa] sm:$0xff]
      %v3562 = vld [vmem:[%s2779 + $0x1a] sm:$0xff]
      %v3563 = vld [vmem:[%s2779 + $0x22] sm:$0xff]
      %v3564 = vld [vmem:[%s2779 + $0x32] sm:$0xff]
      %v3565 = vld [vmem:[%s2779 + $0x3a] sm:$0xff]
      %v3566 = vld [vmem:[%s2779 + $0x4a] sm:$0xff]
      %v3567 = vld [vmem:[%s2779 + $0x52] sm:$0xff]
      %v3568 = vld [vmem:[%s2779 + $0x62] sm:$0xff]
      %v3569 = vld [vmem:[%s2779 + $0x6a] sm:$0xff]
      %v3570 = vld [vmem:[%s2779 + $0x7a] sm:$0xff]
      %v3571 = vld [vmem:[%s2779 + $0x82] sm:$0xff]
      %v3572 = vld [vmem:[%s2779 + $0x92] sm:$0xff]
      %v3573 = vld [vmem:[%s2779 + $0x9a] sm:$0xff]
      %v3574 = vld [vmem:[%s2779 + $0xaa] sm:$0xff]
      %v3575 = vld [vmem:[%s2779 + $0xb2] sm:$0xff]
      %v3576 = vld [vmem:[%s2779 + $0xc2] sm:$0xff]
      %v3577 = vld [vmem:[%s2779 + $0xca] sm:$0xff]
      %v3578 = vld [vmem:[%s2779 + $0xda] sm:$0xff]
      %v3579 = vld [vmem:[%s2779 + $0xe2] sm:$0xff]
      %v3580 = vld [vmem:[%s2779 + $0xf2] sm:$0xff]
      %v3581 = vld [vmem:[%s2779 + $0xfa] sm:$0xff]
      %v3582 = vld [vmem:[%s2779 + $0x10a] sm:$0xff]
      %v3583 = vld [vmem:[%s2779 + $0x112] sm:$0xff]
      %v3584 = vld [vmem:[%s2779 + $0x122] sm:$0xff]
      %v3585 = vld [vmem:[%s2779 + $0x12a] sm:$0xff]
      %v3586 = vld [vmem:[%s2779 + $0x13a] sm:$0xff]
      %v3587 = vld [vmem:[%s2779 + $0x142] sm:$0xff]
      %v3588 = vld [vmem:[%s2779 + $0x152] sm:$0xff]
      %v3589 = vld [vmem:[%s2779 + $0x15a] sm:$0xff]
      %v3590 = vld [vmem:[%s2779 + $0x16a] sm:$0xff]
      %v3591 = vld [vmem:[%s2779 + $0x172] sm:$0xff]
      %s3592 = scalar_lea.vmem %s2, 32
      %v3593 = vld [vmem:[%s3592] sm:$0xf]
      %v3595 = vsel %vm368, %v3560, 0
      %v3598 = vsel %vm368, %v3561, 0
      %v3601 = vsel %vm368, %v3562, 0
      %v3604 = vsel %vm368, %v3563, 0
      %v3607 = vsel %vm368, %v3564, 0
      %v3610 = vsel %vm368, %v3565, 0
      %v3613 = vsel %vm368, %v3566, 0
      %v3616 = vsel %vm368, %v3567, 0
      %v3619 = vsel %vm368, %v3568, 0
      %v3622 = vsel %vm368, %v3569, 0
      %v3625 = vsel %vm368, %v3570, 0
      %v3628 = vsel %vm368, %v3571, 0
      %v3631 = vsel %vm368, %v3572, 0
      %v3634 = vsel %vm368, %v3573, 0
      %v3637 = vsel %vm368, %v3574, 0
      %v3640 = vsel %vm368, %v3575, 0
      %v3643 = vsel %vm368, %v3576, 0
      %v3646 = vsel %vm368, %v3577, 0
      %v3649 = vsel %vm368, %v3578, 0
      %v3652 = vsel %vm368, %v3579, 0
      %v3655 = vsel %vm368, %v3580, 0
      %v3658 = vsel %vm368, %v3581, 0
      %v3661 = vsel %vm368, %v3582, 0
      %v3664 = vsel %vm368, %v3583, 0
      %v3667 = vsel %vm368, %v3584, 0
      %v3670 = vsel %vm368, %v3585, 0
      %v3673 = vsel %vm368, %v3586, 0
      %v3676 = vsel %vm368, %v3587, 0
      %v3679 = vsel %vm368, %v3588, 0
      %v3682 = vsel %vm368, %v3589, 0
      %v3685 = vsel %vm368, %v3590, 0
      %v3688 = vsel %vm368, %v3591, 0
      %v3691 = vsel %vm567, %v3593, 0
      %3693 = vmatprep.subr.mxu0 0.0
      %3694 = vmatpush1.msra.mxu0 %v3691
      %3695 = vmatprep.subr.mxu0 0.0
      %3696 = vmatpush1.msra.mxu0 0.0
      %3697 = vmatprep.subr.mxu0 0.0
      %3698 = vmatpush1.msra.mxu0 0.0
      %3699 = vmatprep.subr.mxu0 0.0
      %3700 = vmatpush1.msra.mxu0 0.0
      %3701 = vmatprep.subr.mxu0 0.0
      %3702 = vmatpush1.msra.mxu0 0.0
      %3703 = vmatprep.subr.mxu0 0.0
      %3704 = vmatpush1.msra.mxu0 0.0
      %3705 = vmatprep.subr.mxu0 0.0
      %3706 = vmatpush1.msra.mxu0 0.0
      %3707 = vmatprep.subr.mxu0 0.0
      %3708 = vmatpush1.msra.mxu0 0.0
      %3709 = vmatprep.subr.mxu0 0.0
      %3710 = vmatpush1.msra.mxu0 0.0
      %3711 = vmatprep.subr.mxu0 0.0
      %3712 = vmatpush1.msra.mxu0 0.0
      %3713 = vmatprep.subr.mxu0 0.0
      %3714 = vmatpush1.msra.mxu0 0.0
      %3715 = vmatprep.subr.mxu0 0.0
      %3716 = vmatpush1.msra.mxu0 0.0
      %3717 = vmatprep.subr.mxu0 0.0
      %3718 = vmatpush1.msra.mxu0 0.0
      %3719 = vmatprep.subr.mxu0 0.0
      %3720 = vmatpush1.msra.mxu0 0.0
      %3721 = vmatprep.subr.mxu0 0.0
      %3722 = vmatpush1.msra.mxu0 0.0
      %3723 = vmatprep.subr.mxu0 0.0
      %3724 = vmatpush1.msra.mxu0 0.0
      %3725 = vmatprep.subr.mxu0 0.0
      %3726 = vmatpush1.msra.mxu0 0.0
      %3727 = vmatprep.subr.mxu0 0.0
      %3728 = vmatpush1.msra.mxu0 0.0
      %3729 = vmatprep.subr.mxu0 0.0
      %3730 = vmatpush1.msra.mxu0 0.0
      %3731 = vmatprep.subr.mxu0 0.0
      %3732 = vmatpush1.msra.mxu0 0.0
      %3733 = vmatprep.subr.mxu0 0.0
      %3734 = vmatpush1.msra.mxu0 0.0
      %3735 = vmatprep.subr.mxu0 0.0
      %3736 = vmatpush1.msra.mxu0 0.0
      %3737 = vmatprep.subr.mxu0 0.0
      %3738 = vmatpush1.msra.mxu0 0.0
      %3739 = vmatprep.subr.mxu0 0.0
      %3740 = vmatpush1.msra.mxu0 0.0
      %3741 = vmatprep.subr.mxu0 0.0
      %3742 = vmatpush1.msra.mxu0 0.0
      %3743 = vmatprep.subr.mxu0 0.0
      %3744 = vmatpush1.msra.mxu0 0.0
      %3745 = vmatprep.subr.mxu0 0.0
      %3746 = vmatpush1.msra.mxu0 0.0
      %3747 = vmatprep.subr.mxu0 0.0
      %3748 = vmatpush1.msra.mxu0 0.0
      %3749 = vmatprep.subr.mxu0 0.0
      %3750 = vmatpush1.msra.mxu0 0.0
      %3751 = vmatprep.subr.mxu0 0.0
      %3752 = vmatpush1.msra.mxu0 0.0
      %3753 = vmatprep.subr.mxu0 0.0
      %3754 = vmatpush1.msra.mxu0 0.0
      %3755 = vmatprep.subr.mxu0 0.0
      %3756 = vmatpush1.msra.mxu0 0.0
      %3757 = vmatprep.mubr.f32.mxu0 0.0
      %3758 = vmatmul.mubr.f32.gmra.mrb[0].mxu0 %v3595
      %v3759 = vpop.f32.mrb[0].mxu0
      %v3760 = vadd.f32 0.0, %v3759
      %v3761 = vpop.f32.mrb[0].mxu0
      %3762 = vmatprep.mubr.f32.mxu0 0.0
      %3763 = vmatmul.mubr.f32.gmra.mrb[0].mxu0 %v3598
      %v3764 = vpop.f32.mrb[0].mxu0
      %v3765 = vadd.f32 0.0, %v3764
      %v3766 = vpop.f32.mrb[0].mxu0
      %3767 = vmatprep.mubr.f32.mxu0 0.0
      %3768 = vmatmul.mubr.f32.gmra.mrb[0].mxu0 %v3601
      %v3769 = vpop.f32.mrb[0].mxu0
      %v3770 = vadd.f32 0.0, %v3769
      %v3771 = vpop.f32.mrb[0].mxu0
      %3772 = vmatprep.mubr.f32.mxu0 0.0
      %3773 = vmatmul.mubr.f32.gmra.mrb[0].mxu0 %v3604
      %v3774 = vpop.f32.mrb[0].mxu0
      %v3775 = vadd.f32 0.0, %v3774
      %v3776 = vpop.f32.mrb[0].mxu0
      %3777 = vmatprep.mubr.f32.mxu0 0.0
      %3778 = vmatmul.mubr.f32.gmra.mrb[0].mxu0 %v3607
      %v3779 = vpop.f32.mrb[0].mxu0
      %v3780 = vadd.f32 0.0, %v3779
      %v3781 = vpop.f32.mrb[0].mxu0
      %3782 = vmatprep.mubr.f32.mxu0 0.0
      %3783 = vmatmul.mubr.f32.gmra.mrb[0].mxu0 %v3610
      %v3784 = vpop.f32.mrb[0].mxu0
      %v3785 = vadd.f32 0.0, %v3784
      %v3786 = vpop.f32.mrb[0].mxu0
      %3787 = vmatprep.mubr.f32.mxu0 0.0
      %3788 = vmatmul.mubr.f32.gmra.mrb[0].mxu0 %v3613
      %v3789 = vpop.f32.mrb[0].mxu0
      %v3790 = vadd.f32 0.0, %v3789
      %v3791 = vpop.f32.mrb[0].mxu0
      %3792 = vmatprep.mubr.f32.mxu0 0.0
      %3793 = vmatmul.mubr.f32.gmra.mrb[0].mxu0 %v3616
      %v3794 = vpop.f32.mrb[0].mxu0
      %v3795 = vadd.f32 0.0, %v3794
      %v3796 = vpop.f32.mrb[0].mxu0
      %3797 = vmatprep.mubr.f32.mxu0 0.0
      %3798 = vmatmul.mubr.f32.gmra.mrb[0].mxu0 %v3619
      %v3799 = vpop.f32.mrb[0].mxu0
      %v3800 = vadd.f32 0.0, %v3799
      %v3801 = vpop.f32.mrb[0].mxu0
      %3802 = vmatprep.mubr.f32.mxu0 0.0
      %3803 = vmatmul.mubr.f32.gmra.mrb[0].mxu0 %v3622
      %v3804 = vpop.f32.mrb[0].mxu0
      %v3805 = vadd.f32 0.0, %v3804
      %v3806 = vpop.f32.mrb[0].mxu0
      %3807 = vmatprep.mubr.f32.mxu0 0.0
      %3808 = vmatmul.mubr.f32.gmra.mrb[0].mxu0 %v3625
      %v3809 = vpop.f32.mrb[0].mxu0
      %v3810 = vadd.f32 0.0, %v3809
      %v3811 = vpop.f32.mrb[0].mxu0
      %3812 = vmatprep.mubr.f32.mxu0 0.0
      %3813 = vmatmul.mubr.f32.gmra.mrb[0].mxu0 %v3628
      %v3814 = vpop.f32.mrb[0].mxu0
      %v3815 = vadd.f32 0.0, %v3814
      %v3816 = vpop.f32.mrb[0].mxu0
      %3817 = vmatprep.mubr.f32.mxu0 0.0
      %3818 = vmatmul.mubr.f32.gmra.mrb[0].mxu0 %v3631
      %v3819 = vpop.f32.mrb[0].mxu0
      %v3820 = vadd.f32 0.0, %v3819
      %v3821 = vpop.f32.mrb[0].mxu0
      %3822 = vmatprep.mubr.f32.mxu0 0.0
      %3823 = vmatmul.mubr.f32.gmra.mrb[0].mxu0 %v3634
      %v3824 = vpop.f32.mrb[0].mxu0
      %v3825 = vadd.f32 0.0, %v3824
      %v3826 = vpop.f32.mrb[0].mxu0
      %3827 = vmatprep.mubr.f32.mxu0 0.0
      %3828 = vmatmul.mubr.f32.gmra.mrb[0].mxu0 %v3637
      %v3829 = vpop.f32.mrb[0].mxu0
      %v3830 = vadd.f32 0.0, %v3829
      %v3831 = vpop.f32.mrb[0].mxu0
      %3832 = vmatprep.mubr.f32.mxu0 0.0
      %3833 = vmatmul.mubr.f32.gmra.mrb[0].mxu0 %v3640
      %v3834 = vpop.f32.mrb[0].mxu0
      %v3835 = vadd.f32 0.0, %v3834
      %v3836 = vpop.f32.mrb[0].mxu0
      %3837 = vmatprep.mubr.f32.mxu0 0.0
      %3838 = vmatmul.mubr.f32.gmra.mrb[0].mxu0 %v3643
      %v3839 = vpop.f32.mrb[0].mxu0
      %v3840 = vadd.f32 0.0, %v3839
      %v3841 = vpop.f32.mrb[0].mxu0
      %3842 = vmatprep.mubr.f32.mxu0 0.0
      %3843 = vmatmul.mubr.f32.gmra.mrb[0].mxu0 %v3646
      %v3844 = vpop.f32.mrb[0].mxu0
      %v3845 = vadd.f32 0.0, %v3844
      %v3846 = vpop.f32.mrb[0].mxu0
      %3847 = vmatprep.mubr.f32.mxu0 0.0
      %3848 = vmatmul.mubr.f32.gmra.mrb[0].mxu0 %v3649
      %v3849 = vpop.f32.mrb[0].mxu0
      %v3850 = vadd.f32 0.0, %v3849
      %v3851 = vpop.f32.mrb[0].mxu0
      %3852 = vmatprep.mubr.f32.mxu0 0.0
      %3853 = vmatmul.mubr.f32.gmra.mrb[0].mxu0 %v3652
      %v3854 = vpop.f32.mrb[0].mxu0
      %v3855 = vadd.f32 0.0, %v3854
      %v3856 = vpop.f32.mrb[0].mxu0
      %3857 = vmatprep.mubr.f32.mxu0 0.0
      %3858 = vmatmul.mubr.f32.gmra.mrb[0].mxu0 %v3655
      %v3859 = vpop.f32.mrb[0].mxu0
      %v3860 = vadd.f32 0.0, %v3859
      %v3861 = vpop.f32.mrb[0].mxu0
      %3862 = vmatprep.mubr.f32.mxu0 0.0
      %3863 = vmatmul.mubr.f32.gmra.mrb[0].mxu0 %v3658
      %v3864 = vpop.f32.mrb[0].mxu0
      %v3865 = vadd.f32 0.0, %v3864
      %v3866 = vpop.f32.mrb[0].mxu0
      %3867 = vmatprep.mubr.f32.mxu0 0.0
      %3868 = vmatmul.mubr.f32.gmra.mrb[0].mxu0 %v3661
      %v3869 = vpop.f32.mrb[0].mxu0
      %v3870 = vadd.f32 0.0, %v3869
      %v3871 = vpop.f32.mrb[0].mxu0
      %3872 = vmatprep.mubr.f32.mxu0 0.0
      %3873 = vmatmul.mubr.f32.gmra.mrb[0].mxu0 %v3664
      %v3874 = vpop.f32.mrb[0].mxu0
      %v3875 = vadd.f32 0.0, %v3874
      %v3876 = vpop.f32.mrb[0].mxu0
      %3877 = vmatprep.mubr.f32.mxu0 0.0
      %3878 = vmatmul.mubr.f32.gmra.mrb[0].mxu0 %v3667
      %v3879 = vpop.f32.mrb[0].mxu0
      %v3880 = vadd.f32 0.0, %v3879
      %v3881 = vpop.f32.mrb[0].mxu0
      %3882 = vmatprep.mubr.f32.mxu0 0.0
      %3883 = vmatmul.mubr.f32.gmra.mrb[0].mxu0 %v3670
      %v3884 = vpop.f32.mrb[0].mxu0
      %v3885 = vadd.f32 0.0, %v3884
      %v3886 = vpop.f32.mrb[0].mxu0
      %3887 = vmatprep.mubr.f32.mxu0 0.0
      %3888 = vmatmul.mubr.f32.gmra.mrb[0].mxu0 %v3673
      %v3889 = vpop.f32.mrb[0].mxu0
      %v3890 = vadd.f32 0.0, %v3889
      %v3891 = vpop.f32.mrb[0].mxu0
      %3892 = vmatprep.mubr.f32.mxu0 0.0
      %3893 = vmatmul.mubr.f32.gmra.mrb[0].mxu0 %v3676
      %v3894 = vpop.f32.mrb[0].mxu0
      %v3895 = vadd.f32 0.0, %v3894
      %v3896 = vpop.f32.mrb[0].mxu0
      %3897 = vmatprep.mubr.f32.mxu0 0.0
      %3898 = vmatmul.mubr.f32.gmra.mrb[0].mxu0 %v3679
      %v3899 = vpop.f32.mrb[0].mxu0
      %v3900 = vadd.f32 0.0, %v3899
      %v3901 = vpop.f32.mrb[0].mxu0
      %3902 = vmatprep.mubr.f32.mxu0 0.0
      %3903 = vmatmul.mubr.f32.gmra.mrb[0].mxu0 %v3682
      %v3904 = vpop.f32.mrb[0].mxu0
      %v3905 = vadd.f32 0.0, %v3904
      %v3906 = vpop.f32.mrb[0].mxu0
      %3907 = vmatprep.mubr.f32.mxu0 0.0
      %3908 = vmatmul.mubr.f32.gmra.mrb[0].mxu0 %v3685
      %v3909 = vpop.f32.mrb[0].mxu0
      %v3910 = vadd.f32 0.0, %v3909
      %v3911 = vpop.f32.mrb[0].mxu0
      %3912 = vmatprep.mubr.f32.mxu0 0.0
      %3913 = vmatmul.mubr.f32.gmra.mrb[0].mxu0 %v3688
      %v3914 = vpop.f32.mrb[0].mxu0
      %v3915 = vadd.f32 0.0, %v3914
      %v3916 = vpop.f32.mrb[0].mxu0
      %3917 = vdwg.mxu0
      %v3918 = vadd.f32 %v3528, %v3760
      %v3919 = vadd.f32 %v3529, %v3765
      %v3920 = vadd.f32 %v3530, %v3770
      %v3921 = vadd.f32 %v3531, %v3775
      %v3922 = vadd.f32 %v3532, %v3780
      %v3923 = vadd.f32 %v3533, %v3785
      %v3924 = vadd.f32 %v3534, %v3790
      %v3925 = vadd.f32 %v3535, %v3795
      %v3926 = vadd.f32 %v3536, %v3800
      %v3927 = vadd.f32 %v3537, %v3805
      %v3928 = vadd.f32 %v3538, %v3810
      %v3929 = vadd.f32 %v3539, %v3815
      %v3930 = vadd.f32 %v3540, %v3820
      %v3931 = vadd.f32 %v3541, %v3825
      %v3932 = vadd.f32 %v3542, %v3830
      %v3933 = vadd.f32 %v3543, %v3835
      %v3934 = vadd.f32 %v3544, %v3840
      %v3935 = vadd.f32 %v3545, %v3845
      %v3936 = vadd.f32 %v3546, %v3850
      %v3937 = vadd.f32 %v3547, %v3855
      %v3938 = vadd.f32 %v3548, %v3860
      %v3939 = vadd.f32 %v3549, %v3865
      %v3940 = vadd.f32 %v3550, %v3870
      %v3941 = vadd.f32 %v3551, %v3875
      %v3942 = vadd.f32 %v3552, %v3880
      %v3943 = vadd.f32 %v3553, %v3885
      %v3944 = vadd.f32 %v3554, %v3890
      %v3945 = vadd.f32 %v3555, %v3895
      %v3946 = vadd.f32 %v3556, %v3900
      %v3947 = vadd.f32 %v3557, %v3905
      %v3948 = vadd.f32 %v3558, %v3910
      %v3949 = vadd.f32 %v3559, %v3915
      %vm3950 = vcmask 64512
      %3951 = vst.msk [vmem:[%s318] sm:$0xff] %vm3950, %v3918
      %3952 = vst.msk [vmem:[%s318 + $0x8] sm:$0xff] %vm3950, %v3919
      %3953 = vst.msk [vmem:[%s318 + $0x10] sm:$0xff] %vm3950, %v3920
      %3954 = vst.msk [vmem:[%s318 + $0x18] sm:$0xff] %vm3950, %v3921
      %3955 = vst.msk [vmem:[%s318 + $0x20] sm:$0xff] %vm3950, %v3922
      %3956 = vst.msk [vmem:[%s318 + $0x28] sm:$0xff] %vm3950, %v3923
      %3957 = vst.msk [vmem:[%s318 + $0x30] sm:$0xff] %vm3950, %v3924
      %3958 = vst.msk [vmem:[%s318 + $0x38] sm:$0xff] %vm3950, %v3925
      %3959 = vst.msk [vmem:[%s318 + $0x40] sm:$0xff] %vm3950, %v3926
      %3960 = vst.msk [vmem:[%s318 + $0x48] sm:$0xff] %vm3950, %v3927
      %3961 = vst.msk [vmem:[%s318 + $0x50] sm:$0xff] %vm3950, %v3928
      %3962 = vst.msk [vmem:[%s318 + $0x58] sm:$0xff] %vm3950, %v3929
      %3963 = vst.msk [vmem:[%s318 + $0x60] sm:$0xff] %vm3950, %v3930
      %3964 = vst.msk [vmem:[%s318 + $0x68] sm:$0xff] %vm3950, %v3931
      %3965 = vst.msk [vmem:[%s318 + $0x70] sm:$0xff] %vm3950, %v3932
      %3966 = vst.msk [vmem:[%s318 + $0x78] sm:$0xff] %vm3950, %v3933
      %3967 = vst.msk [vmem:[%s318 + $0x80] sm:$0xff] %vm3950, %v3934
      %3968 = vst.msk [vmem:[%s318 + $0x88] sm:$0xff] %vm3950, %v3935
      %3969 = vst.msk [vmem:[%s318 + $0x90] sm:$0xff] %vm3950, %v3936
      %3970 = vst.msk [vmem:[%s318 + $0x98] sm:$0xff] %vm3950, %v3937
      %3971 = vst.msk [vmem:[%s318 + $0xa0] sm:$0xff] %vm3950, %v3938
      %3972 = vst.msk [vmem:[%s318 + $0xa8] sm:$0xff] %vm3950, %v3939
      %3973 = vst.msk [vmem:[%s318 + $0xb0] sm:$0xff] %vm3950, %v3940
      %3974 = vst.msk [vmem:[%s318 + $0xb8] sm:$0xff] %vm3950, %v3941
      %3975 = vst.msk [vmem:[%s318 + $0xc0] sm:$0xff] %vm3950, %v3942
      %3976 = vst.msk [vmem:[%s318 + $0xc8] sm:$0xff] %vm3950, %v3943
      %3977 = vst.msk [vmem:[%s318 + $0xd0] sm:$0xff] %vm3950, %v3944
      %3978 = vst.msk [vmem:[%s318 + $0xd8] sm:$0xff] %vm3950, %v3945
      %3979 = vst.msk [vmem:[%s318 + $0xe0] sm:$0xff] %vm3950, %v3946
      %3980 = vst.msk [vmem:[%s318 + $0xe8] sm:$0xff] %vm3950, %v3947
      %3981 = vst.msk [vmem:[%s318 + $0xf0] sm:$0xff] %vm3950, %v3948
      %3982 = vst.msk [vmem:[%s318 + $0xf8] sm:$0xff] %vm3950, %v3949
      %s3983 = smul.u32 16, %s20
      %p3984 = scmp.lt.s32.totalorder %s19, 1
      %s3985 = scalar_select %p3984, %s19, 1
      %p3986 = scmp.lt.s32.totalorder %s3983, 15
      %s3987 = scalar_select %p3986, %s3983, 15
      %s3988 = smul.addr %s3987, 2
      %s3989 = smul.addr %s3985, 32
      %s3990 = sadd.s32 %s3988, %s3989
      %s3991 = smul.addr %s3990, 8
      %s3992 = scalar_lea.vmem %s4, %s3991
      // Predicated region
      $region37: #{tpu_custom_call.1} parent=35 // pred_check
        %p3993 = pneg %p149
      $region38: #{tpu_custom_call.1} parent=35 // pred_check_branch
        %3995 = sbr.rel (%p3993) target = $region40
      $region39: #{tpu_custom_call.1} parent=35 // pred_region
        %s3996 = smul.u32 16, %s20
      $region40: #{tpu_custom_call.1} parent=35 // pred_fallthru
        _
    $region36: #{tpu_custom_call.1} parent=5 // pred_fallthru
      _
    %p3997 = scmp.le.s32.totalorder 2, %s10
    // Predicated region
    $region41: #{tpu_custom_call.1} parent=5 // pred_check
      %p3998 = pneg %p3997
    $region42: #{tpu_custom_call.1} parent=5 // pred_check_branch
      %4000 = sbr.rel (%p3998) target = $region44
    $region43: #{tpu_custom_call.1} parent=5 // pred_region
      %s4001 = ssub.s32 %s10, 2
      // Predicated region
      $region45: #{tpu_custom_call.1} parent=43 // pred_check
        %p4002 = pneg %p155
      $region46: #{tpu_custom_call.1} parent=43 // pred_check_branch
        %4004 = sbr.rel (%p4002) target = $region48
      $region47: #{tpu_custom_call.1} parent=43 // pred_region
        %s4005 = smul.u32 16, %s22
        %p4006 = scmp.lt.s32.totalorder %s21, 1
        %s4007 = scalar_select %p4006, %s21, 1
        %p4008 = scmp.lt.s32.totalorder %s4005, 15
        %s4009 = scalar_select %p4008, %s4005, 15
        %s4010 = smul.addr %s4009, 2
        %s4011 = smul.addr %s4007, 32
        %s4012 = sadd.s32 %s4010, %s4011
        %s4013 = smul.addr %s4012, 8
        %s4014 = scalar_lea.vmem %s4, %s4013
      $region48: #{tpu_custom_call.1} parent=43 // pred_fallthru
        _
    $region44: #{tpu_custom_call.1} parent=5 // pred_fallthru
      _
  $region6: #{tpu_custom_call.1} parent=0 // loop_footer
    %s14 = sadd.s32 1, %s10
  $region7: #{tpu_custom_call.1} parent=0 // loop_footer_branch
    %9 = sbr.rel target = $region3
  $region8: #{tpu_custom_call.1} parent=0 // loop_exit
    _

</llo_original>
